<compile_context>
chip_gen: v7x
topology: tpu7x:2x2x1
jax: 0.10.0
libtpu: 0.0.40
codegen_flags: <defaults>
</compile_context>

<pallas_src>
import functools
import math

import jax
import jax.numpy as jnp
from jax.experimental import pallas as pl
from jax.experimental.pallas import tpu as pltpu  # noqa: F401  (imported per harness convention)

# ------------------------- model config (small, synthetic) -------------------------
NUM_CLASSES = 3
PRIORS_ARS = (1.0, 2.0, 0.5, 3.0, 1.0 / 3.0)
EXTRA_ARS = (1.0,)
NUM_PRIORS = len(PRIORS_ARS) + len(EXTRA_ARS)          # 6
FEATURE_LAYERS_NUMS = (0, 1)                            # both backbone layers feed heads
NUM_AUX_LAYERS = 1
# priors_scales = [0.1] + linspace(0.2, 0.9, len(feature_layers)+num_aux-1)
PRIOR_SCALES = [0.1] + [float(s) for s in
                        jnp.linspace(0.2, 0.9, len(FEATURE_LAYERS_NUMS) + NUM_AUX_LAYERS - 1)]


# ------------------------------ Pallas kernels -------------------------------------

def _matmul_bias_kernel(x_ref, w_ref, b_ref, o_ref, *, relu):
    """Fused (M, K) @ (K, N) + bias (+ optional ReLU) on the MXU; single block."""
    acc = jnp.dot(x_ref[...], w_ref[...], preferred_element_type=jnp.float32)
    acc = acc + b_ref[...]
    if relu:
        acc = jnp.maximum(acc, 0.0)
    o_ref[...] = acc.astype(o_ref.dtype)


def matmul_bias(x, w, b_row, *, relu=False):
    """x: (M, K), w: (K, N), b_row: (1, N) -> (M, N) float32.  Single-block pallas_call."""
    M, K = x.shape
    N = w.shape[1]
    Mp = ((M + 7) // 8) * 8                      # sublane-align M (already aligned here)
    if Mp != M:
        x = jnp.pad(x, ((0, Mp - M), (0, 0)))
    out = pl.pallas_call(
        functools.partial(_matmul_bias_kernel, relu=relu),
        out_shape=jax.ShapeDtypeStruct((Mp, N), jnp.float32),
    )(x, w, b_row)
    if Mp != M:
        out = out[:M]
    return out


def _decode_kernel(def_ref, off_ref, out_ref, *, batch):
    """SSD decode + cxcywh->xyxy, batch folded into sublanes.

    def_ref: (4, T)        default boxes (cx, cy, w, h)
    off_ref: (B*4, T)      predicted offsets, rows [b*4 + (gcx, gcy, gw, gh)]
    out_ref: (B*4, T)      decoded xyxy boxes, rows [b*4 + (x1, y1, x2, y2)]
    """
    d = def_ref[...]                                   # (4, T)
    for b in range(batch):                             # static unroll (B is tiny)
        o = off_ref[pl.ds(4 * b, 4), :]                # (4, T)
        cx = d[0:1, :] + d[2:3, :] * o[0:1, :]
        cy = d[1:2, :] + d[3:4, :] * o[1:2, :]
        bw = d[2:3, :] * jnp.exp(o[2:3, :])
        bh = d[3:4, :] * jnp.exp(o[3:4, :])
        out_ref[pl.ds(4 * b, 4), :] = jnp.concatenate(
            [cx - 0.5 * bw, cy - 0.5 * bh, cx + 0.5 * bw, cy + 0.5 * bh], axis=0)


def decode_boxes(defaults_4t, offsets_b4t):
    """defaults: (4, T), offsets: (B, 4, T) -> xyxy boxes (B, 4, T).  Single kernel step."""
    B, _, T = offsets_b4t.shape
    off = offsets_b4t.reshape(B * 4, T)
    out = pl.pallas_call(
        functools.partial(_decode_kernel, batch=B),
        out_shape=jax.ShapeDtypeStruct((B * 4, T), jnp.float32),
    )(defaults_4t, off)
    return out.reshape(B, 4, T)


# --------------------------------- glue (plain JAX) ---------------------------------

def im2col(x_nhwc, kh, kw, stride, padding):
    """(N, H, W, C) -> ((N*Ho*Wo, kh*kw*C), Ho, Wo); patch layout = [(i,j) outer, C inner]."""
    N, H, W, C = x_nhwc.shape
    xp = jnp.pad(x_nhwc, ((0, 0), (padding, padding), (padding, padding), (0, 0)))
    Ho = (H + 2 * padding - kh) // stride + 1
    Wo = (W + 2 * padding - kw) // stride + 1
    cols = []
    for i in range(kh):
        for j in range(kw):
            cols.append(xp[:, i:i + stride * Ho:stride, j:j + stride * Wo:stride, :])
    cols = jnp.concatenate(cols, axis=-1)
    return cols.reshape(N * Ho * Wo, kh * kw * C), Ho, Wo


def conv2d(x_nhwc, w_mat, b_row, kh, kw, *, stride=1, padding=0, relu=False):
    """General conv (im2col + Pallas matmul). w_mat: (kh*kw*Cin, Cout), b_row: (1, Cout)."""
    N = x_nhwc.shape[0]
    cols, Ho, Wo = im2col(x_nhwc, kh, kw, stride, padding)
    out = matmul_bias(cols, w_mat, b_row, relu=relu)
    return out.reshape(N, Ho, Wo, w_mat.shape[1])


def conv2d_1x1(x_nhwc, w_mat, b_row, *, relu=False):
    """1x1 conv fast path: no im2col, just flatten spatial dims."""
    N, H, W, C = x_nhwc.shape
    out = matmul_bias(x_nhwc.reshape(N * H * W, C), w_mat, b_row, relu=relu)
    return out.reshape(N, H, W, w_mat.shape[1])


def _conv_out(h, k, s, p):
    return (h + 2 * p - k) // s + 1


def feature_map_shapes(H, W):
    h0, w0 = _conv_out(H, 3, 1, 1), _conv_out(W, 3, 1, 1)   # bb0: 3x3, s1, p1
    h1, w1 = _conv_out(h0, 3, 2, 1), _conv_out(w0, 3, 2, 1)  # bb1: 3x3, s2, p1
    h2, w2 = _conv_out(h1, 3, 1, 0), _conv_out(w1, 3, 1, 0)  # aux: 1x1 then 3x3, p0
    return [(h0, w0), (h1, w1), (h2, w2)]


def generate_default_boxes(shapes, scales, priors_ars, extra_ars):
    """Same prior-grid generation as SSMBDLikeDetector._generate_default_boxes (cxcywh)."""
    all_boxes = []
    nxt_scales = list(scales[1:]) + [1.0]
    for (h, w), scale, nxt in zip(shapes, scales, nxt_scales):
        cxs = jnp.linspace(0.5 / w, 1 - 0.5 / w, w)
        cys = jnp.linspace(0.5 / h, 1 - 0.5 / h, h)
        gcy, gcx = jnp.meshgrid(cys, cxs, indexing="ij")          # (h, w)
        fmap = []
        for ar in priors_ars:
            r = ar ** 0.5
            fmap.append(jnp.stack(
                [gcx, gcy, jnp.full((h, w), scale * r), jnp.full((h, w), scale / r)], axis=-1))
        extra_scale = (scale * nxt) ** 0.5
        for ar in extra_ars:
            r = ar ** 0.5
            fmap.append(jnp.stack(
                [gcx, gcy, jnp.full((h, w), extra_scale * r),
                 jnp.full((h, w), extra_scale / r)], axis=-1))
        fb = jnp.stack(fmap, axis=-2)                              # (h, w, P, 4) cxcywh
        # cxcywh -> xyxy -> clip to [0, 1] -> back to cxcywh (as in the reference)
        c_x, c_y, bw, bh = fb[..., 0], fb[..., 1], fb[..., 2], fb[..., 3]
        x1 = jnp.clip(c_x - 0.5 * bw, 0.0, 1.0)
        y1 = jnp.clip(c_y - 0.5 * bh, 0.0, 1.0)
        x2 = jnp.clip(c_x + 0.5 * bw, 0.0, 1.0)
        y2 = jnp.clip(c_y + 0.5 * bh, 0.0, 1.0)
        fb = jnp.stack([(x1 + x2) * 0.5, (y1 + y2) * 0.5, x2 - x1, y2 - y1], axis=-1)
        all_boxes.append(fb.reshape(-1, 4))
    return jnp.concatenate(all_boxes, axis=0)                      # (T, 4)


# ------------------------------- parameter creation ---------------------------------

def xavier_uniform(key, shape, gain=math.sqrt(2.0)):
    O, I, kh, kw = shape
    fan_in, fan_out = I * kh * kw, O * kh * kw
    a = gain * math.sqrt(6.0 / (fan_in + fan_out))
    return jax.random.uniform(key, shape, jnp.float32, -a, a)


def make_params(key):
    ks = list(jax.random.split(key, 32))
    p = {}
    # backbone layer 0: Conv3x3 4->8, pad 1, stride 1, ReLU
    p["bb0_w"] = xavier_uniform(ks[0], (8, 4, 3, 3)); p["bb0_b"] = jnp.zeros((8,), jnp.float32)
    # backbone layer 1: Conv3x3 8->8, pad 1, stride 2, ReLU
    p["bb1_w"] = xavier_uniform(ks[1], (8, 8, 3, 3)); p["bb1_b"] = jnp.zeros((8,), jnp.float32)
    # AuxiliaryConv(8 -> 8): Conv1x1 8->4 + BN(4) + ReLU + Conv3x3 4->8 (pad 0) + ReLU
    aux_w1 = xavier_uniform(ks[2], (4, 8, 1, 1)); aux_b1 = jnp.zeros((4,), jnp.float32)
    bn_gamma = 1.0 + 0.1 * jax.random.normal(ks[3], (4,), jnp.float32)
    bn_beta = 0.1 * jax.random.normal(ks[4], (4,), jnp.float32)
    bn_mean = 0.1 * jax.random.normal(ks[5], (4,), jnp.float32)
    bn_var = jnp.abs(1.0 + 0.1 * jax.random.normal(ks[6], (4,), jnp.float32))
    bn_scale = bn_gamma / jnp.sqrt(bn_var + 1e-5)
    bn_shift = bn_beta - bn_mean * bn_scale
    p["aux_w1"] = aux_w1 * bn_scale[:, None, None, None]
    p["aux_b1"] = aux_b1 * bn_scale + bn_shift
    p["aux_w2"] = xavier_uniform(ks[7], (8, 4, 3, 3)); p["aux_b2"] = jnp.zeros((8,), jnp.float32)
    # loc / clf heads (1x1 convs), one pair per prediction feature map
    for i in range(3):
        p[f"loc{i}_w"] = xavier_uniform(ks[8 + 2 * i], (NUM_PRIORS * 4, 8, 1, 1))
        p[f"loc{i}_b"] = jnp.zeros((NUM_PRIORS * 4,), jnp.float32)
        p[f"clf{i}_w"] = xavier_uniform(ks[9 + 2 * i], (NUM_PRIORS * NUM_CLASSES, 8, 1, 1))
        p[f"clf{i}_b"] = jnp.zeros((NUM_PRIORS * NUM_CLASSES,), jnp.float32)
    return p


def prepare_params(p):
    """Fold PyTorch-layout conv weights into matmul matrices ONCE, outside the jitted graph.
    Also fuses each (loc, clf) head pair into a single (8, 42) weight / (1, 42) bias."""
    def wmat(w):  # OIHW -> (kh*kw*I, O), row order = (i, j, c) matching im2col
        return jnp.transpose(w, (2, 3, 1, 0)).reshape(-1, w.shape[0])

    q = {
        "bb0_w": wmat(p["bb0_w"]), "bb0_b": p["bb0_b"].reshape(1, -1),
        "bb1_w": wmat(p["bb1_w"]), "bb1_b": p["bb1_b"].reshape(1, -1),
        "aux1_w": wmat(p["aux_w1"]), "aux1_b": p["aux_b1"].reshape(1, -1),
        "aux2_w": wmat(p["aux_w2"]), "aux2_b": p["aux_b2"].reshape(1, -1),
    }
    for i in range(3):
        q[f"head{i}_w"] = jnp.concatenate([wmat(p[f"loc{i}_w"]), wmat(p[f"clf{i}_w"])], axis=1)
        q[f"head{i}_b"] = jnp.concatenate(
            [p[f"loc{i}_b"], p[f"clf{i}_b"]], axis=0).reshape(1, -1)
    return q


# ----------------------------------- forward ----------------------------------------

def ssd_forward(params, x_nchw, defaults_4t):
    """Returns (boxes_xyxy (B, T, 4), class_scores (B, T, num_classes))."""
    x = jnp.transpose(x_nchw, (0, 2, 3, 1)).astype(jnp.float32)   # NCHW -> NHWC
    B = x.shape[0]

    # backbone (both layers are prediction feature layers)
    f0 = conv2d(x, params["bb0_w"], params["bb0_b"], 3, 3, stride=1, padding=1, relu=True)
    f1 = conv2d(f0, params["bb1_w"], params["bb1_b"], 3, 3, stride=2, padding=1, relu=True)
    # auxiliary conv stack (1x1 + folded BN + ReLU, then 3x3 pad 0 + ReLU)
    h1 = conv2d_1x1(f1, params["aux1_w"], params["aux1_b"], relu=True)
    f2 = conv2d(h1, params["aux2_w"], params["aux2_b"], 3, 3, stride=1, padding=0, relu=True)

    loc_outs, clf_outs = [], []
    for i, f in enumerate((f0, f1, f2)):
        _, H, W, C = f.shape
        # fused loc+clf head: one (B*H*W, 8) @ (8, 42) matmul, split columns afterwards
        head = matmul_bias(f.reshape(B * H * W, C),
                           params[f"head{i}_w"], params[f"head{i}_b"])
        loc_outs.append(head[:, :NUM_PRIORS * 4].reshape(B, H * W * NUM_PRIORS, 4))
        clf_outs.append(head[:, NUM_PRIORS * 4:].reshape(B, H * W * NUM_PRIORS, NUM_CLASSES))

    offsets = jnp.concatenate(loc_outs, axis=1)                   # (B, T, 4)
    scores = jnp.concatenate(clf_outs, axis=1)                    # (B, T, C)

    boxes_4t = decode_boxes(defaults_4t, jnp.transpose(offsets, (0, 2, 1)))  # (B, 4, T) xyxy
    boxes = jnp.transpose(boxes_4t, (0, 2, 1))                    # (B, T, 4)
    return boxes, scores


# ------------------------------------- main ------------------------------------------

if __name__ == "__main__":
    key = jax.random.PRNGKey(0)
    k_param, k_input = jax.random.split(key)
    params = make_params(k_param)
    prepared = prepare_params(params)                              # eager, outside jit
    x = jax.random.normal(k_input, (2, 4, 16, 16), jnp.float32)    # NCHW input

    # default boxes depend only on static shapes -> precompute once outside the jitted forward
    shapes = feature_map_shapes(x.shape[2], x.shape[3])            # [(16,16), (8,8), (6,6)]
    defaults = generate_default_boxes(shapes, PRIOR_SCALES, PRIORS_ARS, EXTRA_ARS)  # (T, 4)
    defaults_4t = jnp.transpose(defaults, (1, 0))                  # (4, T)

    fwd = jax.jit(ssd_forward)
    boxes, scores = fwd(prepared, x, defaults_4t)
    boxes = jax.block_until_ready(boxes)
    scores = jax.block_until_ready(scores)

    T = sum(h * w * NUM_PRIORS for h, w in shapes)                 # 2136
    assert boxes.shape == (2, T, 4), boxes.shape
    assert scores.shape == (2, T, NUM_CLASSES), scores.shape
    assert bool(jnp.all(jnp.isfinite(boxes))) and bool(jnp.all(jnp.isfinite(scores)))
    print("KERNEL_OK")
</pallas_src>

<mosaic_0001>
module attributes {stable_mosaic.version = 11 : i64} {
  func.func @_matmul_bias_kernel(%arg0: memref<512x36xf32, #tpu.memory_space<vmem>>, %arg1: memref<36x8xf32, #tpu.memory_space<vmem>>, %arg2: memref<1x8xf32, #tpu.memory_space<vmem>>, %arg3: memref<512x8xf32, #tpu.memory_space<vmem>>) attributes {dimension_semantics = [], scalar_prefetch = 0 : i64, scratch_operands = 0 : i64, tpu.core_type = #tpu.core_type<tc>} {
    %c0 = arith.constant 0 : index
    %c0_0 = arith.constant 0 : index
    %0 = vector.load %arg0[%c0, %c0_0] : memref<512x36xf32, #tpu.memory_space<vmem>>, vector<512x36xf32>
    %c0_1 = arith.constant 0 : index
    %c0_2 = arith.constant 0 : index
    %1 = vector.load %arg1[%c0_1, %c0_2] : memref<36x8xf32, #tpu.memory_space<vmem>>, vector<36x8xf32>
    %cst = arith.constant dense<0.000000e+00> : vector<512x8xf32>
    %2 = tpu.matmul %0, %1, %cst {dimension_numbers = #tpu.dot_dimension_numbers<[1], [0], [0], [1], [0, 0, 1, 1], [], []>} : vector<512x36xf32>, vector<36x8xf32>, vector<512x8xf32> -> vector<512x8xf32>
    %c0_3 = arith.constant 0 : index
    %c0_4 = arith.constant 0 : index
    %3 = vector.load %arg2[%c0_3, %c0_4] : memref<1x8xf32, #tpu.memory_space<vmem>>, vector<1x8xf32>
    %4 = vector.broadcast %3 : vector<1x8xf32> to vector<512x8xf32>
    %5 = arith.addf %2, %4 : vector<512x8xf32>
    %cst_5 = arith.constant 0.000000e+00 : f32
    %6 = vector.broadcast %cst_5 : f32 to vector<512x8xf32>
    %7 = arith.maximumf %5, %6 : vector<512x8xf32>
    %c0_6 = arith.constant 0 : index
    %c0_7 = arith.constant 0 : index
    %8 = vector.load %arg3[%c0_6, %c0_7] : memref<512x8xf32, #tpu.memory_space<vmem>>, vector<512x8xf32>
    tpu.vector_store %arg3[%c0_6, %c0_7], %7 {strides = array<i32>} : memref<512x8xf32, #tpu.memory_space<vmem>>, vector<512x8xf32>,
    return
  }
}

module attributes {stable_mosaic.version = 11 : i64} {
  func.func @_matmul_bias_kernel(%arg0: memref<128x8xf32, #tpu.memory_space<vmem>>, %arg1: memref<8x4xf32, #tpu.memory_space<vmem>>, %arg2: memref<1x4xf32, #tpu.memory_space<vmem>>, %arg3: memref<128x4xf32, #tpu.memory_space<vmem>>) attributes {dimension_semantics = [], scalar_prefetch = 0 : i64, scratch_operands = 0 : i64, tpu.core_type = #tpu.core_type<tc>} {
    %c0 = arith.constant 0 : index
    %c0_0 = arith.constant 0 : index
    %0 = vector.load %arg0[%c0, %c0_0] : memref<128x8xf32, #tpu.memory_space<vmem>>, vector<128x8xf32>
    %c0_1 = arith.constant 0 : index
    %c0_2 = arith.constant 0 : index
    %1 = vector.load %arg1[%c0_1, %c0_2] : memref<8x4xf32, #tpu.memory_space<vmem>>, vector<8x4xf32>
    %cst = arith.constant dense<0.000000e+00> : vector<128x4xf32>
    %2 = tpu.matmul %0, %1, %cst {dimension_numbers = #tpu.dot_dimension_numbers<[1], [0], [0], [1], [0, 0, 1, 1], [], []>} : vector<128x8xf32>, vector<8x4xf32>, vector<128x4xf32> -> vector<128x4xf32>
    %c0_3 = arith.constant 0 : index
    %c0_4 = arith.constant 0 : index
    %3 = vector.load %arg2[%c0_3, %c0_4] : memref<1x4xf32, #tpu.memory_space<vmem>>, vector<1x4xf32>
    %4 = vector.broadcast %3 : vector<1x4xf32> to vector<128x4xf32>
    %5 = arith.addf %2, %4 : vector<128x4xf32>
    %cst_5 = arith.constant 0.000000e+00 : f32
    %6 = vector.broadcast %cst_5 : f32 to vector<128x4xf32>
    %7 = arith.maximumf %5, %6 : vector<128x4xf32>
    %c0_6 = arith.constant 0 : index
    %c0_7 = arith.constant 0 : index
    %8 = vector.load %arg3[%c0_6, %c0_7] : memref<128x4xf32, #tpu.memory_space<vmem>>, vector<128x4xf32>
    tpu.vector_store %arg3[%c0_6, %c0_7], %7 {strides = array<i32>} : memref<128x4xf32, #tpu.memory_space<vmem>>, vector<128x4xf32>,
    return
  }
}

module attributes {stable_mosaic.version = 11 : i64} {
  func.func @_matmul_bias_kernel(%arg0: memref<128x72xf32, #tpu.memory_space<vmem>>, %arg1: memref<72x8xf32, #tpu.memory_space<vmem>>, %arg2: memref<1x8xf32, #tpu.memory_space<vmem>>, %arg3: memref<128x8xf32, #tpu.memory_space<vmem>>) attributes {dimension_semantics = [], scalar_prefetch = 0 : i64, scratch_operands = 0 : i64, tpu.core_type = #tpu.core_type<tc>} {
    %c0 = arith.constant 0 : index
    %c0_0 = arith.constant 0 : index
    %0 = vector.load %arg0[%c0, %c0_0] : memref<128x72xf32, #tpu.memory_space<vmem>>, vector<128x72xf32>
    %c0_1 = arith.constant 0 : index
    %c0_2 = arith.constant 0 : index
    %1 = vector.load %arg1[%c0_1, %c0_2] : memref<72x8xf32, #tpu.memory_space<vmem>>, vector<72x8xf32>
    %cst = arith.constant dense<0.000000e+00> : vector<128x8xf32>
    %2 = tpu.matmul %0, %1, %cst {dimension_numbers = #tpu.dot_dimension_numbers<[1], [0], [0], [1], [0, 0, 1, 1], [], []>} : vector<128x72xf32>, vector<72x8xf32>, vector<128x8xf32> -> vector<128x8xf32>
    %c0_3 = arith.constant 0 : index
    %c0_4 = arith.constant 0 : index
    %3 = vector.load %arg2[%c0_3, %c0_4] : memref<1x8xf32, #tpu.memory_space<vmem>>, vector<1x8xf32>
    %4 = vector.broadcast %3 : vector<1x8xf32> to vector<128x8xf32>
    %5 = arith.addf %2, %4 : vector<128x8xf32>
    %cst_5 = arith.constant 0.000000e+00 : f32
    %6 = vector.broadcast %cst_5 : f32 to vector<128x8xf32>
    %7 = arith.maximumf %5, %6 : vector<128x8xf32>
    %c0_6 = arith.constant 0 : index
    %c0_7 = arith.constant 0 : index
    %8 = vector.load %arg3[%c0_6, %c0_7] : memref<128x8xf32, #tpu.memory_space<vmem>>, vector<128x8xf32>
    tpu.vector_store %arg3[%c0_6, %c0_7], %7 {strides = array<i32>} : memref<128x8xf32, #tpu.memory_space<vmem>>, vector<128x8xf32>,
    return
  }
}

module attributes {stable_mosaic.version = 11 : i64} {
  func.func @_matmul_bias_kernel(%arg0: memref<72x36xf32, #tpu.memory_space<vmem>>, %arg1: memref<36x8xf32, #tpu.memory_space<vmem>>, %arg2: memref<1x8xf32, #tpu.memory_space<vmem>>, %arg3: memref<72x8xf32, #tpu.memory_space<vmem>>) attributes {dimension_semantics = [], scalar_prefetch = 0 : i64, scratch_operands = 0 : i64, tpu.core_type = #tpu.core_type<tc>} {
    %c0 = arith.constant 0 : index
    %c0_0 = arith.constant 0 : index
    %0 = vector.load %arg0[%c0, %c0_0] : memref<72x36xf32, #tpu.memory_space<vmem>>, vector<72x36xf32>
    %c0_1 = arith.constant 0 : index
    %c0_2 = arith.constant 0 : index
    %1 = vector.load %arg1[%c0_1, %c0_2] : memref<36x8xf32, #tpu.memory_space<vmem>>, vector<36x8xf32>
    %cst = arith.constant dense<0.000000e+00> : vector<72x8xf32>
    %2 = tpu.matmul %0, %1, %cst {dimension_numbers = #tpu.dot_dimension_numbers<[1], [0], [0], [1], [0, 0, 1, 1], [], []>} : vector<72x36xf32>, vector<36x8xf32>, vector<72x8xf32> -> vector<72x8xf32>
    %c0_3 = arith.constant 0 : index
    %c0_4 = arith.constant 0 : index
    %3 = vector.load %arg2[%c0_3, %c0_4] : memref<1x8xf32, #tpu.memory_space<vmem>>, vector<1x8xf32>
    %4 = vector.broadcast %3 : vector<1x8xf32> to vector<72x8xf32>
    %5 = arith.addf %2, %4 : vector<72x8xf32>
    %cst_5 = arith.constant 0.000000e+00 : f32
    %6 = vector.broadcast %cst_5 : f32 to vector<72x8xf32>
    %7 = arith.maximumf %5, %6 : vector<72x8xf32>
    %c0_6 = arith.constant 0 : index
    %c0_7 = arith.constant 0 : index
    %8 = vector.load %arg3[%c0_6, %c0_7] : memref<72x8xf32, #tpu.memory_space<vmem>>, vector<72x8xf32>
    tpu.vector_store %arg3[%c0_6, %c0_7], %7 {strides = array<i32>} : memref<72x8xf32, #tpu.memory_space<vmem>>, vector<72x8xf32>,
    return
  }
}

module attributes {stable_mosaic.version = 11 : i64} {
  func.func @_matmul_bias_kernel(%arg0: memref<72x8xf32, #tpu.memory_space<vmem>>, %arg1: memref<8x42xf32, #tpu.memory_space<vmem>>, %arg2: memref<1x42xf32, #tpu.memory_space<vmem>>, %arg3: memref<72x42xf32, #tpu.memory_space<vmem>>) attributes {dimension_semantics = [], scalar_prefetch = 0 : i64, scratch_operands = 0 : i64, tpu.core_type = #tpu.core_type<tc>} {
    %c0 = arith.constant 0 : index
    %c0_0 = arith.constant 0 : index
    %0 = vector.load %arg0[%c0, %c0_0] : memref<72x8xf32, #tpu.memory_space<vmem>>, vector<72x8xf32>
    %c0_1 = arith.constant 0 : index
    %c0_2 = arith.constant 0 : index
    %1 = vector.load %arg1[%c0_1, %c0_2] : memref<8x42xf32, #tpu.memory_space<vmem>>, vector<8x42xf32>
    %cst = arith.constant dense<0.000000e+00> : vector<72x42xf32>
    %2 = tpu.matmul %0, %1, %cst {dimension_numbers = #tpu.dot_dimension_numbers<[1], [0], [0], [1], [0, 0, 1, 1], [], []>} : vector<72x8xf32>, vector<8x42xf32>, vector<72x42xf32> -> vector<72x42xf32>
    %c0_3 = arith.constant 0 : index
    %c0_4 = arith.constant 0 : index
    %3 = vector.load %arg2[%c0_3, %c0_4] : memref<1x42xf32, #tpu.memory_space<vmem>>, vector<1x42xf32>
    %4 = vector.broadcast %3 : vector<1x42xf32> to vector<72x42xf32>
    %5 = arith.addf %2, %4 : vector<72x42xf32>
    %c0_5 = arith.constant 0 : index
    %c0_6 = arith.constant 0 : index
    %6 = vector.load %arg3[%c0_5, %c0_6] : memref<72x42xf32, #tpu.memory_space<vmem>>, vector<72x42xf32>
    tpu.vector_store %arg3[%c0_5, %c0_6], %5 {strides = array<i32>} : memref<72x42xf32, #tpu.memory_space<vmem>>, vector<72x42xf32>,
    return
  }
}

module attributes {stable_mosaic.version = 11 : i64} {
  func.func @_matmul_bias_kernel(%arg0: memref<512x8xf32, #tpu.memory_space<vmem>>, %arg1: memref<8x42xf32, #tpu.memory_space<vmem>>, %arg2: memref<1x42xf32, #tpu.memory_space<vmem>>, %arg3: memref<512x42xf32, #tpu.memory_space<vmem>>) attributes {dimension_semantics = [], scalar_prefetch = 0 : i64, scratch_operands = 0 : i64, tpu.core_type = #tpu.core_type<tc>} {
    %c0 = arith.constant 0 : index
    %c0_0 = arith.constant 0 : index
    %0 = vector.load %arg0[%c0, %c0_0] : memref<512x8xf32, #tpu.memory_space<vmem>>, vector<512x8xf32>
    %c0_1 = arith.constant 0 : index
    %c0_2 = arith.constant 0 : index
    %1 = vector.load %arg1[%c0_1, %c0_2] : memref<8x42xf32, #tpu.memory_space<vmem>>, vector<8x42xf32>
    %cst = arith.constant dense<0.000000e+00> : vector<512x42xf32>
    %2 = tpu.matmul %0, %1, %cst {dimension_numbers = #tpu.dot_dimension_numbers<[1], [0], [0], [1], [0, 0, 1, 1], [], []>} : vector<512x8xf32>, vector<8x42xf32>, vector<512x42xf32> -> vector<512x42xf32>
    %c0_3 = arith.constant 0 : index
    %c0_4 = arith.constant 0 : index
    %3 = vector.load %arg2[%c0_3, %c0_4] : memref<1x42xf32, #tpu.memory_space<vmem>>, vector<1x42xf32>
    %4 = vector.broadcast %3 : vector<1x42xf32> to vector<512x42xf32>
    %5 = arith.addf %2, %4 : vector<512x42xf32>
    %c0_5 = arith.constant 0 : index
    %c0_6 = arith.constant 0 : index
    %6 = vector.load %arg3[%c0_5, %c0_6] : memref<512x42xf32, #tpu.memory_space<vmem>>, vector<512x42xf32>
    tpu.vector_store %arg3[%c0_5, %c0_6], %5 {strides = array<i32>} : memref<512x42xf32, #tpu.memory_space<vmem>>, vector<512x42xf32>,
    return
  }
}

module attributes {stable_mosaic.version = 11 : i64} {
  func.func @_matmul_bias_kernel(%arg0: memref<128x8xf32, #tpu.memory_space<vmem>>, %arg1: memref<8x42xf32, #tpu.memory_space<vmem>>, %arg2: memref<1x42xf32, #tpu.memory_space<vmem>>, %arg3: memref<128x42xf32, #tpu.memory_space<vmem>>) attributes {dimension_semantics = [], scalar_prefetch = 0 : i64, scratch_operands = 0 : i64, tpu.core_type = #tpu.core_type<tc>} {
    %c0 = arith.constant 0 : index
    %c0_0 = arith.constant 0 : index
    %0 = vector.load %arg0[%c0, %c0_0] : memref<128x8xf32, #tpu.memory_space<vmem>>, vector<128x8xf32>
    %c0_1 = arith.constant 0 : index
    %c0_2 = arith.constant 0 : index
    %1 = vector.load %arg1[%c0_1, %c0_2] : memref<8x42xf32, #tpu.memory_space<vmem>>, vector<8x42xf32>
    %cst = arith.constant dense<0.000000e+00> : vector<128x42xf32>
    %2 = tpu.matmul %0, %1, %cst {dimension_numbers = #tpu.dot_dimension_numbers<[1], [0], [0], [1], [0, 0, 1, 1], [], []>} : vector<128x8xf32>, vector<8x42xf32>, vector<128x42xf32> -> vector<128x42xf32>
    %c0_3 = arith.constant 0 : index
    %c0_4 = arith.constant 0 : index
    %3 = vector.load %arg2[%c0_3, %c0_4] : memref<1x42xf32, #tpu.memory_space<vmem>>, vector<1x42xf32>
    %4 = vector.broadcast %3 : vector<1x42xf32> to vector<128x42xf32>
    %5 = arith.addf %2, %4 : vector<128x42xf32>
    %c0_5 = arith.constant 0 : index
    %c0_6 = arith.constant 0 : index
    %6 = vector.load %arg3[%c0_5, %c0_6] : memref<128x42xf32, #tpu.memory_space<vmem>>, vector<128x42xf32>
    tpu.vector_store %arg3[%c0_5, %c0_6], %5 {strides = array<i32>} : memref<128x42xf32, #tpu.memory_space<vmem>>, vector<128x42xf32>,
    return
  }
}

module attributes {stable_mosaic.version = 11 : i64} {
  func.func @_decode_kernel(%arg0: memref<4x2136xf32, #tpu.memory_space<vmem>>, %arg1: memref<8x2136xf32, #tpu.memory_space<vmem>>, %arg2: memref<8x2136xf32, #tpu.memory_space<vmem>>) attributes {dimension_semantics = [], scalar_prefetch = 0 : i64, scratch_operands = 0 : i64, tpu.core_type = #tpu.core_type<tc>} {
    %c0 = arith.constant 0 : index
    %c0_0 = arith.constant 0 : index
    %0 = vector.load %arg0[%c0, %c0_0] : memref<4x2136xf32, #tpu.memory_space<vmem>>, vector<4x2136xf32>
    %c0_1 = arith.constant 0 : index
    %c0_2 = arith.constant 0 : index
    %1 = vector.load %arg1[%c0_1, %c0_2] : memref<8x2136xf32, #tpu.memory_space<vmem>>, vector<4x2136xf32>
    %2 = vector.extract_strided_slice %0 {offsets = [0, 0], sizes = [1, 2136], strides = [1, 1]} : vector<4x2136xf32> to vector<1x2136xf32>
    %3 = vector.extract_strided_slice %0 {offsets = [2, 0], sizes = [1, 2136], strides = [1, 1]} : vector<4x2136xf32> to vector<1x2136xf32>
    %4 = vector.extract_strided_slice %1 {offsets = [0, 0], sizes = [1, 2136], strides = [1, 1]} : vector<4x2136xf32> to vector<1x2136xf32>
    %5 = arith.mulf %3, %4 : vector<1x2136xf32>
    %6 = arith.addf %2, %5 : vector<1x2136xf32>
    %7 = vector.extract_strided_slice %0 {offsets = [1, 0], sizes = [1, 2136], strides = [1, 1]} : vector<4x2136xf32> to vector<1x2136xf32>
    %8 = vector.extract_strided_slice %0 {offsets = [3, 0], sizes = [1, 2136], strides = [1, 1]} : vector<4x2136xf32> to vector<1x2136xf32>
    %9 = vector.extract_strided_slice %1 {offsets = [1, 0], sizes = [1, 2136], strides = [1, 1]} : vector<4x2136xf32> to vector<1x2136xf32>
    %10 = arith.mulf %8, %9 : vector<1x2136xf32>
    %11 = arith.addf %7, %10 : vector<1x2136xf32>
    %12 = vector.extract_strided_slice %0 {offsets = [2, 0], sizes = [1, 2136], strides = [1, 1]} : vector<4x2136xf32> to vector<1x2136xf32>
    %13 = vector.extract_strided_slice %1 {offsets = [2, 0], sizes = [1, 2136], strides = [1, 1]} : vector<4x2136xf32> to vector<1x2136xf32>
    %14 = math.exp %13 : vector<1x2136xf32>
    %15 = arith.mulf %12, %14 : vector<1x2136xf32>
    %16 = vector.extract_strided_slice %0 {offsets = [3, 0], sizes = [1, 2136], strides = [1, 1]} : vector<4x2136xf32> to vector<1x2136xf32>
    %17 = vector.extract_strided_slice %1 {offsets = [3, 0], sizes = [1, 2136], strides = [1, 1]} : vector<4x2136xf32> to vector<1x2136xf32>
    %18 = math.exp %17 : vector<1x2136xf32>
    %19 = arith.mulf %16, %18 : vector<1x2136xf32>
    %cst = arith.constant 5.000000e-01 : f32
    %20 = vector.broadcast %cst : f32 to vector<1x2136xf32>
    %21 = arith.mulf %20, %15 : vector<1x2136xf32>
    %22 = arith.subf %6, %21 : vector<1x2136xf32>
    %cst_3 = arith.constant 5.000000e-01 : f32
    %23 = vector.broadcast %cst_3 : f32 to vector<1x2136xf32>
    %24 = arith.mulf %23, %19 : vector<1x2136xf32>
    %25 = arith.subf %11, %24 : vector<1x2136xf32>
    %cst_4 = arith.constant 5.000000e-01 : f32
    %26 = vector.broadcast %cst_4 : f32 to vector<1x2136xf32>
    %27 = arith.mulf %26, %15 : vector<1x2136xf32>
    %28 = arith.addf %6, %27 : vector<1x2136xf32>
    %cst_5 = arith.constant 5.000000e-01 : f32
    %29 = vector.broadcast %cst_5 : f32 to vector<1x2136xf32>
    %30 = arith.mulf %29, %19 : vector<1x2136xf32>
    %31 = arith.addf %11, %30 : vector<1x2136xf32>
    %32 = tpu.concatenate %22, %25, %28, %31 in 0 : vector<1x2136xf32>, vector<1x2136xf32>, vector<1x2136xf32>, vector<1x2136xf32> -> vector<4x2136xf32>
    %c0_6 = arith.constant 0 : index
    %c0_7 = arith.constant 0 : index
    %33 = vector.load %arg2[%c0_6, %c0_7] : memref<8x2136xf32, #tpu.memory_space<vmem>>, vector<4x2136xf32>
    tpu.vector_store %arg2[%c0_6, %c0_7], %32 {strides = array<i32>} : memref<8x2136xf32, #tpu.memory_space<vmem>>, vector<4x2136xf32>,
    %c4 = arith.constant 4 : index
    %c0_8 = arith.constant 0 : index
    %34 = vector.load %arg1[%c4, %c0_8] : memref<8x2136xf32, #tpu.memory_space<vmem>>, vector<4x2136xf32>
    %35 = vector.extract_strided_slice %0 {offsets = [0, 0], sizes = [1, 2136], strides = [1, 1]} : vector<4x2136xf32> to vector<1x2136xf32>
    %36 = vector.extract_strided_slice %0 {offsets = [2, 0], sizes = [1, 2136], strides = [1, 1]} : vector<4x2136xf32> to vector<1x2136xf32>
    %37 = vector.extract_strided_slice %34 {offsets = [0, 0], sizes = [1, 2136], strides = [1, 1]} : vector<4x2136xf32> to vector<1x2136xf32>
    %38 = arith.mulf %36, %37 : vector<1x2136xf32>
    %39 = arith.addf %35, %38 : vector<1x2136xf32>
    %40 = vector.extract_strided_slice %0 {offsets = [1, 0], sizes = [1, 2136], strides = [1, 1]} : vector<4x2136xf32> to vector<1x2136xf32>
    %41 = vector.extract_strided_slice %0 {offsets = [3, 0], sizes = [1, 2136], strides = [1, 1]} : vector<4x2136xf32> to vector<1x2136xf32>
    %42 = vector.extract_strided_slice %34 {offsets = [1, 0], sizes = [1, 2136], strides = [1, 1]} : vector<4x2136xf32> to vector<1x2136xf32>
    %43 = arith.mulf %41, %42 : vector<1x2136xf32>
    %44 = arith.addf %40, %43 : vector<1x2136xf32>
    %45 = vector.extract_strided_slice %0 {offsets = [2, 0], sizes = [1, 2136], strides = [1, 1]} : vector<4x2136xf32> to vector<1x2136xf32>
    %46 = vector.extract_strided_slice %34 {offsets = [2, 0], sizes = [1, 2136], strides = [1, 1]} : vector<4x2136xf32> to vector<1x2136xf32>
    %47 = math.exp %46 : vector<1x2136xf32>
    %48 = arith.mulf %45, %47 : vector<1x2136xf32>
    %49 = vector.extract_strided_slice %0 {offsets = [3, 0], sizes = [1, 2136], strides = [1, 1]} : vector<4x2136xf32> to vector<1x2136xf32>
    %50 = vector.extract_strided_slice %34 {offsets = [3, 0], sizes = [1, 2136], strides = [1, 1]} : vector<4x2136xf32> to vector<1x2136xf32>
    %51 = math.exp %50 : vector<1x2136xf32>
    %52 = arith.mulf %49, %51 : vector<1x2136xf32>
    %cst_9 = arith.constant 5.000000e-01 : f32
    %53 = vector.broadcast %cst_9 : f32 to vector<1x2136xf32>
    %54 = arith.mulf %53, %48 : vector<1x2136xf32>
    %55 = arith.subf %39, %54 : vector<1x2136xf32>
    %cst_10 = arith.constant 5.000000e-01 : f32
    %56 = vector.broadcast %cst_10 : f32 to vector<1x2136xf32>
    %57 = arith.mulf %56, %52 : vector<1x2136xf32>
    %58 = arith.subf %44, %57 : vector<1x2136xf32>
    %cst_11 = arith.constant 5.000000e-01 : f32
    %59 = vector.broadcast %cst_11 : f32 to vector<1x2136xf32>
    %60 = arith.mulf %59, %48 : vector<1x2136xf32>
    %61 = arith.addf %39, %60 : vector<1x2136xf32>
    %cst_12 = arith.constant 5.000000e-01 : f32
    %62 = vector.broadcast %cst_12 : f32 to vector<1x2136xf32>
    %63 = arith.mulf %62, %52 : vector<1x2136xf32>
    %64 = arith.addf %44, %63 : vector<1x2136xf32>
    %65 = tpu.concatenate %55, %58, %61, %64 in 0 : vector<1x2136xf32>, vector<1x2136xf32>, vector<1x2136xf32>, vector<1x2136xf32> -> vector<4x2136xf32>
    %c4_13 = arith.constant 4 : index
    %c0_14 = arith.constant 0 : index
    %66 = vector.load %arg2[%c4_13, %c0_14] : memref<8x2136xf32, #tpu.memory_space<vmem>>, vector<4x2136xf32>
    tpu.vector_store %arg2[%c4_13, %c0_14], %65 {strides = array<i32>} : memref<8x2136xf32, #tpu.memory_space<vmem>>, vector<4x2136xf32>,
    return
  }
}

</mosaic_0001>

<llo_original>
// kernel: ssd_forward.8
$region0: #{ssd_forward.8}
  #allocation0 [shape = 'u32[]', space=smem, size = 0x4, offset = 0x4, fixed_abs, tag = 'smem constant byte address 0x4 - core index']
  #allocation1 [shape = 'u32[144,128]{1,0:T(1,128)}', space=vmem, size = 0x12000, scoped, tag = 'internal scratch']
  %s0 = inlined_call_operand.vmem [shape: f32[512,36], index: 0, kind: input, shape index: {}]
  %s1 = inlined_call_operand.vmem [shape: f32[36,8], index: 1, kind: input, shape index: {}]
  %s2 = inlined_call_operand.vmem [shape: f32[1,8], index: 2, kind: input, shape index: {}]
  %s3 = inlined_call_operand.vmem [shape: f32[512,8], index: 3, kind: output, shape index: {}]
  %s4 = sld [smem:[#allocation0]]
  $region22: #{ssd_forward.8} parent=0
    _
  %s6 = ssub.s32 1, %s4
  %s7 = scalar_select 0, %s6, %s4
  // Predicated region
  $region2: #{ssd_forward.8} parent=0 // pred_check
    _
  $region3: #{ssd_forward.8} parent=0 // pred_check_branch
    %9 = sbr.rel (0) target = $region5
  $region4: #{ssd_forward.8} parent=0 // pred_region
    _
  $region5: #{ssd_forward.8} parent=0 // pred_fallthru
    _
  // Predicated region
  $region6: #{ssd_forward.8} parent=0 // pred_check
    _
  $region7: #{ssd_forward.8} parent=0 // pred_check_branch
    %11 = sbr.rel (0) target = $region9
  $region8: #{ssd_forward.8} parent=0 // pred_region
    _
  $region9: #{ssd_forward.8} parent=0 // pred_fallthru
    _
  // Predicated region
  $region10: #{ssd_forward.8} parent=0 // pred_check
    _
  $region11: #{ssd_forward.8} parent=0 // pred_check_branch
    %13 = sbr.rel (0) target = $region13
  $region12: #{ssd_forward.8} parent=0 // pred_region
    _
  $region13: #{ssd_forward.8} parent=0 // pred_fallthru
    _
  %v14 = vld [vmem:[%s0] sm:$0xff]
  %v15 = vld [vmem:[%s0 + $0x8] sm:$0xff]
  %v16 = vld [vmem:[%s0 + $0x10] sm:$0xff]
  %v17 = vld [vmem:[%s0 + $0x18] sm:$0xff]
  %v18 = vld [vmem:[%s0 + $0x20] sm:$0xff]
  %v19 = vld [vmem:[%s0 + $0x28] sm:$0xff]
  %v20 = vld [vmem:[%s0 + $0x30] sm:$0xff]
  %v21 = vld [vmem:[%s0 + $0x38] sm:$0xff]
  %v22 = vld [vmem:[%s0 + $0x40] sm:$0xff]
  %v23 = vld [vmem:[%s0 + $0x48] sm:$0xff]
  %v24 = vld [vmem:[%s0 + $0x50] sm:$0xff]
  %v25 = vld [vmem:[%s0 + $0x58] sm:$0xff]
  %v26 = vld [vmem:[%s0 + $0x60] sm:$0xff]
  %v27 = vld [vmem:[%s0 + $0x68] sm:$0xff]
  %v28 = vld [vmem:[%s0 + $0x70] sm:$0xff]
  %v29 = vld [vmem:[%s0 + $0x78] sm:$0xff]
  %v30 = vld [vmem:[%s0 + $0x80] sm:$0xff]
  %v31 = vld [vmem:[%s0 + $0x88] sm:$0xff]
  %v32 = vld [vmem:[%s0 + $0x90] sm:$0xff]
  %v33 = vld [vmem:[%s0 + $0x98] sm:$0xff]
  %v34 = vld [vmem:[%s0 + $0xa0] sm:$0xff]
  %v35 = vld [vmem:[%s0 + $0xa8] sm:$0xff]
  %v36 = vld [vmem:[%s0 + $0xb0] sm:$0xff]
  %v37 = vld [vmem:[%s0 + $0xb8] sm:$0xff]
  %v38 = vld [vmem:[%s0 + $0xc0] sm:$0xff]
  %v39 = vld [vmem:[%s0 + $0xc8] sm:$0xff]
  %v40 = vld [vmem:[%s0 + $0xd0] sm:$0xff]
  %v41 = vld [vmem:[%s0 + $0xd8] sm:$0xff]
  %v42 = vld [vmem:[%s0 + $0xe0] sm:$0xff]
  %v43 = vld [vmem:[%s0 + $0xe8] sm:$0xff]
  %v44 = vld [vmem:[%s0 + $0xf0] sm:$0xff]
  %v45 = vld [vmem:[%s0 + $0xf8] sm:$0xff]
  %v46 = vld [vmem:[%s0 + $0x100] sm:$0xff]
  %v47 = vld [vmem:[%s0 + $0x108] sm:$0xff]
  %v48 = vld [vmem:[%s0 + $0x110] sm:$0xff]
  %v49 = vld [vmem:[%s0 + $0x118] sm:$0xff]
  %v50 = vld [vmem:[%s0 + $0x120] sm:$0xff]
  %v51 = vld [vmem:[%s0 + $0x128] sm:$0xff]
  %v52 = vld [vmem:[%s0 + $0x130] sm:$0xff]
  %v53 = vld [vmem:[%s0 + $0x138] sm:$0xff]
  %v54 = vld [vmem:[%s0 + $0x140] sm:$0xff]
  %v55 = vld [vmem:[%s0 + $0x148] sm:$0xff]
  %v56 = vld [vmem:[%s0 + $0x150] sm:$0xff]
  %v57 = vld [vmem:[%s0 + $0x158] sm:$0xff]
  %v58 = vld [vmem:[%s0 + $0x160] sm:$0xff]
  %v59 = vld [vmem:[%s0 + $0x168] sm:$0xff]
  %v60 = vld [vmem:[%s0 + $0x170] sm:$0xff]
  %v61 = vld [vmem:[%s0 + $0x178] sm:$0xff]
  %v62 = vld [vmem:[%s0 + $0x180] sm:$0xff]
  %v63 = vld [vmem:[%s0 + $0x188] sm:$0xff]
  %v64 = vld [vmem:[%s0 + $0x190] sm:$0xff]
  %v65 = vld [vmem:[%s0 + $0x198] sm:$0xff]
  %v66 = vld [vmem:[%s0 + $0x1a0] sm:$0xff]
  %v67 = vld [vmem:[%s0 + $0x1a8] sm:$0xff]
  %v68 = vld [vmem:[%s0 + $0x1b0] sm:$0xff]
  %v69 = vld [vmem:[%s0 + $0x1b8] sm:$0xff]
  %v70 = vld [vmem:[%s0 + $0x1c0] sm:$0xff]
  %v71 = vld [vmem:[%s0 + $0x1c8] sm:$0xff]
  %v72 = vld [vmem:[%s0 + $0x1d0] sm:$0xff]
  %v73 = vld [vmem:[%s0 + $0x1d8] sm:$0xff]
  %v74 = vld [vmem:[%s0 + $0x1e0] sm:$0xff]
  %v75 = vld [vmem:[%s0 + $0x1e8] sm:$0xff]
  %v76 = vld [vmem:[%s0 + $0x1f0] sm:$0xff]
  %v77 = vld [vmem:[%s0 + $0x1f8] sm:$0xff]
  %v78 = vld [vmem:[%s1] sm:$0xff]
  %v79 = vld [vmem:[%s1 + $0x8] sm:$0xff]
  %v80 = vld [vmem:[%s1 + $0x10] sm:$0xff]
  %v81 = vld [vmem:[%s1 + $0x18] sm:$0xff]
  %v82 = vld [vmem:[%s1 + $0x20] sm:$0xf]
  %v83 = vld [vmem:[%s2] sm:$0x1]
  %v85 = vlaneseq
  %v86 = vshrl.u32 %v85, 7
  %v87 = vsub.s32 0, %v86
  %v88 = vrot.slane %v83, %v87
  %vm90 = vcmask 293888
  %v92 = vsel %vm90, %v14, 0
  %v95 = vsel %vm90, %v15, 0
  %v98 = vsel %vm90, %v16, 0
  %v101 = vsel %vm90, %v17, 0
  %v104 = vsel %vm90, %v18, 0
  %v107 = vsel %vm90, %v19, 0
  %v110 = vsel %vm90, %v20, 0
  %v113 = vsel %vm90, %v21, 0
  %v116 = vsel %vm90, %v22, 0
  %v119 = vsel %vm90, %v23, 0
  %v122 = vsel %vm90, %v24, 0
  %v125 = vsel %vm90, %v25, 0
  %v128 = vsel %vm90, %v26, 0
  %v131 = vsel %vm90, %v27, 0
  %v134 = vsel %vm90, %v28, 0
  %v137 = vsel %vm90, %v29, 0
  %v140 = vsel %vm90, %v30, 0
  %v143 = vsel %vm90, %v31, 0
  %v146 = vsel %vm90, %v32, 0
  %v149 = vsel %vm90, %v33, 0
  %v152 = vsel %vm90, %v34, 0
  %v155 = vsel %vm90, %v35, 0
  %v158 = vsel %vm90, %v36, 0
  %v161 = vsel %vm90, %v37, 0
  %v164 = vsel %vm90, %v38, 0
  %v167 = vsel %vm90, %v39, 0
  %v170 = vsel %vm90, %v40, 0
  %v173 = vsel %vm90, %v41, 0
  %v176 = vsel %vm90, %v42, 0
  %v179 = vsel %vm90, %v43, 0
  %v182 = vsel %vm90, %v44, 0
  %v185 = vsel %vm90, %v45, 0
  %v188 = vsel %vm90, %v46, 0
  %v191 = vsel %vm90, %v47, 0
  %v194 = vsel %vm90, %v48, 0
  %v197 = vsel %vm90, %v49, 0
  %v200 = vsel %vm90, %v50, 0
  %v203 = vsel %vm90, %v51, 0
  %v206 = vsel %vm90, %v52, 0
  %v209 = vsel %vm90, %v53, 0
  %v212 = vsel %vm90, %v54, 0
  %v215 = vsel %vm90, %v55, 0
  %v218 = vsel %vm90, %v56, 0
  %v221 = vsel %vm90, %v57, 0
  %v224 = vsel %vm90, %v58, 0
  %v227 = vsel %vm90, %v59, 0
  %v230 = vsel %vm90, %v60, 0
  %v233 = vsel %vm90, %v61, 0
  %v236 = vsel %vm90, %v62, 0
  %v239 = vsel %vm90, %v63, 0
  %v242 = vsel %vm90, %v64, 0
  %v245 = vsel %vm90, %v65, 0
  %v248 = vsel %vm90, %v66, 0
  %v251 = vsel %vm90, %v67, 0
  %v254 = vsel %vm90, %v68, 0
  %v257 = vsel %vm90, %v69, 0
  %v260 = vsel %vm90, %v70, 0
  %v263 = vsel %vm90, %v71, 0
  %v266 = vsel %vm90, %v72, 0
  %v269 = vsel %vm90, %v73, 0
  %v272 = vsel %vm90, %v74, 0
  %v275 = vsel %vm90, %v75, 0
  %v278 = vsel %vm90, %v76, 0
  %v281 = vsel %vm90, %v77, 0
  %vm283 = vcmask 1043456
  %v285 = vsel %vm283, %v82, 0
  %287 = vmatprep.subr.mxu0 0.0
  %288 = vmatpush1.msra.mxu0 %v78
  %289 = vmatprep.subr.mxu0 0.0
  %290 = vmatpush1.msra.mxu0 %v79
  %291 = vmatprep.subr.mxu0 0.0
  %292 = vmatpush1.msra.mxu0 %v80
  %293 = vmatprep.subr.mxu0 0.0
  %294 = vmatpush1.msra.mxu0 %v81
  %295 = vmatprep.subr.mxu0 0.0
  %296 = vmatpush1.msra.mxu0 %v285
  %297 = vmatprep.subr.mxu0 0.0
  %298 = vmatpush1.msra.mxu0 0.0
  %299 = vmatprep.subr.mxu0 0.0
  %300 = vmatpush1.msra.mxu0 0.0
  %301 = vmatprep.subr.mxu0 0.0
  %302 = vmatpush1.msra.mxu0 0.0
  %303 = vmatprep.subr.mxu0 0.0
  %304 = vmatpush1.msra.mxu0 0.0
  %305 = vmatprep.subr.mxu0 0.0
  %306 = vmatpush1.msra.mxu0 0.0
  %307 = vmatprep.subr.mxu0 0.0
  %308 = vmatpush1.msra.mxu0 0.0
  %309 = vmatprep.subr.mxu0 0.0
  %310 = vmatpush1.msra.mxu0 0.0
  %311 = vmatprep.subr.mxu0 0.0
  %312 = vmatpush1.msra.mxu0 0.0
  %313 = vmatprep.subr.mxu0 0.0
  %314 = vmatpush1.msra.mxu0 0.0
  %315 = vmatprep.subr.mxu0 0.0
  %316 = vmatpush1.msra.mxu0 0.0
  %317 = vmatprep.subr.mxu0 0.0
  %318 = vmatpush1.msra.mxu0 0.0
  %319 = vmatprep.subr.mxu0 0.0
  %320 = vmatpush1.msra.mxu0 0.0
  %321 = vmatprep.subr.mxu0 0.0
  %322 = vmatpush1.msra.mxu0 0.0
  %323 = vmatprep.subr.mxu0 0.0
  %324 = vmatpush1.msra.mxu0 0.0
  %325 = vmatprep.subr.mxu0 0.0
  %326 = vmatpush1.msra.mxu0 0.0
  %327 = vmatprep.subr.mxu0 0.0
  %328 = vmatpush1.msra.mxu0 0.0
  %329 = vmatprep.subr.mxu0 0.0
  %330 = vmatpush1.msra.mxu0 0.0
  %331 = vmatprep.subr.mxu0 0.0
  %332 = vmatpush1.msra.mxu0 0.0
  %333 = vmatprep.subr.mxu0 0.0
  %334 = vmatpush1.msra.mxu0 0.0
  %335 = vmatprep.subr.mxu0 0.0
  %336 = vmatpush1.msra.mxu0 0.0
  %337 = vmatprep.subr.mxu0 0.0
  %338 = vmatpush1.msra.mxu0 0.0
  %339 = vmatprep.subr.mxu0 0.0
  %340 = vmatpush1.msra.mxu0 0.0
  %341 = vmatprep.subr.mxu0 0.0
  %342 = vmatpush1.msra.mxu0 0.0
  %343 = vmatprep.subr.mxu0 0.0
  %344 = vmatpush1.msra.mxu0 0.0
  %345 = vmatprep.subr.mxu0 0.0
  %346 = vmatpush1.msra.mxu0 0.0
  %347 = vmatprep.subr.mxu0 0.0
  %348 = vmatpush1.msra.mxu0 0.0
  %349 = vmatprep.subr.mxu0 0.0
  %350 = vmatpush1.msra.mxu0 0.0
  %351 = vmatprep.mubr.f32.mxu0 0.0
  %352 = vmatmul.mubr.f32.gmra.mrb[0].mxu0 %v92
  %v353 = vpop.f32.mrb[0].mxu0
  %v354 = vadd.f32 %v88, %v353
  %v355 = vpop.f32.mrb[0].mxu0
  %356 = vmatprep.mubr.f32.mxu0 0.0
  %357 = vmatmul.mubr.f32.gmra.mrb[0].mxu0 %v95
  %v358 = vpop.f32.mrb[0].mxu0
  %v359 = vadd.f32 %v88, %v358
  %v360 = vpop.f32.mrb[0].mxu0
  %361 = vmatprep.mubr.f32.mxu0 0.0
  %362 = vmatmul.mubr.f32.gmra.mrb[0].mxu0 %v98
  %v363 = vpop.f32.mrb[0].mxu0
  %v364 = vadd.f32 %v88, %v363
  %v365 = vpop.f32.mrb[0].mxu0
  %366 = vmatprep.mubr.f32.mxu0 0.0
  %367 = vmatmul.mubr.f32.gmra.mrb[0].mxu0 %v101
  %v368 = vpop.f32.mrb[0].mxu0
  %v369 = vadd.f32 %v88, %v368
  %v370 = vpop.f32.mrb[0].mxu0
  %371 = vmatprep.mubr.f32.mxu0 0.0
  %372 = vmatmul.mubr.f32.gmra.mrb[0].mxu0 %v104
  %v373 = vpop.f32.mrb[0].mxu0
  %v374 = vadd.f32 %v88, %v373
  %v375 = vpop.f32.mrb[0].mxu0
  %376 = vmatprep.mubr.f32.mxu0 0.0
  %377 = vmatmul.mubr.f32.gmra.mrb[0].mxu0 %v107
  %v378 = vpop.f32.mrb[0].mxu0
  %v379 = vadd.f32 %v88, %v378
  %v380 = vpop.f32.mrb[0].mxu0
  %381 = vmatprep.mubr.f32.mxu0 0.0
  %382 = vmatmul.mubr.f32.gmra.mrb[0].mxu0 %v110
  %v383 = vpop.f32.mrb[0].mxu0
  %v384 = vadd.f32 %v88, %v383
  %v385 = vpop.f32.mrb[0].mxu0
  %386 = vmatprep.mubr.f32.mxu0 0.0
  %387 = vmatmul.mubr.f32.gmra.mrb[0].mxu0 %v113
  %v388 = vpop.f32.mrb[0].mxu0
  %v389 = vadd.f32 %v88, %v388
  %v390 = vpop.f32.mrb[0].mxu0
  %391 = vmatprep.mubr.f32.mxu0 0.0
  %392 = vmatmul.mubr.f32.gmra.mrb[0].mxu0 %v116
  %v393 = vpop.f32.mrb[0].mxu0
  %v394 = vadd.f32 %v88, %v393
  %v395 = vpop.f32.mrb[0].mxu0
  %396 = vmatprep.mubr.f32.mxu0 0.0
  %397 = vmatmul.mubr.f32.gmra.mrb[0].mxu0 %v119
  %v398 = vpop.f32.mrb[0].mxu0
  %v399 = vadd.f32 %v88, %v398
  %v400 = vpop.f32.mrb[0].mxu0
  %401 = vmatprep.mubr.f32.mxu0 0.0
  %402 = vmatmul.mubr.f32.gmra.mrb[0].mxu0 %v122
  %v403 = vpop.f32.mrb[0].mxu0
  %v404 = vadd.f32 %v88, %v403
  %v405 = vpop.f32.mrb[0].mxu0
  %406 = vmatprep.mubr.f32.mxu0 0.0
  %407 = vmatmul.mubr.f32.gmra.mrb[0].mxu0 %v125
  %v408 = vpop.f32.mrb[0].mxu0
  %v409 = vadd.f32 %v88, %v408
  %v410 = vpop.f32.mrb[0].mxu0
  %411 = vmatprep.mubr.f32.mxu0 0.0
  %412 = vmatmul.mubr.f32.gmra.mrb[0].mxu0 %v128
  %v413 = vpop.f32.mrb[0].mxu0
  %v414 = vadd.f32 %v88, %v413
  %v415 = vpop.f32.mrb[0].mxu0
  %416 = vmatprep.mubr.f32.mxu0 0.0
  %417 = vmatmul.mubr.f32.gmra.mrb[0].mxu0 %v131
  %v418 = vpop.f32.mrb[0].mxu0
  %v419 = vadd.f32 %v88, %v418
  %v420 = vpop.f32.mrb[0].mxu0
  %421 = vmatprep.mubr.f32.mxu0 0.0
  %422 = vmatmul.mubr.f32.gmra.mrb[0].mxu0 %v134
  %v423 = vpop.f32.mrb[0].mxu0
  %v424 = vadd.f32 %v88, %v423
  %v425 = vpop.f32.mrb[0].mxu0
  %426 = vmatprep.mubr.f32.mxu0 0.0
  %427 = vmatmul.mubr.f32.gmra.mrb[0].mxu0 %v137
  %v428 = vpop.f32.mrb[0].mxu0
  %v429 = vadd.f32 %v88, %v428
  %v430 = vpop.f32.mrb[0].mxu0
  %431 = vmatprep.mubr.f32.mxu0 0.0
  %432 = vmatmul.mubr.f32.gmra.mrb[0].mxu0 %v140
  %v433 = vpop.f32.mrb[0].mxu0
  %v434 = vadd.f32 %v88, %v433
  %v435 = vpop.f32.mrb[0].mxu0
  %436 = vmatprep.mubr.f32.mxu0 0.0
  %437 = vmatmul.mubr.f32.gmra.mrb[0].mxu0 %v143
  %v438 = vpop.f32.mrb[0].mxu0
  %v439 = vadd.f32 %v88, %v438
  %v440 = vpop.f32.mrb[0].mxu0
  %441 = vmatprep.mubr.f32.mxu0 0.0
  %442 = vmatmul.mubr.f32.gmra.mrb[0].mxu0 %v146
  %v443 = vpop.f32.mrb[0].mxu0
  %v444 = vadd.f32 %v88, %v443
  %v445 = vpop.f32.mrb[0].mxu0
  %446 = vmatprep.mubr.f32.mxu0 0.0
  %447 = vmatmul.mubr.f32.gmra.mrb[0].mxu0 %v149
  %v448 = vpop.f32.mrb[0].mxu0
  %v449 = vadd.f32 %v88, %v448
  %v450 = vpop.f32.mrb[0].mxu0
  %451 = vmatprep.mubr.f32.mxu0 0.0
  %452 = vmatmul.mubr.f32.gmra.mrb[0].mxu0 %v152
  %v453 = vpop.f32.mrb[0].mxu0
  %v454 = vadd.f32 %v88, %v453
  %v455 = vpop.f32.mrb[0].mxu0
  %456 = vmatprep.mubr.f32.mxu0 0.0
  %457 = vmatmul.mubr.f32.gmra.mrb[0].mxu0 %v155
  %v458 = vpop.f32.mrb[0].mxu0
  %v459 = vadd.f32 %v88, %v458
  %v460 = vpop.f32.mrb[0].mxu0
  %461 = vmatprep.mubr.f32.mxu0 0.0
  %462 = vmatmul.mubr.f32.gmra.mrb[0].mxu0 %v158
  %v463 = vpop.f32.mrb[0].mxu0
  %v464 = vadd.f32 %v88, %v463
  %v465 = vpop.f32.mrb[0].mxu0
  %466 = vmatprep.mubr.f32.mxu0 0.0
  %467 = vmatmul.mubr.f32.gmra.mrb[0].mxu0 %v161
  %v468 = vpop.f32.mrb[0].mxu0
  %v469 = vadd.f32 %v88, %v468
  %v470 = vpop.f32.mrb[0].mxu0
  %471 = vmatprep.mubr.f32.mxu0 0.0
  %472 = vmatmul.mubr.f32.gmra.mrb[0].mxu0 %v164
  %v473 = vpop.f32.mrb[0].mxu0
  %v474 = vadd.f32 %v88, %v473
  %v475 = vpop.f32.mrb[0].mxu0
  %476 = vmatprep.mubr.f32.mxu0 0.0
  %477 = vmatmul.mubr.f32.gmra.mrb[0].mxu0 %v167
  %v478 = vpop.f32.mrb[0].mxu0
  %v479 = vadd.f32 %v88, %v478
  %v480 = vpop.f32.mrb[0].mxu0
  %481 = vmatprep.mubr.f32.mxu0 0.0
  %482 = vmatmul.mubr.f32.gmra.mrb[0].mxu0 %v170
  %v483 = vpop.f32.mrb[0].mxu0
  %v484 = vadd.f32 %v88, %v483
  %v485 = vpop.f32.mrb[0].mxu0
  %486 = vmatprep.mubr.f32.mxu0 0.0
  %487 = vmatmul.mubr.f32.gmra.mrb[0].mxu0 %v173
  %v488 = vpop.f32.mrb[0].mxu0
  %v489 = vadd.f32 %v88, %v488
  %v490 = vpop.f32.mrb[0].mxu0
  %491 = vmatprep.mubr.f32.mxu0 0.0
  %492 = vmatmul.mubr.f32.gmra.mrb[0].mxu0 %v176
  %v493 = vpop.f32.mrb[0].mxu0
  %v494 = vadd.f32 %v88, %v493
  %v495 = vpop.f32.mrb[0].mxu0
  %496 = vmatprep.mubr.f32.mxu0 0.0
  %497 = vmatmul.mubr.f32.gmra.mrb[0].mxu0 %v179
  %v498 = vpop.f32.mrb[0].mxu0
  %v499 = vadd.f32 %v88, %v498
  %v500 = vpop.f32.mrb[0].mxu0
  %501 = vmatprep.mubr.f32.mxu0 0.0
  %502 = vmatmul.mubr.f32.gmra.mrb[0].mxu0 %v182
  %v503 = vpop.f32.mrb[0].mxu0
  %v504 = vadd.f32 %v88, %v503
  %v505 = vpop.f32.mrb[0].mxu0
  %506 = vmatprep.mubr.f32.mxu0 0.0
  %507 = vmatmul.mubr.f32.gmra.mrb[0].mxu0 %v185
  %v508 = vpop.f32.mrb[0].mxu0
  %v509 = vadd.f32 %v88, %v508
  %v510 = vpop.f32.mrb[0].mxu0
  %511 = vmatprep.mubr.f32.mxu0 0.0
  %512 = vmatmul.mubr.f32.gmra.mrb[0].mxu0 %v188
  %v513 = vpop.f32.mrb[0].mxu0
  %v514 = vadd.f32 %v88, %v513
  %v515 = vpop.f32.mrb[0].mxu0
  %516 = vmatprep.mubr.f32.mxu0 0.0
  %517 = vmatmul.mubr.f32.gmra.mrb[0].mxu0 %v191
  %v518 = vpop.f32.mrb[0].mxu0
  %v519 = vadd.f32 %v88, %v518
  %v520 = vpop.f32.mrb[0].mxu0
  %521 = vmatprep.mubr.f32.mxu0 0.0
  %522 = vmatmul.mubr.f32.gmra.mrb[0].mxu0 %v194
  %v523 = vpop.f32.mrb[0].mxu0
  %v524 = vadd.f32 %v88, %v523
  %v525 = vpop.f32.mrb[0].mxu0
  %526 = vmatprep.mubr.f32.mxu0 0.0
  %527 = vmatmul.mubr.f32.gmra.mrb[0].mxu0 %v197
  %v528 = vpop.f32.mrb[0].mxu0
  %v529 = vadd.f32 %v88, %v528
  %v530 = vpop.f32.mrb[0].mxu0
  %531 = vmatprep.mubr.f32.mxu0 0.0
  %532 = vmatmul.mubr.f32.gmra.mrb[0].mxu0 %v200
  %v533 = vpop.f32.mrb[0].mxu0
  %v534 = vadd.f32 %v88, %v533
  %v535 = vpop.f32.mrb[0].mxu0
  %536 = vmatprep.mubr.f32.mxu0 0.0
  %537 = vmatmul.mubr.f32.gmra.mrb[0].mxu0 %v203
  %v538 = vpop.f32.mrb[0].mxu0
  %v539 = vadd.f32 %v88, %v538
  %v540 = vpop.f32.mrb[0].mxu0
  %541 = vmatprep.mubr.f32.mxu0 0.0
  %542 = vmatmul.mubr.f32.gmra.mrb[0].mxu0 %v206
  %v543 = vpop.f32.mrb[0].mxu0
  %v544 = vadd.f32 %v88, %v543
  %v545 = vpop.f32.mrb[0].mxu0
  %546 = vmatprep.mubr.f32.mxu0 0.0
  %547 = vmatmul.mubr.f32.gmra.mrb[0].mxu0 %v209
  %v548 = vpop.f32.mrb[0].mxu0
  %v549 = vadd.f32 %v88, %v548
  %v550 = vpop.f32.mrb[0].mxu0
  %551 = vmatprep.mubr.f32.mxu0 0.0
  %552 = vmatmul.mubr.f32.gmra.mrb[0].mxu0 %v212
  %v553 = vpop.f32.mrb[0].mxu0
  %v554 = vadd.f32 %v88, %v553
  %v555 = vpop.f32.mrb[0].mxu0
  %556 = vmatprep.mubr.f32.mxu0 0.0
  %557 = vmatmul.mubr.f32.gmra.mrb[0].mxu0 %v215
  %v558 = vpop.f32.mrb[0].mxu0
  %v559 = vadd.f32 %v88, %v558
  %v560 = vpop.f32.mrb[0].mxu0
  %561 = vmatprep.mubr.f32.mxu0 0.0
  %562 = vmatmul.mubr.f32.gmra.mrb[0].mxu0 %v218
  %v563 = vpop.f32.mrb[0].mxu0
  %v564 = vadd.f32 %v88, %v563
  %v565 = vpop.f32.mrb[0].mxu0
  %566 = vmatprep.mubr.f32.mxu0 0.0
  %567 = vmatmul.mubr.f32.gmra.mrb[0].mxu0 %v221
  %v568 = vpop.f32.mrb[0].mxu0
  %v569 = vadd.f32 %v88, %v568
  %v570 = vpop.f32.mrb[0].mxu0
  %571 = vmatprep.mubr.f32.mxu0 0.0
  %572 = vmatmul.mubr.f32.gmra.mrb[0].mxu0 %v224
  %v573 = vpop.f32.mrb[0].mxu0
  %v574 = vadd.f32 %v88, %v573
  %v575 = vpop.f32.mrb[0].mxu0
  %576 = vmatprep.mubr.f32.mxu0 0.0
  %577 = vmatmul.mubr.f32.gmra.mrb[0].mxu0 %v227
  %v578 = vpop.f32.mrb[0].mxu0
  %v579 = vadd.f32 %v88, %v578
  %v580 = vpop.f32.mrb[0].mxu0
  %581 = vmatprep.mubr.f32.mxu0 0.0
  %582 = vmatmul.mubr.f32.gmra.mrb[0].mxu0 %v230
  %v583 = vpop.f32.mrb[0].mxu0
  %v584 = vadd.f32 %v88, %v583
  %v585 = vpop.f32.mrb[0].mxu0
  %586 = vmatprep.mubr.f32.mxu0 0.0
  %587 = vmatmul.mubr.f32.gmra.mrb[0].mxu0 %v233
  %v588 = vpop.f32.mrb[0].mxu0
  %v589 = vadd.f32 %v88, %v588
  %v590 = vpop.f32.mrb[0].mxu0
  %591 = vmatprep.mubr.f32.mxu0 0.0
  %592 = vmatmul.mubr.f32.gmra.mrb[0].mxu0 %v236
  %v593 = vpop.f32.mrb[0].mxu0
  %v594 = vadd.f32 %v88, %v593
  %v595 = vpop.f32.mrb[0].mxu0
  %596 = vmatprep.mubr.f32.mxu0 0.0
  %597 = vmatmul.mubr.f32.gmra.mrb[0].mxu0 %v239
  %v598 = vpop.f32.mrb[0].mxu0
  %v599 = vadd.f32 %v88, %v598
  %v600 = vpop.f32.mrb[0].mxu0
  %601 = vmatprep.mubr.f32.mxu0 0.0
  %602 = vmatmul.mubr.f32.gmra.mrb[0].mxu0 %v242
  %v603 = vpop.f32.mrb[0].mxu0
  %v604 = vadd.f32 %v88, %v603
  %v605 = vpop.f32.mrb[0].mxu0
  %606 = vmatprep.mubr.f32.mxu0 0.0
  %607 = vmatmul.mubr.f32.gmra.mrb[0].mxu0 %v245
  %v608 = vpop.f32.mrb[0].mxu0
  %v609 = vadd.f32 %v88, %v608
  %v610 = vpop.f32.mrb[0].mxu0
  %611 = vmatprep.mubr.f32.mxu0 0.0
  %612 = vmatmul.mubr.f32.gmra.mrb[0].mxu0 %v248
  %v613 = vpop.f32.mrb[0].mxu0
  %v614 = vadd.f32 %v88, %v613
  %v615 = vpop.f32.mrb[0].mxu0
  %616 = vmatprep.mubr.f32.mxu0 0.0
  %617 = vmatmul.mubr.f32.gmra.mrb[0].mxu0 %v251
  %v618 = vpop.f32.mrb[0].mxu0
  %v619 = vadd.f32 %v88, %v618
  %v620 = vpop.f32.mrb[0].mxu0
  %621 = vmatprep.mubr.f32.mxu0 0.0
  %622 = vmatmul.mubr.f32.gmra.mrb[0].mxu0 %v254
  %v623 = vpop.f32.mrb[0].mxu0
  %v624 = vadd.f32 %v88, %v623
  %v625 = vpop.f32.mrb[0].mxu0
  %626 = vmatprep.mubr.f32.mxu0 0.0
  %627 = vmatmul.mubr.f32.gmra.mrb[0].mxu0 %v257
  %v628 = vpop.f32.mrb[0].mxu0
  %v629 = vadd.f32 %v88, %v628
  %v630 = vpop.f32.mrb[0].mxu0
  %631 = vmatprep.mubr.f32.mxu0 0.0
  %632 = vmatmul.mubr.f32.gmra.mrb[0].mxu0 %v260
  %v633 = vpop.f32.mrb[0].mxu0
  %v634 = vadd.f32 %v88, %v633
  %v635 = vpop.f32.mrb[0].mxu0
  %636 = vmatprep.mubr.f32.mxu0 0.0
  %637 = vmatmul.mubr.f32.gmra.mrb[0].mxu0 %v263
  %v638 = vpop.f32.mrb[0].mxu0
  %v639 = vadd.f32 %v88, %v638
  %v640 = vpop.f32.mrb[0].mxu0
  %641 = vmatprep.mubr.f32.mxu0 0.0
  %642 = vmatmul.mubr.f32.gmra.mrb[0].mxu0 %v266
  %v643 = vpop.f32.mrb[0].mxu0
  %v644 = vadd.f32 %v88, %v643
  %v645 = vpop.f32.mrb[0].mxu0
  %646 = vmatprep.mubr.f32.mxu0 0.0
  %647 = vmatmul.mubr.f32.gmra.mrb[0].mxu0 %v269
  %v648 = vpop.f32.mrb[0].mxu0
  %v649 = vadd.f32 %v88, %v648
  %v650 = vpop.f32.mrb[0].mxu0
  %651 = vmatprep.mubr.f32.mxu0 0.0
  %652 = vmatmul.mubr.f32.gmra.mrb[0].mxu0 %v272
  %v653 = vpop.f32.mrb[0].mxu0
  %v654 = vadd.f32 %v88, %v653
  %v655 = vpop.f32.mrb[0].mxu0
  %656 = vmatprep.mubr.f32.mxu0 0.0
  %657 = vmatmul.mubr.f32.gmra.mrb[0].mxu0 %v275
  %v658 = vpop.f32.mrb[0].mxu0
  %v659 = vadd.f32 %v88, %v658
  %v660 = vpop.f32.mrb[0].mxu0
  %661 = vmatprep.mubr.f32.mxu0 0.0
  %662 = vmatmul.mubr.f32.gmra.mrb[0].mxu0 %v278
  %v663 = vpop.f32.mrb[0].mxu0
  %v664 = vadd.f32 %v88, %v663
  %v665 = vpop.f32.mrb[0].mxu0
  %666 = vmatprep.mubr.f32.mxu0 0.0
  %667 = vmatmul.mubr.f32.gmra.mrb[0].mxu0 %v281
  %v668 = vpop.f32.mrb[0].mxu0
  %v669 = vadd.f32 %v88, %v668
  %v670 = vpop.f32.mrb[0].mxu0
  %671 = vdwg.mxu0
  %v672 = vmax.f32 %v354, 0.0
  %v673 = vmax.f32 %v359, 0.0
  %v674 = vmax.f32 %v364, 0.0
  %v675 = vmax.f32 %v369, 0.0
  %v676 = vmax.f32 %v374, 0.0
  %v677 = vmax.f32 %v379, 0.0
  %v678 = vmax.f32 %v384, 0.0
  %v679 = vmax.f32 %v389, 0.0
  %v680 = vmax.f32 %v394, 0.0
  %v681 = vmax.f32 %v399, 0.0
  %v682 = vmax.f32 %v404, 0.0
  %v683 = vmax.f32 %v409, 0.0
  %v684 = vmax.f32 %v414, 0.0
  %v685 = vmax.f32 %v419, 0.0
  %v686 = vmax.f32 %v424, 0.0
  %v687 = vmax.f32 %v429, 0.0
  %v688 = vmax.f32 %v434, 0.0
  %v689 = vmax.f32 %v439, 0.0
  %v690 = vmax.f32 %v444, 0.0
  %v691 = vmax.f32 %v449, 0.0
  %v692 = vmax.f32 %v454, 0.0
  %v693 = vmax.f32 %v459, 0.0
  %v694 = vmax.f32 %v464, 0.0
  %v695 = vmax.f32 %v469, 0.0
  %v696 = vmax.f32 %v474, 0.0
  %v697 = vmax.f32 %v479, 0.0
  %v698 = vmax.f32 %v484, 0.0
  %v699 = vmax.f32 %v489, 0.0
  %v700 = vmax.f32 %v494, 0.0
  %v701 = vmax.f32 %v499, 0.0
  %v702 = vmax.f32 %v504, 0.0
  %v703 = vmax.f32 %v509, 0.0
  %v704 = vmax.f32 %v514, 0.0
  %v705 = vmax.f32 %v519, 0.0
  %v706 = vmax.f32 %v524, 0.0
  %v707 = vmax.f32 %v529, 0.0
  %v708 = vmax.f32 %v534, 0.0
  %v709 = vmax.f32 %v539, 0.0
  %v710 = vmax.f32 %v544, 0.0
  %v711 = vmax.f32 %v549, 0.0
  %v712 = vmax.f32 %v554, 0.0
  %v713 = vmax.f32 %v559, 0.0
  %v714 = vmax.f32 %v564, 0.0
  %v715 = vmax.f32 %v569, 0.0
  %v716 = vmax.f32 %v574, 0.0
  %v717 = vmax.f32 %v579, 0.0
  %v718 = vmax.f32 %v584, 0.0
  %v719 = vmax.f32 %v589, 0.0
  %v720 = vmax.f32 %v594, 0.0
  %v721 = vmax.f32 %v599, 0.0
  %v722 = vmax.f32 %v604, 0.0
  %v723 = vmax.f32 %v609, 0.0
  %v724 = vmax.f32 %v614, 0.0
  %v725 = vmax.f32 %v619, 0.0
  %v726 = vmax.f32 %v624, 0.0
  %v727 = vmax.f32 %v629, 0.0
  %v728 = vmax.f32 %v634, 0.0
  %v729 = vmax.f32 %v639, 0.0
  %v730 = vmax.f32 %v644, 0.0
  %v731 = vmax.f32 %v649, 0.0
  %v732 = vmax.f32 %v654, 0.0
  %v733 = vmax.f32 %v659, 0.0
  %v734 = vmax.f32 %v664, 0.0
  %v735 = vmax.f32 %v669, 0.0
  %vm736 = vcmask 64512
  %737 = vst.msk [vmem:[%s3] sm:$0xff] %vm736, %v672
  %738 = vst.msk [vmem:[%s3 + $0x8] sm:$0xff] %vm736, %v673
  %739 = vst.msk [vmem:[%s3 + $0x10] sm:$0xff] %vm736, %v674
  %740 = vst.msk [vmem:[%s3 + $0x18] sm:$0xff] %vm736, %v675
  %741 = vst.msk [vmem:[%s3 + $0x20] sm:$0xff] %vm736, %v676
  %742 = vst.msk [vmem:[%s3 + $0x28] sm:$0xff] %vm736, %v677
  %743 = vst.msk [vmem:[%s3 + $0x30] sm:$0xff] %vm736, %v678
  %744 = vst.msk [vmem:[%s3 + $0x38] sm:$0xff] %vm736, %v679
  %745 = vst.msk [vmem:[%s3 + $0x40] sm:$0xff] %vm736, %v680
  %746 = vst.msk [vmem:[%s3 + $0x48] sm:$0xff] %vm736, %v681
  %747 = vst.msk [vmem:[%s3 + $0x50] sm:$0xff] %vm736, %v682
  %748 = vst.msk [vmem:[%s3 + $0x58] sm:$0xff] %vm736, %v683
  %749 = vst.msk [vmem:[%s3 + $0x60] sm:$0xff] %vm736, %v684
  %750 = vst.msk [vmem:[%s3 + $0x68] sm:$0xff] %vm736, %v685
  %751 = vst.msk [vmem:[%s3 + $0x70] sm:$0xff] %vm736, %v686
  %752 = vst.msk [vmem:[%s3 + $0x78] sm:$0xff] %vm736, %v687
  %753 = vst.msk [vmem:[%s3 + $0x80] sm:$0xff] %vm736, %v688
  %754 = vst.msk [vmem:[%s3 + $0x88] sm:$0xff] %vm736, %v689
  %755 = vst.msk [vmem:[%s3 + $0x90] sm:$0xff] %vm736, %v690
  %756 = vst.msk [vmem:[%s3 + $0x98] sm:$0xff] %vm736, %v691
  %757 = vst.msk [vmem:[%s3 + $0xa0] sm:$0xff] %vm736, %v692
  %758 = vst.msk [vmem:[%s3 + $0xa8] sm:$0xff] %vm736, %v693
  %759 = vst.msk [vmem:[%s3 + $0xb0] sm:$0xff] %vm736, %v694
  %760 = vst.msk [vmem:[%s3 + $0xb8] sm:$0xff] %vm736, %v695
  %761 = vst.msk [vmem:[%s3 + $0xc0] sm:$0xff] %vm736, %v696
  %762 = vst.msk [vmem:[%s3 + $0xc8] sm:$0xff] %vm736, %v697
  %763 = vst.msk [vmem:[%s3 + $0xd0] sm:$0xff] %vm736, %v698
  %764 = vst.msk [vmem:[%s3 + $0xd8] sm:$0xff] %vm736, %v699
  %765 = vst.msk [vmem:[%s3 + $0xe0] sm:$0xff] %vm736, %v700
  %766 = vst.msk [vmem:[%s3 + $0xe8] sm:$0xff] %vm736, %v701
  %767 = vst.msk [vmem:[%s3 + $0xf0] sm:$0xff] %vm736, %v702
  %768 = vst.msk [vmem:[%s3 + $0xf8] sm:$0xff] %vm736, %v703
  %769 = vst.msk [vmem:[%s3 + $0x100] sm:$0xff] %vm736, %v704
  %770 = vst.msk [vmem:[%s3 + $0x108] sm:$0xff] %vm736, %v705
  %771 = vst.msk [vmem:[%s3 + $0x110] sm:$0xff] %vm736, %v706
  %772 = vst.msk [vmem:[%s3 + $0x118] sm:$0xff] %vm736, %v707
  %773 = vst.msk [vmem:[%s3 + $0x120] sm:$0xff] %vm736, %v708
  %774 = vst.msk [vmem:[%s3 + $0x128] sm:$0xff] %vm736, %v709
  %775 = vst.msk [vmem:[%s3 + $0x130] sm:$0xff] %vm736, %v710
  %776 = vst.msk [vmem:[%s3 + $0x138] sm:$0xff] %vm736, %v711
  %777 = vst.msk [vmem:[%s3 + $0x140] sm:$0xff] %vm736, %v712
  %778 = vst.msk [vmem:[%s3 + $0x148] sm:$0xff] %vm736, %v713
  %779 = vst.msk [vmem:[%s3 + $0x150] sm:$0xff] %vm736, %v714
  %780 = vst.msk [vmem:[%s3 + $0x158] sm:$0xff] %vm736, %v715
  %781 = vst.msk [vmem:[%s3 + $0x160] sm:$0xff] %vm736, %v716
  %782 = vst.msk [vmem:[%s3 + $0x168] sm:$0xff] %vm736, %v717
  %783 = vst.msk [vmem:[%s3 + $0x170] sm:$0xff] %vm736, %v718
  %784 = vst.msk [vmem:[%s3 + $0x178] sm:$0xff] %vm736, %v719
  %785 = vst.msk [vmem:[%s3 + $0x180] sm:$0xff] %vm736, %v720
  %786 = vst.msk [vmem:[%s3 + $0x188] sm:$0xff] %vm736, %v721
  %787 = vst.msk [vmem:[%s3 + $0x190] sm:$0xff] %vm736, %v722
  %788 = vst.msk [vmem:[%s3 + $0x198] sm:$0xff] %vm736, %v723
  %789 = vst.msk [vmem:[%s3 + $0x1a0] sm:$0xff] %vm736, %v724
  %790 = vst.msk [vmem:[%s3 + $0x1a8] sm:$0xff] %vm736, %v725
  %791 = vst.msk [vmem:[%s3 + $0x1b0] sm:$0xff] %vm736, %v726
  %792 = vst.msk [vmem:[%s3 + $0x1b8] sm:$0xff] %vm736, %v727
  %793 = vst.msk [vmem:[%s3 + $0x1c0] sm:$0xff] %vm736, %v728
  %794 = vst.msk [vmem:[%s3 + $0x1c8] sm:$0xff] %vm736, %v729
  %795 = vst.msk [vmem:[%s3 + $0x1d0] sm:$0xff] %vm736, %v730
  %796 = vst.msk [vmem:[%s3 + $0x1d8] sm:$0xff] %vm736, %v731
  %797 = vst.msk [vmem:[%s3 + $0x1e0] sm:$0xff] %vm736, %v732
  %798 = vst.msk [vmem:[%s3 + $0x1e8] sm:$0xff] %vm736, %v733
  %799 = vst.msk [vmem:[%s3 + $0x1f0] sm:$0xff] %vm736, %v734
  %800 = vst.msk [vmem:[%s3 + $0x1f8] sm:$0xff] %vm736, %v735
  // Predicated region
  $region14: #{ssd_forward.8} parent=0 // pred_check
    _
  $region15: #{ssd_forward.8} parent=0 // pred_check_branch
    %802 = sbr.rel (0) target = $region17
  $region16: #{ssd_forward.8} parent=0 // pred_region
    _
  $region17: #{ssd_forward.8} parent=0 // pred_fallthru
    _
  // Predicated region
  $region18: #{ssd_forward.8} parent=0 // pred_check
    _
  $region19: #{ssd_forward.8} parent=0 // pred_check_branch
    %804 = sbr.rel (0) target = $region21
  $region20: #{ssd_forward.8} parent=0 // pred_region
    _
  $region21: #{ssd_forward.8} parent=0 // pred_fallthru
    _

// kernel: ssd_forward.10
$region0: #{ssd_forward.10}
  #allocation0 [shape = 'u32[]', space=smem, size = 0x4, offset = 0x4, fixed_abs, tag = 'smem constant byte address 0x4 - core index']
  #allocation1 [shape = 'u32[144,128]{1,0:T(1,128)}', space=vmem, size = 0x12000, scoped, tag = 'internal scratch']
  %s0 = inlined_call_operand.vmem [shape: f32[128,8], index: 0, kind: input, shape index: {}]
  %s1 = inlined_call_operand.vmem [shape: f32[8,4], index: 1, kind: input, shape index: {}]
  %s2 = inlined_call_operand.vmem [shape: f32[1,4], index: 2, kind: input, shape index: {}]
  %s3 = inlined_call_operand.vmem [shape: f32[128,4], index: 3, kind: output, shape index: {}]
  %s4 = sld [smem:[#allocation0]]
  $region22: #{ssd_forward.10} parent=0
    _
  %s6 = ssub.s32 1, %s4
  %s7 = scalar_select 0, %s6, %s4
  // Predicated region
  $region2: #{ssd_forward.10} parent=0 // pred_check
    _
  $region3: #{ssd_forward.10} parent=0 // pred_check_branch
    %9 = sbr.rel (0) target = $region5
  $region4: #{ssd_forward.10} parent=0 // pred_region
    _
  $region5: #{ssd_forward.10} parent=0 // pred_fallthru
    _
  // Predicated region
  $region6: #{ssd_forward.10} parent=0 // pred_check
    _
  $region7: #{ssd_forward.10} parent=0 // pred_check_branch
    %11 = sbr.rel (0) target = $region9
  $region8: #{ssd_forward.10} parent=0 // pred_region
    _
  $region9: #{ssd_forward.10} parent=0 // pred_fallthru
    _
  // Predicated region
  $region10: #{ssd_forward.10} parent=0 // pred_check
    _
  $region11: #{ssd_forward.10} parent=0 // pred_check_branch
    %13 = sbr.rel (0) target = $region13
  $region12: #{ssd_forward.10} parent=0 // pred_region
    _
  $region13: #{ssd_forward.10} parent=0 // pred_fallthru
    _
  %v14 = vld [vmem:[%s0] sm:$0xff]
  %v15 = vld [vmem:[%s0 + $0x8] sm:$0xff]
  %v16 = vld [vmem:[%s0 + $0x10] sm:$0xff]
  %v17 = vld [vmem:[%s0 + $0x18] sm:$0xff]
  %v18 = vld [vmem:[%s0 + $0x20] sm:$0xff]
  %v19 = vld [vmem:[%s0 + $0x28] sm:$0xff]
  %v20 = vld [vmem:[%s0 + $0x30] sm:$0xff]
  %v21 = vld [vmem:[%s0 + $0x38] sm:$0xff]
  %v22 = vld [vmem:[%s0 + $0x40] sm:$0xff]
  %v23 = vld [vmem:[%s0 + $0x48] sm:$0xff]
  %v24 = vld [vmem:[%s0 + $0x50] sm:$0xff]
  %v25 = vld [vmem:[%s0 + $0x58] sm:$0xff]
  %v26 = vld [vmem:[%s0 + $0x60] sm:$0xff]
  %v27 = vld [vmem:[%s0 + $0x68] sm:$0xff]
  %v28 = vld [vmem:[%s0 + $0x70] sm:$0xff]
  %v29 = vld [vmem:[%s0 + $0x78] sm:$0xff]
  %v30 = vld [vmem:[%s1] sm:$0xff]
  %v31 = vld [vmem:[%s2] sm:$0x1]
  %v33 = vlaneseq
  %v34 = vshrl.u32 %v33, 7
  %v35 = vsub.s32 0, %v34
  %v36 = vrot.slane %v31, %v35
  %vm38 = vcmask 64512
  %v40 = vsel %vm38, %v14, 0
  %v43 = vsel %vm38, %v15, 0
  %v46 = vsel %vm38, %v16, 0
  %v49 = vsel %vm38, %v17, 0
  %v52 = vsel %vm38, %v18, 0
  %v55 = vsel %vm38, %v19, 0
  %v58 = vsel %vm38, %v20, 0
  %v61 = vsel %vm38, %v21, 0
  %v64 = vsel %vm38, %v22, 0
  %v67 = vsel %vm38, %v23, 0
  %v70 = vsel %vm38, %v24, 0
  %v73 = vsel %vm38, %v25, 0
  %v76 = vsel %vm38, %v26, 0
  %v79 = vsel %vm38, %v27, 0
  %v82 = vsel %vm38, %v28, 0
  %v85 = vsel %vm38, %v29, 0
  %87 = vmatprep.subr.mxu0 0.0
  %88 = vmatpush1.msra.mxu0 %v30
  %89 = vmatprep.subr.mxu0 0.0
  %90 = vmatpush1.msra.mxu0 0.0
  %91 = vmatprep.subr.mxu0 0.0
  %92 = vmatpush1.msra.mxu0 0.0
  %93 = vmatprep.subr.mxu0 0.0
  %94 = vmatpush1.msra.mxu0 0.0
  %95 = vmatprep.subr.mxu0 0.0
  %96 = vmatpush1.msra.mxu0 0.0
  %97 = vmatprep.subr.mxu0 0.0
  %98 = vmatpush1.msra.mxu0 0.0
  %99 = vmatprep.subr.mxu0 0.0
  %100 = vmatpush1.msra.mxu0 0.0
  %101 = vmatprep.subr.mxu0 0.0
  %102 = vmatpush1.msra.mxu0 0.0
  %103 = vmatprep.subr.mxu0 0.0
  %104 = vmatpush1.msra.mxu0 0.0
  %105 = vmatprep.subr.mxu0 0.0
  %106 = vmatpush1.msra.mxu0 0.0
  %107 = vmatprep.subr.mxu0 0.0
  %108 = vmatpush1.msra.mxu0 0.0
  %109 = vmatprep.subr.mxu0 0.0
  %110 = vmatpush1.msra.mxu0 0.0
  %111 = vmatprep.subr.mxu0 0.0
  %112 = vmatpush1.msra.mxu0 0.0
  %113 = vmatprep.subr.mxu0 0.0
  %114 = vmatpush1.msra.mxu0 0.0
  %115 = vmatprep.subr.mxu0 0.0
  %116 = vmatpush1.msra.mxu0 0.0
  %117 = vmatprep.subr.mxu0 0.0
  %118 = vmatpush1.msra.mxu0 0.0
  %119 = vmatprep.subr.mxu0 0.0
  %120 = vmatpush1.msra.mxu0 0.0
  %121 = vmatprep.subr.mxu0 0.0
  %122 = vmatpush1.msra.mxu0 0.0
  %123 = vmatprep.subr.mxu0 0.0
  %124 = vmatpush1.msra.mxu0 0.0
  %125 = vmatprep.subr.mxu0 0.0
  %126 = vmatpush1.msra.mxu0 0.0
  %127 = vmatprep.subr.mxu0 0.0
  %128 = vmatpush1.msra.mxu0 0.0
  %129 = vmatprep.subr.mxu0 0.0
  %130 = vmatpush1.msra.mxu0 0.0
  %131 = vmatprep.subr.mxu0 0.0
  %132 = vmatpush1.msra.mxu0 0.0
  %133 = vmatprep.subr.mxu0 0.0
  %134 = vmatpush1.msra.mxu0 0.0
  %135 = vmatprep.subr.mxu0 0.0
  %136 = vmatpush1.msra.mxu0 0.0
  %137 = vmatprep.subr.mxu0 0.0
  %138 = vmatpush1.msra.mxu0 0.0
  %139 = vmatprep.subr.mxu0 0.0
  %140 = vmatpush1.msra.mxu0 0.0
  %141 = vmatprep.subr.mxu0 0.0
  %142 = vmatpush1.msra.mxu0 0.0
  %143 = vmatprep.subr.mxu0 0.0
  %144 = vmatpush1.msra.mxu0 0.0
  %145 = vmatprep.subr.mxu0 0.0
  %146 = vmatpush1.msra.mxu0 0.0
  %147 = vmatprep.subr.mxu0 0.0
  %148 = vmatpush1.msra.mxu0 0.0
  %149 = vmatprep.subr.mxu0 0.0
  %150 = vmatpush1.msra.mxu0 0.0
  %151 = vmatprep.mubr.f32.mxu0 0.0
  %152 = vmatmul.mubr.f32.gmra.mrb[0].mxu0 %v40
  %v153 = vpop.f32.mrb[0].mxu0
  %v154 = vadd.f32 %v36, %v153
  %v155 = vpop.f32.mrb[0].mxu0
  %156 = vmatprep.mubr.f32.mxu0 0.0
  %157 = vmatmul.mubr.f32.gmra.mrb[0].mxu0 %v43
  %v158 = vpop.f32.mrb[0].mxu0
  %v159 = vadd.f32 %v36, %v158
  %v160 = vpop.f32.mrb[0].mxu0
  %161 = vmatprep.mubr.f32.mxu0 0.0
  %162 = vmatmul.mubr.f32.gmra.mrb[0].mxu0 %v46
  %v163 = vpop.f32.mrb[0].mxu0
  %v164 = vadd.f32 %v36, %v163
  %v165 = vpop.f32.mrb[0].mxu0
  %166 = vmatprep.mubr.f32.mxu0 0.0
  %167 = vmatmul.mubr.f32.gmra.mrb[0].mxu0 %v49
  %v168 = vpop.f32.mrb[0].mxu0
  %v169 = vadd.f32 %v36, %v168
  %v170 = vpop.f32.mrb[0].mxu0
  %171 = vmatprep.mubr.f32.mxu0 0.0
  %172 = vmatmul.mubr.f32.gmra.mrb[0].mxu0 %v52
  %v173 = vpop.f32.mrb[0].mxu0
  %v174 = vadd.f32 %v36, %v173
  %v175 = vpop.f32.mrb[0].mxu0
  %176 = vmatprep.mubr.f32.mxu0 0.0
  %177 = vmatmul.mubr.f32.gmra.mrb[0].mxu0 %v55
  %v178 = vpop.f32.mrb[0].mxu0
  %v179 = vadd.f32 %v36, %v178
  %v180 = vpop.f32.mrb[0].mxu0
  %181 = vmatprep.mubr.f32.mxu0 0.0
  %182 = vmatmul.mubr.f32.gmra.mrb[0].mxu0 %v58
  %v183 = vpop.f32.mrb[0].mxu0
  %v184 = vadd.f32 %v36, %v183
  %v185 = vpop.f32.mrb[0].mxu0
  %186 = vmatprep.mubr.f32.mxu0 0.0
  %187 = vmatmul.mubr.f32.gmra.mrb[0].mxu0 %v61
  %v188 = vpop.f32.mrb[0].mxu0
  %v189 = vadd.f32 %v36, %v188
  %v190 = vpop.f32.mrb[0].mxu0
  %191 = vmatprep.mubr.f32.mxu0 0.0
  %192 = vmatmul.mubr.f32.gmra.mrb[0].mxu0 %v64
  %v193 = vpop.f32.mrb[0].mxu0
  %v194 = vadd.f32 %v36, %v193
  %v195 = vpop.f32.mrb[0].mxu0
  %196 = vmatprep.mubr.f32.mxu0 0.0
  %197 = vmatmul.mubr.f32.gmra.mrb[0].mxu0 %v67
  %v198 = vpop.f32.mrb[0].mxu0
  %v199 = vadd.f32 %v36, %v198
  %v200 = vpop.f32.mrb[0].mxu0
  %201 = vmatprep.mubr.f32.mxu0 0.0
  %202 = vmatmul.mubr.f32.gmra.mrb[0].mxu0 %v70
  %v203 = vpop.f32.mrb[0].mxu0
  %v204 = vadd.f32 %v36, %v203
  %v205 = vpop.f32.mrb[0].mxu0
  %206 = vmatprep.mubr.f32.mxu0 0.0
  %207 = vmatmul.mubr.f32.gmra.mrb[0].mxu0 %v73
  %v208 = vpop.f32.mrb[0].mxu0
  %v209 = vadd.f32 %v36, %v208
  %v210 = vpop.f32.mrb[0].mxu0
  %211 = vmatprep.mubr.f32.mxu0 0.0
  %212 = vmatmul.mubr.f32.gmra.mrb[0].mxu0 %v76
  %v213 = vpop.f32.mrb[0].mxu0
  %v214 = vadd.f32 %v36, %v213
  %v215 = vpop.f32.mrb[0].mxu0
  %216 = vmatprep.mubr.f32.mxu0 0.0
  %217 = vmatmul.mubr.f32.gmra.mrb[0].mxu0 %v79
  %v218 = vpop.f32.mrb[0].mxu0
  %v219 = vadd.f32 %v36, %v218
  %v220 = vpop.f32.mrb[0].mxu0
  %221 = vmatprep.mubr.f32.mxu0 0.0
  %222 = vmatmul.mubr.f32.gmra.mrb[0].mxu0 %v82
  %v223 = vpop.f32.mrb[0].mxu0
  %v224 = vadd.f32 %v36, %v223
  %v225 = vpop.f32.mrb[0].mxu0
  %226 = vmatprep.mubr.f32.mxu0 0.0
  %227 = vmatmul.mubr.f32.gmra.mrb[0].mxu0 %v85
  %v228 = vpop.f32.mrb[0].mxu0
  %v229 = vadd.f32 %v36, %v228
  %v230 = vpop.f32.mrb[0].mxu0
  %231 = vdwg.mxu0
  %v232 = vmax.f32 %v154, 0.0
  %v233 = vmax.f32 %v159, 0.0
  %v234 = vmax.f32 %v164, 0.0
  %v235 = vmax.f32 %v169, 0.0
  %v236 = vmax.f32 %v174, 0.0
  %v237 = vmax.f32 %v179, 0.0
  %v238 = vmax.f32 %v184, 0.0
  %v239 = vmax.f32 %v189, 0.0
  %v240 = vmax.f32 %v194, 0.0
  %v241 = vmax.f32 %v199, 0.0
  %v242 = vmax.f32 %v204, 0.0
  %v243 = vmax.f32 %v209, 0.0
  %v244 = vmax.f32 %v214, 0.0
  %v245 = vmax.f32 %v219, 0.0
  %v246 = vmax.f32 %v224, 0.0
  %v247 = vmax.f32 %v229, 0.0
  %vm248 = vcmask 31744
  %249 = vst.msk [vmem:[%s3] sm:$0xff] %vm248, %v232
  %250 = vst.msk [vmem:[%s3 + $0x8] sm:$0xff] %vm248, %v233
  %251 = vst.msk [vmem:[%s3 + $0x10] sm:$0xff] %vm248, %v234
  %252 = vst.msk [vmem:[%s3 + $0x18] sm:$0xff] %vm248, %v235
  %253 = vst.msk [vmem:[%s3 + $0x20] sm:$0xff] %vm248, %v236
  %254 = vst.msk [vmem:[%s3 + $0x28] sm:$0xff] %vm248, %v237
  %255 = vst.msk [vmem:[%s3 + $0x30] sm:$0xff] %vm248, %v238
  %256 = vst.msk [vmem:[%s3 + $0x38] sm:$0xff] %vm248, %v239
  %257 = vst.msk [vmem:[%s3 + $0x40] sm:$0xff] %vm248, %v240
  %258 = vst.msk [vmem:[%s3 + $0x48] sm:$0xff] %vm248, %v241
  %259 = vst.msk [vmem:[%s3 + $0x50] sm:$0xff] %vm248, %v242
  %260 = vst.msk [vmem:[%s3 + $0x58] sm:$0xff] %vm248, %v243
  %261 = vst.msk [vmem:[%s3 + $0x60] sm:$0xff] %vm248, %v244
  %262 = vst.msk [vmem:[%s3 + $0x68] sm:$0xff] %vm248, %v245
  %263 = vst.msk [vmem:[%s3 + $0x70] sm:$0xff] %vm248, %v246
  %264 = vst.msk [vmem:[%s3 + $0x78] sm:$0xff] %vm248, %v247
  // Predicated region
  $region14: #{ssd_forward.10} parent=0 // pred_check
    _
  $region15: #{ssd_forward.10} parent=0 // pred_check_branch
    %266 = sbr.rel (0) target = $region17
  $region16: #{ssd_forward.10} parent=0 // pred_region
    _
  $region17: #{ssd_forward.10} parent=0 // pred_fallthru
    _
  // Predicated region
  $region18: #{ssd_forward.10} parent=0 // pred_check
    _
  $region19: #{ssd_forward.10} parent=0 // pred_check_branch
    %268 = sbr.rel (0) target = $region21
  $region20: #{ssd_forward.10} parent=0 // pred_region
    _
  $region21: #{ssd_forward.10} parent=0 // pred_fallthru
    _

// kernel: ssd_forward.9
$region0: #{ssd_forward.9}
  #allocation0 [shape = 'u32[]', space=smem, size = 0x4, offset = 0x4, fixed_abs, tag = 'smem constant byte address 0x4 - core index']
  #allocation1 [shape = 'u32[144,128]{1,0:T(1,128)}', space=vmem, size = 0x12000, scoped, tag = 'internal scratch']
  %s0 = inlined_call_operand.vmem [shape: f32[128,72], index: 0, kind: input, shape index: {}]
  %s1 = inlined_call_operand.vmem [shape: f32[72,8], index: 1, kind: input, shape index: {}]
  %s2 = inlined_call_operand.vmem [shape: f32[1,8], index: 2, kind: input, shape index: {}]
  %s3 = inlined_call_operand.vmem [shape: f32[128,8], index: 3, kind: output, shape index: {}]
  %s4 = sld [smem:[#allocation0]]
  $region22: #{ssd_forward.9} parent=0
    _
  %s6 = ssub.s32 1, %s4
  %s7 = scalar_select 0, %s6, %s4
  // Predicated region
  $region2: #{ssd_forward.9} parent=0 // pred_check
    _
  $region3: #{ssd_forward.9} parent=0 // pred_check_branch
    %9 = sbr.rel (0) target = $region5
  $region4: #{ssd_forward.9} parent=0 // pred_region
    _
  $region5: #{ssd_forward.9} parent=0 // pred_fallthru
    _
  // Predicated region
  $region6: #{ssd_forward.9} parent=0 // pred_check
    _
  $region7: #{ssd_forward.9} parent=0 // pred_check_branch
    %11 = sbr.rel (0) target = $region9
  $region8: #{ssd_forward.9} parent=0 // pred_region
    _
  $region9: #{ssd_forward.9} parent=0 // pred_fallthru
    _
  // Predicated region
  $region10: #{ssd_forward.9} parent=0 // pred_check
    _
  $region11: #{ssd_forward.9} parent=0 // pred_check_branch
    %13 = sbr.rel (0) target = $region13
  $region12: #{ssd_forward.9} parent=0 // pred_region
    _
  $region13: #{ssd_forward.9} parent=0 // pred_fallthru
    _
  %v14 = vld [vmem:[%s0] sm:$0xff]
  %v15 = vld [vmem:[%s0 + $0x8] sm:$0xff]
  %v16 = vld [vmem:[%s0 + $0x10] sm:$0xff]
  %v17 = vld [vmem:[%s0 + $0x18] sm:$0xff]
  %v18 = vld [vmem:[%s0 + $0x20] sm:$0xff]
  %v19 = vld [vmem:[%s0 + $0x28] sm:$0xff]
  %v20 = vld [vmem:[%s0 + $0x30] sm:$0xff]
  %v21 = vld [vmem:[%s0 + $0x38] sm:$0xff]
  %v22 = vld [vmem:[%s0 + $0x40] sm:$0xff]
  %v23 = vld [vmem:[%s0 + $0x48] sm:$0xff]
  %v24 = vld [vmem:[%s0 + $0x50] sm:$0xff]
  %v25 = vld [vmem:[%s0 + $0x58] sm:$0xff]
  %v26 = vld [vmem:[%s0 + $0x60] sm:$0xff]
  %v27 = vld [vmem:[%s0 + $0x68] sm:$0xff]
  %v28 = vld [vmem:[%s0 + $0x70] sm:$0xff]
  %v29 = vld [vmem:[%s0 + $0x78] sm:$0xff]
  %v30 = vld [vmem:[%s1] sm:$0xff]
  %v31 = vld [vmem:[%s1 + $0x8] sm:$0xff]
  %v32 = vld [vmem:[%s1 + $0x10] sm:$0xff]
  %v33 = vld [vmem:[%s1 + $0x18] sm:$0xff]
  %v34 = vld [vmem:[%s1 + $0x20] sm:$0xff]
  %v35 = vld [vmem:[%s1 + $0x28] sm:$0xff]
  %v36 = vld [vmem:[%s1 + $0x30] sm:$0xff]
  %v37 = vld [vmem:[%s1 + $0x38] sm:$0xff]
  %v38 = vld [vmem:[%s1 + $0x40] sm:$0xff]
  %v39 = vld [vmem:[%s2] sm:$0x1]
  %v41 = vlaneseq
  %v42 = vshrl.u32 %v41, 7
  %v43 = vsub.s32 0, %v42
  %v44 = vrot.slane %v39, %v43
  %vm46 = vcmask 588800
  %v48 = vsel %vm46, %v14, 0
  %v51 = vsel %vm46, %v15, 0
  %v54 = vsel %vm46, %v16, 0
  %v57 = vsel %vm46, %v17, 0
  %v60 = vsel %vm46, %v18, 0
  %v63 = vsel %vm46, %v19, 0
  %v66 = vsel %vm46, %v20, 0
  %v69 = vsel %vm46, %v21, 0
  %v72 = vsel %vm46, %v22, 0
  %v75 = vsel %vm46, %v23, 0
  %v78 = vsel %vm46, %v24, 0
  %v81 = vsel %vm46, %v25, 0
  %v84 = vsel %vm46, %v26, 0
  %v87 = vsel %vm46, %v27, 0
  %v90 = vsel %vm46, %v28, 0
  %v93 = vsel %vm46, %v29, 0
  %95 = vmatprep.subr.mxu0 0.0
  %96 = vmatpush1.msra.mxu0 %v30
  %97 = vmatprep.subr.mxu0 0.0
  %98 = vmatpush1.msra.mxu0 %v31
  %99 = vmatprep.subr.mxu0 0.0
  %100 = vmatpush1.msra.mxu0 %v32
  %101 = vmatprep.subr.mxu0 0.0
  %102 = vmatpush1.msra.mxu0 %v33
  %103 = vmatprep.subr.mxu0 0.0
  %104 = vmatpush1.msra.mxu0 %v34
  %105 = vmatprep.subr.mxu0 0.0
  %106 = vmatpush1.msra.mxu0 %v35
  %107 = vmatprep.subr.mxu0 0.0
  %108 = vmatpush1.msra.mxu0 %v36
  %109 = vmatprep.subr.mxu0 0.0
  %110 = vmatpush1.msra.mxu0 %v37
  %111 = vmatprep.subr.mxu0 0.0
  %112 = vmatpush1.msra.mxu0 %v38
  %113 = vmatprep.subr.mxu0 0.0
  %114 = vmatpush1.msra.mxu0 0.0
  %115 = vmatprep.subr.mxu0 0.0
  %116 = vmatpush1.msra.mxu0 0.0
  %117 = vmatprep.subr.mxu0 0.0
  %118 = vmatpush1.msra.mxu0 0.0
  %119 = vmatprep.subr.mxu0 0.0
  %120 = vmatpush1.msra.mxu0 0.0
  %121 = vmatprep.subr.mxu0 0.0
  %122 = vmatpush1.msra.mxu0 0.0
  %123 = vmatprep.subr.mxu0 0.0
  %124 = vmatpush1.msra.mxu0 0.0
  %125 = vmatprep.subr.mxu0 0.0
  %126 = vmatpush1.msra.mxu0 0.0
  %127 = vmatprep.subr.mxu0 0.0
  %128 = vmatpush1.msra.mxu0 0.0
  %129 = vmatprep.subr.mxu0 0.0
  %130 = vmatpush1.msra.mxu0 0.0
  %131 = vmatprep.subr.mxu0 0.0
  %132 = vmatpush1.msra.mxu0 0.0
  %133 = vmatprep.subr.mxu0 0.0
  %134 = vmatpush1.msra.mxu0 0.0
  %135 = vmatprep.subr.mxu0 0.0
  %136 = vmatpush1.msra.mxu0 0.0
  %137 = vmatprep.subr.mxu0 0.0
  %138 = vmatpush1.msra.mxu0 0.0
  %139 = vmatprep.subr.mxu0 0.0
  %140 = vmatpush1.msra.mxu0 0.0
  %141 = vmatprep.subr.mxu0 0.0
  %142 = vmatpush1.msra.mxu0 0.0
  %143 = vmatprep.subr.mxu0 0.0
  %144 = vmatpush1.msra.mxu0 0.0
  %145 = vmatprep.subr.mxu0 0.0
  %146 = vmatpush1.msra.mxu0 0.0
  %147 = vmatprep.subr.mxu0 0.0
  %148 = vmatpush1.msra.mxu0 0.0
  %149 = vmatprep.subr.mxu0 0.0
  %150 = vmatpush1.msra.mxu0 0.0
  %151 = vmatprep.subr.mxu0 0.0
  %152 = vmatpush1.msra.mxu0 0.0
  %153 = vmatprep.subr.mxu0 0.0
  %154 = vmatpush1.msra.mxu0 0.0
  %155 = vmatprep.subr.mxu0 0.0
  %156 = vmatpush1.msra.mxu0 0.0
  %157 = vmatprep.subr.mxu0 0.0
  %158 = vmatpush1.msra.mxu0 0.0
  %159 = vmatprep.mubr.f32.mxu0 0.0
  %160 = vmatmul.mubr.f32.gmra.mrb[0].mxu0 %v48
  %v161 = vpop.f32.mrb[0].mxu0
  %v162 = vadd.f32 %v44, %v161
  %v163 = vpop.f32.mrb[0].mxu0
  %164 = vmatprep.mubr.f32.mxu0 0.0
  %165 = vmatmul.mubr.f32.gmra.mrb[0].mxu0 %v51
  %v166 = vpop.f32.mrb[0].mxu0
  %v167 = vadd.f32 %v44, %v166
  %v168 = vpop.f32.mrb[0].mxu0
  %169 = vmatprep.mubr.f32.mxu0 0.0
  %170 = vmatmul.mubr.f32.gmra.mrb[0].mxu0 %v54
  %v171 = vpop.f32.mrb[0].mxu0
  %v172 = vadd.f32 %v44, %v171
  %v173 = vpop.f32.mrb[0].mxu0
  %174 = vmatprep.mubr.f32.mxu0 0.0
  %175 = vmatmul.mubr.f32.gmra.mrb[0].mxu0 %v57
  %v176 = vpop.f32.mrb[0].mxu0
  %v177 = vadd.f32 %v44, %v176
  %v178 = vpop.f32.mrb[0].mxu0
  %179 = vmatprep.mubr.f32.mxu0 0.0
  %180 = vmatmul.mubr.f32.gmra.mrb[0].mxu0 %v60
  %v181 = vpop.f32.mrb[0].mxu0
  %v182 = vadd.f32 %v44, %v181
  %v183 = vpop.f32.mrb[0].mxu0
  %184 = vmatprep.mubr.f32.mxu0 0.0
  %185 = vmatmul.mubr.f32.gmra.mrb[0].mxu0 %v63
  %v186 = vpop.f32.mrb[0].mxu0
  %v187 = vadd.f32 %v44, %v186
  %v188 = vpop.f32.mrb[0].mxu0
  %189 = vmatprep.mubr.f32.mxu0 0.0
  %190 = vmatmul.mubr.f32.gmra.mrb[0].mxu0 %v66
  %v191 = vpop.f32.mrb[0].mxu0
  %v192 = vadd.f32 %v44, %v191
  %v193 = vpop.f32.mrb[0].mxu0
  %194 = vmatprep.mubr.f32.mxu0 0.0
  %195 = vmatmul.mubr.f32.gmra.mrb[0].mxu0 %v69
  %v196 = vpop.f32.mrb[0].mxu0
  %v197 = vadd.f32 %v44, %v196
  %v198 = vpop.f32.mrb[0].mxu0
  %199 = vmatprep.mubr.f32.mxu0 0.0
  %200 = vmatmul.mubr.f32.gmra.mrb[0].mxu0 %v72
  %v201 = vpop.f32.mrb[0].mxu0
  %v202 = vadd.f32 %v44, %v201
  %v203 = vpop.f32.mrb[0].mxu0
  %204 = vmatprep.mubr.f32.mxu0 0.0
  %205 = vmatmul.mubr.f32.gmra.mrb[0].mxu0 %v75
  %v206 = vpop.f32.mrb[0].mxu0
  %v207 = vadd.f32 %v44, %v206
  %v208 = vpop.f32.mrb[0].mxu0
  %209 = vmatprep.mubr.f32.mxu0 0.0
  %210 = vmatmul.mubr.f32.gmra.mrb[0].mxu0 %v78
  %v211 = vpop.f32.mrb[0].mxu0
  %v212 = vadd.f32 %v44, %v211
  %v213 = vpop.f32.mrb[0].mxu0
  %214 = vmatprep.mubr.f32.mxu0 0.0
  %215 = vmatmul.mubr.f32.gmra.mrb[0].mxu0 %v81
  %v216 = vpop.f32.mrb[0].mxu0
  %v217 = vadd.f32 %v44, %v216
  %v218 = vpop.f32.mrb[0].mxu0
  %219 = vmatprep.mubr.f32.mxu0 0.0
  %220 = vmatmul.mubr.f32.gmra.mrb[0].mxu0 %v84
  %v221 = vpop.f32.mrb[0].mxu0
  %v222 = vadd.f32 %v44, %v221
  %v223 = vpop.f32.mrb[0].mxu0
  %224 = vmatprep.mubr.f32.mxu0 0.0
  %225 = vmatmul.mubr.f32.gmra.mrb[0].mxu0 %v87
  %v226 = vpop.f32.mrb[0].mxu0
  %v227 = vadd.f32 %v44, %v226
  %v228 = vpop.f32.mrb[0].mxu0
  %229 = vmatprep.mubr.f32.mxu0 0.0
  %230 = vmatmul.mubr.f32.gmra.mrb[0].mxu0 %v90
  %v231 = vpop.f32.mrb[0].mxu0
  %v232 = vadd.f32 %v44, %v231
  %v233 = vpop.f32.mrb[0].mxu0
  %234 = vmatprep.mubr.f32.mxu0 0.0
  %235 = vmatmul.mubr.f32.gmra.mrb[0].mxu0 %v93
  %v236 = vpop.f32.mrb[0].mxu0
  %v237 = vadd.f32 %v44, %v236
  %v238 = vpop.f32.mrb[0].mxu0
  %239 = vdwg.mxu0
  %v240 = vmax.f32 %v162, 0.0
  %v241 = vmax.f32 %v167, 0.0
  %v242 = vmax.f32 %v172, 0.0
  %v243 = vmax.f32 %v177, 0.0
  %v244 = vmax.f32 %v182, 0.0
  %v245 = vmax.f32 %v187, 0.0
  %v246 = vmax.f32 %v192, 0.0
  %v247 = vmax.f32 %v197, 0.0
  %v248 = vmax.f32 %v202, 0.0
  %v249 = vmax.f32 %v207, 0.0
  %v250 = vmax.f32 %v212, 0.0
  %v251 = vmax.f32 %v217, 0.0
  %v252 = vmax.f32 %v222, 0.0
  %v253 = vmax.f32 %v227, 0.0
  %v254 = vmax.f32 %v232, 0.0
  %v255 = vmax.f32 %v237, 0.0
  %vm256 = vcmask 64512
  %257 = vst.msk [vmem:[%s3] sm:$0xff] %vm256, %v240
  %258 = vst.msk [vmem:[%s3 + $0x8] sm:$0xff] %vm256, %v241
  %259 = vst.msk [vmem:[%s3 + $0x10] sm:$0xff] %vm256, %v242
  %260 = vst.msk [vmem:[%s3 + $0x18] sm:$0xff] %vm256, %v243
  %261 = vst.msk [vmem:[%s3 + $0x20] sm:$0xff] %vm256, %v244
  %262 = vst.msk [vmem:[%s3 + $0x28] sm:$0xff] %vm256, %v245
  %263 = vst.msk [vmem:[%s3 + $0x30] sm:$0xff] %vm256, %v246
  %264 = vst.msk [vmem:[%s3 + $0x38] sm:$0xff] %vm256, %v247
  %265 = vst.msk [vmem:[%s3 + $0x40] sm:$0xff] %vm256, %v248
  %266 = vst.msk [vmem:[%s3 + $0x48] sm:$0xff] %vm256, %v249
  %267 = vst.msk [vmem:[%s3 + $0x50] sm:$0xff] %vm256, %v250
  %268 = vst.msk [vmem:[%s3 + $0x58] sm:$0xff] %vm256, %v251
  %269 = vst.msk [vmem:[%s3 + $0x60] sm:$0xff] %vm256, %v252
  %270 = vst.msk [vmem:[%s3 + $0x68] sm:$0xff] %vm256, %v253
  %271 = vst.msk [vmem:[%s3 + $0x70] sm:$0xff] %vm256, %v254
  %272 = vst.msk [vmem:[%s3 + $0x78] sm:$0xff] %vm256, %v255
  // Predicated region
  $region14: #{ssd_forward.9} parent=0 // pred_check
    _
  $region15: #{ssd_forward.9} parent=0 // pred_check_branch
    %274 = sbr.rel (0) target = $region17
  $region16: #{ssd_forward.9} parent=0 // pred_region
    _
  $region17: #{ssd_forward.9} parent=0 // pred_fallthru
    _
  // Predicated region
  $region18: #{ssd_forward.9} parent=0 // pred_check
    _
  $region19: #{ssd_forward.9} parent=0 // pred_check_branch
    %276 = sbr.rel (0) target = $region21
  $region20: #{ssd_forward.9} parent=0 // pred_region
    _
  $region21: #{ssd_forward.9} parent=0 // pred_fallthru
    _

// kernel: ssd_forward.11
$region0: #{ssd_forward.11}
  #allocation0 [shape = 'u32[]', space=smem, size = 0x4, offset = 0x4, fixed_abs, tag = 'smem constant byte address 0x4 - core index']
  #allocation1 [shape = 'u32[144,128]{1,0:T(1,128)}', space=vmem, size = 0x12000, scoped, tag = 'internal scratch']
  %s0 = inlined_call_operand.vmem [shape: f32[72,36], index: 0, kind: input, shape index: {}]
  %s1 = inlined_call_operand.vmem [shape: f32[36,8], index: 1, kind: input, shape index: {}]
  %s2 = inlined_call_operand.vmem [shape: f32[1,8], index: 2, kind: input, shape index: {}]
  %s3 = inlined_call_operand.vmem [shape: f32[72,8], index: 3, kind: output, shape index: {}]
  %s4 = sld [smem:[#allocation0]]
  $region22: #{ssd_forward.11} parent=0
    _
  %s6 = ssub.s32 1, %s4
  %s7 = scalar_select 0, %s6, %s4
  // Predicated region
  $region2: #{ssd_forward.11} parent=0 // pred_check
    _
  $region3: #{ssd_forward.11} parent=0 // pred_check_branch
    %9 = sbr.rel (0) target = $region5
  $region4: #{ssd_forward.11} parent=0 // pred_region
    _
  $region5: #{ssd_forward.11} parent=0 // pred_fallthru
    _
  // Predicated region
  $region6: #{ssd_forward.11} parent=0 // pred_check
    _
  $region7: #{ssd_forward.11} parent=0 // pred_check_branch
    %11 = sbr.rel (0) target = $region9
  $region8: #{ssd_forward.11} parent=0 // pred_region
    _
  $region9: #{ssd_forward.11} parent=0 // pred_fallthru
    _
  // Predicated region
  $region10: #{ssd_forward.11} parent=0 // pred_check
    _
  $region11: #{ssd_forward.11} parent=0 // pred_check_branch
    %13 = sbr.rel (0) target = $region13
  $region12: #{ssd_forward.11} parent=0 // pred_region
    _
  $region13: #{ssd_forward.11} parent=0 // pred_fallthru
    _
  %v14 = vld [vmem:[%s0] sm:$0xff]
  %v15 = vld [vmem:[%s0 + $0x8] sm:$0xff]
  %v16 = vld [vmem:[%s0 + $0x10] sm:$0xff]
  %v17 = vld [vmem:[%s0 + $0x18] sm:$0xff]
  %v18 = vld [vmem:[%s0 + $0x20] sm:$0xff]
  %v19 = vld [vmem:[%s0 + $0x28] sm:$0xff]
  %v20 = vld [vmem:[%s0 + $0x30] sm:$0xff]
  %v21 = vld [vmem:[%s0 + $0x38] sm:$0xff]
  %v22 = vld [vmem:[%s0 + $0x40] sm:$0xff]
  %v23 = vld [vmem:[%s1] sm:$0xff]
  %v24 = vld [vmem:[%s1 + $0x8] sm:$0xff]
  %v25 = vld [vmem:[%s1 + $0x10] sm:$0xff]
  %v26 = vld [vmem:[%s1 + $0x18] sm:$0xff]
  %v27 = vld [vmem:[%s1 + $0x20] sm:$0xf]
  %v28 = vld [vmem:[%s2] sm:$0x1]
  %v30 = vlaneseq
  %v31 = vshrl.u32 %v30, 7
  %v32 = vsub.s32 0, %v31
  %v33 = vrot.slane %v28, %v32
  %vm35 = vcmask 293888
  %v37 = vsel %vm35, %v14, 0
  %v40 = vsel %vm35, %v15, 0
  %v43 = vsel %vm35, %v16, 0
  %v46 = vsel %vm35, %v17, 0
  %v49 = vsel %vm35, %v18, 0
  %v52 = vsel %vm35, %v19, 0
  %v55 = vsel %vm35, %v20, 0
  %v58 = vsel %vm35, %v21, 0
  %v61 = vsel %vm35, %v22, 0
  %vm63 = vcmask 1043456
  %v65 = vsel %vm63, %v27, 0
  %67 = vmatprep.subr.mxu0 0.0
  %68 = vmatpush1.msra.mxu0 %v23
  %69 = vmatprep.subr.mxu0 0.0
  %70 = vmatpush1.msra.mxu0 %v24
  %71 = vmatprep.subr.mxu0 0.0
  %72 = vmatpush1.msra.mxu0 %v25
  %73 = vmatprep.subr.mxu0 0.0
  %74 = vmatpush1.msra.mxu0 %v26
  %75 = vmatprep.subr.mxu0 0.0
  %76 = vmatpush1.msra.mxu0 %v65
  %77 = vmatprep.subr.mxu0 0.0
  %78 = vmatpush1.msra.mxu0 0.0
  %79 = vmatprep.subr.mxu0 0.0
  %80 = vmatpush1.msra.mxu0 0.0
  %81 = vmatprep.subr.mxu0 0.0
  %82 = vmatpush1.msra.mxu0 0.0
  %83 = vmatprep.subr.mxu0 0.0
  %84 = vmatpush1.msra.mxu0 0.0
  %85 = vmatprep.subr.mxu0 0.0
  %86 = vmatpush1.msra.mxu0 0.0
  %87 = vmatprep.subr.mxu0 0.0
  %88 = vmatpush1.msra.mxu0 0.0
  %89 = vmatprep.subr.mxu0 0.0
  %90 = vmatpush1.msra.mxu0 0.0
  %91 = vmatprep.subr.mxu0 0.0
  %92 = vmatpush1.msra.mxu0 0.0
  %93 = vmatprep.subr.mxu0 0.0
  %94 = vmatpush1.msra.mxu0 0.0
  %95 = vmatprep.subr.mxu0 0.0
  %96 = vmatpush1.msra.mxu0 0.0
  %97 = vmatprep.subr.mxu0 0.0
  %98 = vmatpush1.msra.mxu0 0.0
  %99 = vmatprep.subr.mxu0 0.0
  %100 = vmatpush1.msra.mxu0 0.0
  %101 = vmatprep.subr.mxu0 0.0
  %102 = vmatpush1.msra.mxu0 0.0
  %103 = vmatprep.subr.mxu0 0.0
  %104 = vmatpush1.msra.mxu0 0.0
  %105 = vmatprep.subr.mxu0 0.0
  %106 = vmatpush1.msra.mxu0 0.0
  %107 = vmatprep.subr.mxu0 0.0
  %108 = vmatpush1.msra.mxu0 0.0
  %109 = vmatprep.subr.mxu0 0.0
  %110 = vmatpush1.msra.mxu0 0.0
  %111 = vmatprep.subr.mxu0 0.0
  %112 = vmatpush1.msra.mxu0 0.0
  %113 = vmatprep.subr.mxu0 0.0
  %114 = vmatpush1.msra.mxu0 0.0
  %115 = vmatprep.subr.mxu0 0.0
  %116 = vmatpush1.msra.mxu0 0.0
  %117 = vmatprep.subr.mxu0 0.0
  %118 = vmatpush1.msra.mxu0 0.0
  %119 = vmatprep.subr.mxu0 0.0
  %120 = vmatpush1.msra.mxu0 0.0
  %121 = vmatprep.subr.mxu0 0.0
  %122 = vmatpush1.msra.mxu0 0.0
  %123 = vmatprep.subr.mxu0 0.0
  %124 = vmatpush1.msra.mxu0 0.0
  %125 = vmatprep.subr.mxu0 0.0
  %126 = vmatpush1.msra.mxu0 0.0
  %127 = vmatprep.subr.mxu0 0.0
  %128 = vmatpush1.msra.mxu0 0.0
  %129 = vmatprep.subr.mxu0 0.0
  %130 = vmatpush1.msra.mxu0 0.0
  %131 = vmatprep.mubr.f32.mxu0 0.0
  %132 = vmatmul.mubr.f32.gmra.mrb[0].mxu0 %v37
  %v133 = vpop.f32.mrb[0].mxu0
  %v134 = vadd.f32 %v33, %v133
  %v135 = vpop.f32.mrb[0].mxu0
  %136 = vmatprep.mubr.f32.mxu0 0.0
  %137 = vmatmul.mubr.f32.gmra.mrb[0].mxu0 %v40
  %v138 = vpop.f32.mrb[0].mxu0
  %v139 = vadd.f32 %v33, %v138
  %v140 = vpop.f32.mrb[0].mxu0
  %141 = vmatprep.mubr.f32.mxu0 0.0
  %142 = vmatmul.mubr.f32.gmra.mrb[0].mxu0 %v43
  %v143 = vpop.f32.mrb[0].mxu0
  %v144 = vadd.f32 %v33, %v143
  %v145 = vpop.f32.mrb[0].mxu0
  %146 = vmatprep.mubr.f32.mxu0 0.0
  %147 = vmatmul.mubr.f32.gmra.mrb[0].mxu0 %v46
  %v148 = vpop.f32.mrb[0].mxu0
  %v149 = vadd.f32 %v33, %v148
  %v150 = vpop.f32.mrb[0].mxu0
  %151 = vmatprep.mubr.f32.mxu0 0.0
  %152 = vmatmul.mubr.f32.gmra.mrb[0].mxu0 %v49
  %v153 = vpop.f32.mrb[0].mxu0
  %v154 = vadd.f32 %v33, %v153
  %v155 = vpop.f32.mrb[0].mxu0
  %156 = vmatprep.mubr.f32.mxu0 0.0
  %157 = vmatmul.mubr.f32.gmra.mrb[0].mxu0 %v52
  %v158 = vpop.f32.mrb[0].mxu0
  %v159 = vadd.f32 %v33, %v158
  %v160 = vpop.f32.mrb[0].mxu0
  %161 = vmatprep.mubr.f32.mxu0 0.0
  %162 = vmatmul.mubr.f32.gmra.mrb[0].mxu0 %v55
  %v163 = vpop.f32.mrb[0].mxu0
  %v164 = vadd.f32 %v33, %v163
  %v165 = vpop.f32.mrb[0].mxu0
  %166 = vmatprep.mubr.f32.mxu0 0.0
  %167 = vmatmul.mubr.f32.gmra.mrb[0].mxu0 %v58
  %v168 = vpop.f32.mrb[0].mxu0
  %v169 = vadd.f32 %v33, %v168
  %v170 = vpop.f32.mrb[0].mxu0
  %171 = vmatprep.mubr.f32.mxu0 0.0
  %172 = vmatmul.mubr.f32.gmra.mrb[0].mxu0 %v61
  %v173 = vpop.f32.mrb[0].mxu0
  %v174 = vadd.f32 %v33, %v173
  %v175 = vpop.f32.mrb[0].mxu0
  %176 = vdwg.mxu0
  %v177 = vmax.f32 %v134, 0.0
  %v178 = vmax.f32 %v139, 0.0
  %v179 = vmax.f32 %v144, 0.0
  %v180 = vmax.f32 %v149, 0.0
  %v181 = vmax.f32 %v154, 0.0
  %v182 = vmax.f32 %v159, 0.0
  %v183 = vmax.f32 %v164, 0.0
  %v184 = vmax.f32 %v169, 0.0
  %v185 = vmax.f32 %v174, 0.0
  %vm186 = vcmask 64512
  %187 = vst.msk [vmem:[%s3] sm:$0xff] %vm186, %v177
  %188 = vst.msk [vmem:[%s3 + $0x8] sm:$0xff] %vm186, %v178
  %189 = vst.msk [vmem:[%s3 + $0x10] sm:$0xff] %vm186, %v179
  %190 = vst.msk [vmem:[%s3 + $0x18] sm:$0xff] %vm186, %v180
  %191 = vst.msk [vmem:[%s3 + $0x20] sm:$0xff] %vm186, %v181
  %192 = vst.msk [vmem:[%s3 + $0x28] sm:$0xff] %vm186, %v182
  %193 = vst.msk [vmem:[%s3 + $0x30] sm:$0xff] %vm186, %v183
  %194 = vst.msk [vmem:[%s3 + $0x38] sm:$0xff] %vm186, %v184
  %195 = vst.msk [vmem:[%s3 + $0x40] sm:$0xff] %vm186, %v185
  // Predicated region
  $region14: #{ssd_forward.11} parent=0 // pred_check
    _
  $region15: #{ssd_forward.11} parent=0 // pred_check_branch
    %197 = sbr.rel (0) target = $region17
  $region16: #{ssd_forward.11} parent=0 // pred_region
    _
  $region17: #{ssd_forward.11} parent=0 // pred_fallthru
    _
  // Predicated region
  $region18: #{ssd_forward.11} parent=0 // pred_check
    _
  $region19: #{ssd_forward.11} parent=0 // pred_check_branch
    %199 = sbr.rel (0) target = $region21
  $region20: #{ssd_forward.11} parent=0 // pred_region
    _
  $region21: #{ssd_forward.11} parent=0 // pred_fallthru
    _

// kernel: ssd_forward.14
$region0: #{ssd_forward.14}
  #allocation0 [shape = 'u32[]', space=smem, size = 0x4, offset = 0x4, fixed_abs, tag = 'smem constant byte address 0x4 - core index']
  #allocation1 [shape = 'u32[144,128]{1,0:T(1,128)}', space=vmem, size = 0x12000, scoped, tag = 'internal scratch']
  %s0 = inlined_call_operand.vmem [shape: f32[72,8], index: 0, kind: input, shape index: {}]
  %s1 = inlined_call_operand.vmem [shape: f32[8,42], index: 1, kind: input, shape index: {}]
  %s2 = inlined_call_operand.vmem [shape: f32[1,42], index: 2, kind: input, shape index: {}]
  %s3 = inlined_call_operand.vmem [shape: f32[72,42], index: 3, kind: output, shape index: {}]
  %s4 = sld [smem:[#allocation0]]
  $region22: #{ssd_forward.14} parent=0
    _
  %s6 = ssub.s32 1, %s4
  %s7 = scalar_select 0, %s6, %s4
  // Predicated region
  $region2: #{ssd_forward.14} parent=0 // pred_check
    _
  $region3: #{ssd_forward.14} parent=0 // pred_check_branch
    %9 = sbr.rel (0) target = $region5
  $region4: #{ssd_forward.14} parent=0 // pred_region
    _
  $region5: #{ssd_forward.14} parent=0 // pred_fallthru
    _
  // Predicated region
  $region6: #{ssd_forward.14} parent=0 // pred_check
    _
  $region7: #{ssd_forward.14} parent=0 // pred_check_branch
    %11 = sbr.rel (0) target = $region9
  $region8: #{ssd_forward.14} parent=0 // pred_region
    _
  $region9: #{ssd_forward.14} parent=0 // pred_fallthru
    _
  // Predicated region
  $region10: #{ssd_forward.14} parent=0 // pred_check
    _
  $region11: #{ssd_forward.14} parent=0 // pred_check_branch
    %13 = sbr.rel (0) target = $region13
  $region12: #{ssd_forward.14} parent=0 // pred_region
    _
  $region13: #{ssd_forward.14} parent=0 // pred_fallthru
    _
  %v14 = vld [vmem:[%s0] sm:$0xff]
  %v15 = vld [vmem:[%s0 + $0x8] sm:$0xff]
  %v16 = vld [vmem:[%s0 + $0x10] sm:$0xff]
  %v17 = vld [vmem:[%s0 + $0x18] sm:$0xff]
  %v18 = vld [vmem:[%s0 + $0x20] sm:$0xff]
  %v19 = vld [vmem:[%s0 + $0x28] sm:$0xff]
  %v20 = vld [vmem:[%s0 + $0x30] sm:$0xff]
  %v21 = vld [vmem:[%s0 + $0x38] sm:$0xff]
  %v22 = vld [vmem:[%s0 + $0x40] sm:$0xff]
  %v23 = vld [vmem:[%s1] sm:$0xff]
  %v24 = vld [vmem:[%s2] sm:$0x1]
  %v26 = vlaneseq
  %v27 = vshrl.u32 %v26, 7
  %v28 = vsub.s32 0, %v27
  %v29 = vrot.slane %v24, %v28
  %vm31 = vcmask 64512
  %v33 = vsel %vm31, %v14, 0
  %v36 = vsel %vm31, %v15, 0
  %v39 = vsel %vm31, %v16, 0
  %v42 = vsel %vm31, %v17, 0
  %v45 = vsel %vm31, %v18, 0
  %v48 = vsel %vm31, %v19, 0
  %v51 = vsel %vm31, %v20, 0
  %v54 = vsel %vm31, %v21, 0
  %v57 = vsel %vm31, %v22, 0
  %59 = vmatprep.subr.mxu0 0.0
  %60 = vmatpush1.msra.mxu0 %v23
  %61 = vmatprep.subr.mxu0 0.0
  %62 = vmatpush1.msra.mxu0 0.0
  %63 = vmatprep.subr.mxu0 0.0
  %64 = vmatpush1.msra.mxu0 0.0
  %65 = vmatprep.subr.mxu0 0.0
  %66 = vmatpush1.msra.mxu0 0.0
  %67 = vmatprep.subr.mxu0 0.0
  %68 = vmatpush1.msra.mxu0 0.0
  %69 = vmatprep.subr.mxu0 0.0
  %70 = vmatpush1.msra.mxu0 0.0
  %71 = vmatprep.subr.mxu0 0.0
  %72 = vmatpush1.msra.mxu0 0.0
  %73 = vmatprep.subr.mxu0 0.0
  %74 = vmatpush1.msra.mxu0 0.0
  %75 = vmatprep.subr.mxu0 0.0
  %76 = vmatpush1.msra.mxu0 0.0
  %77 = vmatprep.subr.mxu0 0.0
  %78 = vmatpush1.msra.mxu0 0.0
  %79 = vmatprep.subr.mxu0 0.0
  %80 = vmatpush1.msra.mxu0 0.0
  %81 = vmatprep.subr.mxu0 0.0
  %82 = vmatpush1.msra.mxu0 0.0
  %83 = vmatprep.subr.mxu0 0.0
  %84 = vmatpush1.msra.mxu0 0.0
  %85 = vmatprep.subr.mxu0 0.0
  %86 = vmatpush1.msra.mxu0 0.0
  %87 = vmatprep.subr.mxu0 0.0
  %88 = vmatpush1.msra.mxu0 0.0
  %89 = vmatprep.subr.mxu0 0.0
  %90 = vmatpush1.msra.mxu0 0.0
  %91 = vmatprep.subr.mxu0 0.0
  %92 = vmatpush1.msra.mxu0 0.0
  %93 = vmatprep.subr.mxu0 0.0
  %94 = vmatpush1.msra.mxu0 0.0
  %95 = vmatprep.subr.mxu0 0.0
  %96 = vmatpush1.msra.mxu0 0.0
  %97 = vmatprep.subr.mxu0 0.0
  %98 = vmatpush1.msra.mxu0 0.0
  %99 = vmatprep.subr.mxu0 0.0
  %100 = vmatpush1.msra.mxu0 0.0
  %101 = vmatprep.subr.mxu0 0.0
  %102 = vmatpush1.msra.mxu0 0.0
  %103 = vmatprep.subr.mxu0 0.0
  %104 = vmatpush1.msra.mxu0 0.0
  %105 = vmatprep.subr.mxu0 0.0
  %106 = vmatpush1.msra.mxu0 0.0
  %107 = vmatprep.subr.mxu0 0.0
  %108 = vmatpush1.msra.mxu0 0.0
  %109 = vmatprep.subr.mxu0 0.0
  %110 = vmatpush1.msra.mxu0 0.0
  %111 = vmatprep.subr.mxu0 0.0
  %112 = vmatpush1.msra.mxu0 0.0
  %113 = vmatprep.subr.mxu0 0.0
  %114 = vmatpush1.msra.mxu0 0.0
  %115 = vmatprep.subr.mxu0 0.0
  %116 = vmatpush1.msra.mxu0 0.0
  %117 = vmatprep.subr.mxu0 0.0
  %118 = vmatpush1.msra.mxu0 0.0
  %119 = vmatprep.subr.mxu0 0.0
  %120 = vmatpush1.msra.mxu0 0.0
  %121 = vmatprep.subr.mxu0 0.0
  %122 = vmatpush1.msra.mxu0 0.0
  %123 = vmatprep.mubr.f32.mxu0 0.0
  %124 = vmatmul.mubr.f32.gmra.mrb[0].mxu0 %v33
  %v125 = vpop.f32.mrb[0].mxu0
  %v126 = vadd.f32 %v29, %v125
  %v127 = vpop.f32.mrb[0].mxu0
  %128 = vmatprep.mubr.f32.mxu0 0.0
  %129 = vmatmul.mubr.f32.gmra.mrb[0].mxu0 %v36
  %v130 = vpop.f32.mrb[0].mxu0
  %v131 = vadd.f32 %v29, %v130
  %v132 = vpop.f32.mrb[0].mxu0
  %133 = vmatprep.mubr.f32.mxu0 0.0
  %134 = vmatmul.mubr.f32.gmra.mrb[0].mxu0 %v39
  %v135 = vpop.f32.mrb[0].mxu0
  %v136 = vadd.f32 %v29, %v135
  %v137 = vpop.f32.mrb[0].mxu0
  %138 = vmatprep.mubr.f32.mxu0 0.0
  %139 = vmatmul.mubr.f32.gmra.mrb[0].mxu0 %v42
  %v140 = vpop.f32.mrb[0].mxu0
  %v141 = vadd.f32 %v29, %v140
  %v142 = vpop.f32.mrb[0].mxu0
  %143 = vmatprep.mubr.f32.mxu0 0.0
  %144 = vmatmul.mubr.f32.gmra.mrb[0].mxu0 %v45
  %v145 = vpop.f32.mrb[0].mxu0
  %v146 = vadd.f32 %v29, %v145
  %v147 = vpop.f32.mrb[0].mxu0
  %148 = vmatprep.mubr.f32.mxu0 0.0
  %149 = vmatmul.mubr.f32.gmra.mrb[0].mxu0 %v48
  %v150 = vpop.f32.mrb[0].mxu0
  %v151 = vadd.f32 %v29, %v150
  %v152 = vpop.f32.mrb[0].mxu0
  %153 = vmatprep.mubr.f32.mxu0 0.0
  %154 = vmatmul.mubr.f32.gmra.mrb[0].mxu0 %v51
  %v155 = vpop.f32.mrb[0].mxu0
  %v156 = vadd.f32 %v29, %v155
  %v157 = vpop.f32.mrb[0].mxu0
  %158 = vmatprep.mubr.f32.mxu0 0.0
  %159 = vmatmul.mubr.f32.gmra.mrb[0].mxu0 %v54
  %v160 = vpop.f32.mrb[0].mxu0
  %v161 = vadd.f32 %v29, %v160
  %v162 = vpop.f32.mrb[0].mxu0
  %163 = vmatprep.mubr.f32.mxu0 0.0
  %164 = vmatmul.mubr.f32.gmra.mrb[0].mxu0 %v57
  %v165 = vpop.f32.mrb[0].mxu0
  %v166 = vadd.f32 %v29, %v165
  %v167 = vpop.f32.mrb[0].mxu0
  %168 = vdwg.mxu0
  %vm169 = vcmask 343040
  %170 = vst.msk [vmem:[%s3] sm:$0xff] %vm169, %v126
  %171 = vst.msk [vmem:[%s3 + $0x8] sm:$0xff] %vm169, %v131
  %172 = vst.msk [vmem:[%s3 + $0x10] sm:$0xff] %vm169, %v136
  %173 = vst.msk [vmem:[%s3 + $0x18] sm:$0xff] %vm169, %v141
  %174 = vst.msk [vmem:[%s3 + $0x20] sm:$0xff] %vm169, %v146
  %175 = vst.msk [vmem:[%s3 + $0x28] sm:$0xff] %vm169, %v151
  %176 = vst.msk [vmem:[%s3 + $0x30] sm:$0xff] %vm169, %v156
  %177 = vst.msk [vmem:[%s3 + $0x38] sm:$0xff] %vm169, %v161
  %178 = vst.msk [vmem:[%s3 + $0x40] sm:$0xff] %vm169, %v166
  // Predicated region
  $region14: #{ssd_forward.14} parent=0 // pred_check
    _
  $region15: #{ssd_forward.14} parent=0 // pred_check_branch
    %180 = sbr.rel (0) target = $region17
  $region16: #{ssd_forward.14} parent=0 // pred_region
    _
  $region17: #{ssd_forward.14} parent=0 // pred_fallthru
    _
  // Predicated region
  $region18: #{ssd_forward.14} parent=0 // pred_check
    _
  $region19: #{ssd_forward.14} parent=0 // pred_check_branch
    %182 = sbr.rel (0) target = $region21
  $region20: #{ssd_forward.14} parent=0 // pred_region
    _
  $region21: #{ssd_forward.14} parent=0 // pred_fallthru
    _

// kernel: ssd_forward.13
$region0: #{ssd_forward.13}
  #allocation0 [shape = 'u32[]', space=smem, size = 0x4, offset = 0x4, fixed_abs, tag = 'smem constant byte address 0x4 - core index']
  #allocation1 [shape = 'u32[144,128]{1,0:T(1,128)}', space=vmem, size = 0x12000, scoped, tag = 'internal scratch']
  %s0 = inlined_call_operand.vmem [shape: f32[128,8], index: 0, kind: input, shape index: {}]
  %s1 = inlined_call_operand.vmem [shape: f32[8,42], index: 1, kind: input, shape index: {}]
  %s2 = inlined_call_operand.vmem [shape: f32[1,42], index: 2, kind: input, shape index: {}]
  %s3 = inlined_call_operand.vmem [shape: f32[128,42], index: 3, kind: output, shape index: {}]
  %s4 = sld [smem:[#allocation0]]
  $region22: #{ssd_forward.13} parent=0
    _
  %s6 = ssub.s32 1, %s4
  %s7 = scalar_select 0, %s6, %s4
  // Predicated region
  $region2: #{ssd_forward.13} parent=0 // pred_check
    _
  $region3: #{ssd_forward.13} parent=0 // pred_check_branch
    %9 = sbr.rel (0) target = $region5
  $region4: #{ssd_forward.13} parent=0 // pred_region
    _
  $region5: #{ssd_forward.13} parent=0 // pred_fallthru
    _
  // Predicated region
  $region6: #{ssd_forward.13} parent=0 // pred_check
    _
  $region7: #{ssd_forward.13} parent=0 // pred_check_branch
    %11 = sbr.rel (0) target = $region9
  $region8: #{ssd_forward.13} parent=0 // pred_region
    _
  $region9: #{ssd_forward.13} parent=0 // pred_fallthru
    _
  // Predicated region
  $region10: #{ssd_forward.13} parent=0 // pred_check
    _
  $region11: #{ssd_forward.13} parent=0 // pred_check_branch
    %13 = sbr.rel (0) target = $region13
  $region12: #{ssd_forward.13} parent=0 // pred_region
    _
  $region13: #{ssd_forward.13} parent=0 // pred_fallthru
    _
  %v14 = vld [vmem:[%s0] sm:$0xff]
  %v15 = vld [vmem:[%s0 + $0x8] sm:$0xff]
  %v16 = vld [vmem:[%s0 + $0x10] sm:$0xff]
  %v17 = vld [vmem:[%s0 + $0x18] sm:$0xff]
  %v18 = vld [vmem:[%s0 + $0x20] sm:$0xff]
  %v19 = vld [vmem:[%s0 + $0x28] sm:$0xff]
  %v20 = vld [vmem:[%s0 + $0x30] sm:$0xff]
  %v21 = vld [vmem:[%s0 + $0x38] sm:$0xff]
  %v22 = vld [vmem:[%s0 + $0x40] sm:$0xff]
  %v23 = vld [vmem:[%s0 + $0x48] sm:$0xff]
  %v24 = vld [vmem:[%s0 + $0x50] sm:$0xff]
  %v25 = vld [vmem:[%s0 + $0x58] sm:$0xff]
  %v26 = vld [vmem:[%s0 + $0x60] sm:$0xff]
  %v27 = vld [vmem:[%s0 + $0x68] sm:$0xff]
  %v28 = vld [vmem:[%s0 + $0x70] sm:$0xff]
  %v29 = vld [vmem:[%s0 + $0x78] sm:$0xff]
  %v30 = vld [vmem:[%s1] sm:$0xff]
  %v31 = vld [vmem:[%s2] sm:$0x1]
  %v33 = vlaneseq
  %v34 = vshrl.u32 %v33, 7
  %v35 = vsub.s32 0, %v34
  %v36 = vrot.slane %v31, %v35
  %vm38 = vcmask 64512
  %v40 = vsel %vm38, %v14, 0
  %v43 = vsel %vm38, %v15, 0
  %v46 = vsel %vm38, %v16, 0
  %v49 = vsel %vm38, %v17, 0
  %v52 = vsel %vm38, %v18, 0
  %v55 = vsel %vm38, %v19, 0
  %v58 = vsel %vm38, %v20, 0
  %v61 = vsel %vm38, %v21, 0
  %v64 = vsel %vm38, %v22, 0
  %v67 = vsel %vm38, %v23, 0
  %v70 = vsel %vm38, %v24, 0
  %v73 = vsel %vm38, %v25, 0
  %v76 = vsel %vm38, %v26, 0
  %v79 = vsel %vm38, %v27, 0
  %v82 = vsel %vm38, %v28, 0
  %v85 = vsel %vm38, %v29, 0
  %87 = vmatprep.subr.mxu0 0.0
  %88 = vmatpush1.msra.mxu0 %v30
  %89 = vmatprep.subr.mxu0 0.0
  %90 = vmatpush1.msra.mxu0 0.0
  %91 = vmatprep.subr.mxu0 0.0
  %92 = vmatpush1.msra.mxu0 0.0
  %93 = vmatprep.subr.mxu0 0.0
  %94 = vmatpush1.msra.mxu0 0.0
  %95 = vmatprep.subr.mxu0 0.0
  %96 = vmatpush1.msra.mxu0 0.0
  %97 = vmatprep.subr.mxu0 0.0
  %98 = vmatpush1.msra.mxu0 0.0
  %99 = vmatprep.subr.mxu0 0.0
  %100 = vmatpush1.msra.mxu0 0.0
  %101 = vmatprep.subr.mxu0 0.0
  %102 = vmatpush1.msra.mxu0 0.0
  %103 = vmatprep.subr.mxu0 0.0
  %104 = vmatpush1.msra.mxu0 0.0
  %105 = vmatprep.subr.mxu0 0.0
  %106 = vmatpush1.msra.mxu0 0.0
  %107 = vmatprep.subr.mxu0 0.0
  %108 = vmatpush1.msra.mxu0 0.0
  %109 = vmatprep.subr.mxu0 0.0
  %110 = vmatpush1.msra.mxu0 0.0
  %111 = vmatprep.subr.mxu0 0.0
  %112 = vmatpush1.msra.mxu0 0.0
  %113 = vmatprep.subr.mxu0 0.0
  %114 = vmatpush1.msra.mxu0 0.0
  %115 = vmatprep.subr.mxu0 0.0
  %116 = vmatpush1.msra.mxu0 0.0
  %117 = vmatprep.subr.mxu0 0.0
  %118 = vmatpush1.msra.mxu0 0.0
  %119 = vmatprep.subr.mxu0 0.0
  %120 = vmatpush1.msra.mxu0 0.0
  %121 = vmatprep.subr.mxu0 0.0
  %122 = vmatpush1.msra.mxu0 0.0
  %123 = vmatprep.subr.mxu0 0.0
  %124 = vmatpush1.msra.mxu0 0.0
  %125 = vmatprep.subr.mxu0 0.0
  %126 = vmatpush1.msra.mxu0 0.0
  %127 = vmatprep.subr.mxu0 0.0
  %128 = vmatpush1.msra.mxu0 0.0
  %129 = vmatprep.subr.mxu0 0.0
  %130 = vmatpush1.msra.mxu0 0.0
  %131 = vmatprep.subr.mxu0 0.0
  %132 = vmatpush1.msra.mxu0 0.0
  %133 = vmatprep.subr.mxu0 0.0
  %134 = vmatpush1.msra.mxu0 0.0
  %135 = vmatprep.subr.mxu0 0.0
  %136 = vmatpush1.msra.mxu0 0.0
  %137 = vmatprep.subr.mxu0 0.0
  %138 = vmatpush1.msra.mxu0 0.0
  %139 = vmatprep.subr.mxu0 0.0
  %140 = vmatpush1.msra.mxu0 0.0
  %141 = vmatprep.subr.mxu0 0.0
  %142 = vmatpush1.msra.mxu0 0.0
  %143 = vmatprep.subr.mxu0 0.0
  %144 = vmatpush1.msra.mxu0 0.0
  %145 = vmatprep.subr.mxu0 0.0
  %146 = vmatpush1.msra.mxu0 0.0
  %147 = vmatprep.subr.mxu0 0.0
  %148 = vmatpush1.msra.mxu0 0.0
  %149 = vmatprep.subr.mxu0 0.0
  %150 = vmatpush1.msra.mxu0 0.0
  %151 = vmatprep.mubr.f32.mxu0 0.0
  %152 = vmatmul.mubr.f32.gmra.mrb[0].mxu0 %v40
  %v153 = vpop.f32.mrb[0].mxu0
  %v154 = vadd.f32 %v36, %v153
  %v155 = vpop.f32.mrb[0].mxu0
  %156 = vmatprep.mubr.f32.mxu0 0.0
  %157 = vmatmul.mubr.f32.gmra.mrb[0].mxu0 %v43
  %v158 = vpop.f32.mrb[0].mxu0
  %v159 = vadd.f32 %v36, %v158
  %v160 = vpop.f32.mrb[0].mxu0
  %161 = vmatprep.mubr.f32.mxu0 0.0
  %162 = vmatmul.mubr.f32.gmra.mrb[0].mxu0 %v46
  %v163 = vpop.f32.mrb[0].mxu0
  %v164 = vadd.f32 %v36, %v163
  %v165 = vpop.f32.mrb[0].mxu0
  %166 = vmatprep.mubr.f32.mxu0 0.0
  %167 = vmatmul.mubr.f32.gmra.mrb[0].mxu0 %v49
  %v168 = vpop.f32.mrb[0].mxu0
  %v169 = vadd.f32 %v36, %v168
  %v170 = vpop.f32.mrb[0].mxu0
  %171 = vmatprep.mubr.f32.mxu0 0.0
  %172 = vmatmul.mubr.f32.gmra.mrb[0].mxu0 %v52
  %v173 = vpop.f32.mrb[0].mxu0
  %v174 = vadd.f32 %v36, %v173
  %v175 = vpop.f32.mrb[0].mxu0
  %176 = vmatprep.mubr.f32.mxu0 0.0
  %177 = vmatmul.mubr.f32.gmra.mrb[0].mxu0 %v55
  %v178 = vpop.f32.mrb[0].mxu0
  %v179 = vadd.f32 %v36, %v178
  %v180 = vpop.f32.mrb[0].mxu0
  %181 = vmatprep.mubr.f32.mxu0 0.0
  %182 = vmatmul.mubr.f32.gmra.mrb[0].mxu0 %v58
  %v183 = vpop.f32.mrb[0].mxu0
  %v184 = vadd.f32 %v36, %v183
  %v185 = vpop.f32.mrb[0].mxu0
  %186 = vmatprep.mubr.f32.mxu0 0.0
  %187 = vmatmul.mubr.f32.gmra.mrb[0].mxu0 %v61
  %v188 = vpop.f32.mrb[0].mxu0
  %v189 = vadd.f32 %v36, %v188
  %v190 = vpop.f32.mrb[0].mxu0
  %191 = vmatprep.mubr.f32.mxu0 0.0
  %192 = vmatmul.mubr.f32.gmra.mrb[0].mxu0 %v64
  %v193 = vpop.f32.mrb[0].mxu0
  %v194 = vadd.f32 %v36, %v193
  %v195 = vpop.f32.mrb[0].mxu0
  %196 = vmatprep.mubr.f32.mxu0 0.0
  %197 = vmatmul.mubr.f32.gmra.mrb[0].mxu0 %v67
  %v198 = vpop.f32.mrb[0].mxu0
  %v199 = vadd.f32 %v36, %v198
  %v200 = vpop.f32.mrb[0].mxu0
  %201 = vmatprep.mubr.f32.mxu0 0.0
  %202 = vmatmul.mubr.f32.gmra.mrb[0].mxu0 %v70
  %v203 = vpop.f32.mrb[0].mxu0
  %v204 = vadd.f32 %v36, %v203
  %v205 = vpop.f32.mrb[0].mxu0
  %206 = vmatprep.mubr.f32.mxu0 0.0
  %207 = vmatmul.mubr.f32.gmra.mrb[0].mxu0 %v73
  %v208 = vpop.f32.mrb[0].mxu0
  %v209 = vadd.f32 %v36, %v208
  %v210 = vpop.f32.mrb[0].mxu0
  %211 = vmatprep.mubr.f32.mxu0 0.0
  %212 = vmatmul.mubr.f32.gmra.mrb[0].mxu0 %v76
  %v213 = vpop.f32.mrb[0].mxu0
  %v214 = vadd.f32 %v36, %v213
  %v215 = vpop.f32.mrb[0].mxu0
  %216 = vmatprep.mubr.f32.mxu0 0.0
  %217 = vmatmul.mubr.f32.gmra.mrb[0].mxu0 %v79
  %v218 = vpop.f32.mrb[0].mxu0
  %v219 = vadd.f32 %v36, %v218
  %v220 = vpop.f32.mrb[0].mxu0
  %221 = vmatprep.mubr.f32.mxu0 0.0
  %222 = vmatmul.mubr.f32.gmra.mrb[0].mxu0 %v82
  %v223 = vpop.f32.mrb[0].mxu0
  %v224 = vadd.f32 %v36, %v223
  %v225 = vpop.f32.mrb[0].mxu0
  %226 = vmatprep.mubr.f32.mxu0 0.0
  %227 = vmatmul.mubr.f32.gmra.mrb[0].mxu0 %v85
  %v228 = vpop.f32.mrb[0].mxu0
  %v229 = vadd.f32 %v36, %v228
  %v230 = vpop.f32.mrb[0].mxu0
  %231 = vdwg.mxu0
  %vm232 = vcmask 343040
  %233 = vst.msk [vmem:[%s3] sm:$0xff] %vm232, %v154
  %234 = vst.msk [vmem:[%s3 + $0x8] sm:$0xff] %vm232, %v159
  %235 = vst.msk [vmem:[%s3 + $0x10] sm:$0xff] %vm232, %v164
  %236 = vst.msk [vmem:[%s3 + $0x18] sm:$0xff] %vm232, %v169
  %237 = vst.msk [vmem:[%s3 + $0x20] sm:$0xff] %vm232, %v174
  %238 = vst.msk [vmem:[%s3 + $0x28] sm:$0xff] %vm232, %v179
  %239 = vst.msk [vmem:[%s3 + $0x30] sm:$0xff] %vm232, %v184
  %240 = vst.msk [vmem:[%s3 + $0x38] sm:$0xff] %vm232, %v189
  %241 = vst.msk [vmem:[%s3 + $0x40] sm:$0xff] %vm232, %v194
  %242 = vst.msk [vmem:[%s3 + $0x48] sm:$0xff] %vm232, %v199
  %243 = vst.msk [vmem:[%s3 + $0x50] sm:$0xff] %vm232, %v204
  %244 = vst.msk [vmem:[%s3 + $0x58] sm:$0xff] %vm232, %v209
  %245 = vst.msk [vmem:[%s3 + $0x60] sm:$0xff] %vm232, %v214
  %246 = vst.msk [vmem:[%s3 + $0x68] sm:$0xff] %vm232, %v219
  %247 = vst.msk [vmem:[%s3 + $0x70] sm:$0xff] %vm232, %v224
  %248 = vst.msk [vmem:[%s3 + $0x78] sm:$0xff] %vm232, %v229
  // Predicated region
  $region14: #{ssd_forward.13} parent=0 // pred_check
    _
  $region15: #{ssd_forward.13} parent=0 // pred_check_branch
    %250 = sbr.rel (0) target = $region17
  $region16: #{ssd_forward.13} parent=0 // pred_region
    _
  $region17: #{ssd_forward.13} parent=0 // pred_fallthru
    _
  // Predicated region
  $region18: #{ssd_forward.13} parent=0 // pred_check
    _
  $region19: #{ssd_forward.13} parent=0 // pred_check_branch
    %252 = sbr.rel (0) target = $region21
  $region20: #{ssd_forward.13} parent=0 // pred_region
    _
  $region21: #{ssd_forward.13} parent=0 // pred_fallthru
    _

// kernel: ssd_forward.12
$region0: #{ssd_forward.12}
  #allocation0 [shape = 'u32[]', space=smem, size = 0x4, offset = 0x4, fixed_abs, tag = 'smem constant byte address 0x4 - core index']
  #allocation1 [shape = 'u32[144,128]{1,0:T(1,128)}', space=vmem, size = 0x12000, scoped, tag = 'internal scratch']
  %s0 = inlined_call_operand.vmem [shape: f32[512,8], index: 0, kind: input, shape index: {}]
  %s1 = inlined_call_operand.vmem [shape: f32[8,42], index: 1, kind: input, shape index: {}]
  %s2 = inlined_call_operand.vmem [shape: f32[1,42], index: 2, kind: input, shape index: {}]
  %s3 = inlined_call_operand.vmem [shape: f32[512,42], index: 3, kind: output, shape index: {}]
  %s4 = sld [smem:[#allocation0]]
  $region22: #{ssd_forward.12} parent=0
    _
  %s6 = ssub.s32 1, %s4
  %s7 = scalar_select 0, %s6, %s4
  // Predicated region
  $region2: #{ssd_forward.12} parent=0 // pred_check
    _
  $region3: #{ssd_forward.12} parent=0 // pred_check_branch
    %9 = sbr.rel (0) target = $region5
  $region4: #{ssd_forward.12} parent=0 // pred_region
    _
  $region5: #{ssd_forward.12} parent=0 // pred_fallthru
    _
  // Predicated region
  $region6: #{ssd_forward.12} parent=0 // pred_check
    _
  $region7: #{ssd_forward.12} parent=0 // pred_check_branch
    %11 = sbr.rel (0) target = $region9
  $region8: #{ssd_forward.12} parent=0 // pred_region
    _
  $region9: #{ssd_forward.12} parent=0 // pred_fallthru
    _
  // Predicated region
  $region10: #{ssd_forward.12} parent=0 // pred_check
    _
  $region11: #{ssd_forward.12} parent=0 // pred_check_branch
    %13 = sbr.rel (0) target = $region13
  $region12: #{ssd_forward.12} parent=0 // pred_region
    _
  $region13: #{ssd_forward.12} parent=0 // pred_fallthru
    _
  %v14 = vld [vmem:[%s0] sm:$0xff]
  %v15 = vld [vmem:[%s0 + $0x8] sm:$0xff]
  %v16 = vld [vmem:[%s0 + $0x10] sm:$0xff]
  %v17 = vld [vmem:[%s0 + $0x18] sm:$0xff]
  %v18 = vld [vmem:[%s0 + $0x20] sm:$0xff]
  %v19 = vld [vmem:[%s0 + $0x28] sm:$0xff]
  %v20 = vld [vmem:[%s0 + $0x30] sm:$0xff]
  %v21 = vld [vmem:[%s0 + $0x38] sm:$0xff]
  %v22 = vld [vmem:[%s0 + $0x40] sm:$0xff]
  %v23 = vld [vmem:[%s0 + $0x48] sm:$0xff]
  %v24 = vld [vmem:[%s0 + $0x50] sm:$0xff]
  %v25 = vld [vmem:[%s0 + $0x58] sm:$0xff]
  %v26 = vld [vmem:[%s0 + $0x60] sm:$0xff]
  %v27 = vld [vmem:[%s0 + $0x68] sm:$0xff]
  %v28 = vld [vmem:[%s0 + $0x70] sm:$0xff]
  %v29 = vld [vmem:[%s0 + $0x78] sm:$0xff]
  %v30 = vld [vmem:[%s0 + $0x80] sm:$0xff]
  %v31 = vld [vmem:[%s0 + $0x88] sm:$0xff]
  %v32 = vld [vmem:[%s0 + $0x90] sm:$0xff]
  %v33 = vld [vmem:[%s0 + $0x98] sm:$0xff]
  %v34 = vld [vmem:[%s0 + $0xa0] sm:$0xff]
  %v35 = vld [vmem:[%s0 + $0xa8] sm:$0xff]
  %v36 = vld [vmem:[%s0 + $0xb0] sm:$0xff]
  %v37 = vld [vmem:[%s0 + $0xb8] sm:$0xff]
  %v38 = vld [vmem:[%s0 + $0xc0] sm:$0xff]
  %v39 = vld [vmem:[%s0 + $0xc8] sm:$0xff]
  %v40 = vld [vmem:[%s0 + $0xd0] sm:$0xff]
  %v41 = vld [vmem:[%s0 + $0xd8] sm:$0xff]
  %v42 = vld [vmem:[%s0 + $0xe0] sm:$0xff]
  %v43 = vld [vmem:[%s0 + $0xe8] sm:$0xff]
  %v44 = vld [vmem:[%s0 + $0xf0] sm:$0xff]
  %v45 = vld [vmem:[%s0 + $0xf8] sm:$0xff]
  %v46 = vld [vmem:[%s0 + $0x100] sm:$0xff]
  %v47 = vld [vmem:[%s0 + $0x108] sm:$0xff]
  %v48 = vld [vmem:[%s0 + $0x110] sm:$0xff]
  %v49 = vld [vmem:[%s0 + $0x118] sm:$0xff]
  %v50 = vld [vmem:[%s0 + $0x120] sm:$0xff]
  %v51 = vld [vmem:[%s0 + $0x128] sm:$0xff]
  %v52 = vld [vmem:[%s0 + $0x130] sm:$0xff]
  %v53 = vld [vmem:[%s0 + $0x138] sm:$0xff]
  %v54 = vld [vmem:[%s0 + $0x140] sm:$0xff]
  %v55 = vld [vmem:[%s0 + $0x148] sm:$0xff]
  %v56 = vld [vmem:[%s0 + $0x150] sm:$0xff]
  %v57 = vld [vmem:[%s0 + $0x158] sm:$0xff]
  %v58 = vld [vmem:[%s0 + $0x160] sm:$0xff]
  %v59 = vld [vmem:[%s0 + $0x168] sm:$0xff]
  %v60 = vld [vmem:[%s0 + $0x170] sm:$0xff]
  %v61 = vld [vmem:[%s0 + $0x178] sm:$0xff]
  %v62 = vld [vmem:[%s0 + $0x180] sm:$0xff]
  %v63 = vld [vmem:[%s0 + $0x188] sm:$0xff]
  %v64 = vld [vmem:[%s0 + $0x190] sm:$0xff]
  %v65 = vld [vmem:[%s0 + $0x198] sm:$0xff]
  %v66 = vld [vmem:[%s0 + $0x1a0] sm:$0xff]
  %v67 = vld [vmem:[%s0 + $0x1a8] sm:$0xff]
  %v68 = vld [vmem:[%s0 + $0x1b0] sm:$0xff]
  %v69 = vld [vmem:[%s0 + $0x1b8] sm:$0xff]
  %v70 = vld [vmem:[%s0 + $0x1c0] sm:$0xff]
  %v71 = vld [vmem:[%s0 + $0x1c8] sm:$0xff]
  %v72 = vld [vmem:[%s0 + $0x1d0] sm:$0xff]
  %v73 = vld [vmem:[%s0 + $0x1d8] sm:$0xff]
  %v74 = vld [vmem:[%s0 + $0x1e0] sm:$0xff]
  %v75 = vld [vmem:[%s0 + $0x1e8] sm:$0xff]
  %v76 = vld [vmem:[%s0 + $0x1f0] sm:$0xff]
  %v77 = vld [vmem:[%s0 + $0x1f8] sm:$0xff]
  %v78 = vld [vmem:[%s1] sm:$0xff]
  %v79 = vld [vmem:[%s2] sm:$0x1]
  %v81 = vlaneseq
  %v82 = vshrl.u32 %v81, 7
  %v83 = vsub.s32 0, %v82
  %v84 = vrot.slane %v79, %v83
  %vm86 = vcmask 64512
  %v88 = vsel %vm86, %v14, 0
  %v91 = vsel %vm86, %v15, 0
  %v94 = vsel %vm86, %v16, 0
  %v97 = vsel %vm86, %v17, 0
  %v100 = vsel %vm86, %v18, 0
  %v103 = vsel %vm86, %v19, 0
  %v106 = vsel %vm86, %v20, 0
  %v109 = vsel %vm86, %v21, 0
  %v112 = vsel %vm86, %v22, 0
  %v115 = vsel %vm86, %v23, 0
  %v118 = vsel %vm86, %v24, 0
  %v121 = vsel %vm86, %v25, 0
  %v124 = vsel %vm86, %v26, 0
  %v127 = vsel %vm86, %v27, 0
  %v130 = vsel %vm86, %v28, 0
  %v133 = vsel %vm86, %v29, 0
  %v136 = vsel %vm86, %v30, 0
  %v139 = vsel %vm86, %v31, 0
  %v142 = vsel %vm86, %v32, 0
  %v145 = vsel %vm86, %v33, 0
  %v148 = vsel %vm86, %v34, 0
  %v151 = vsel %vm86, %v35, 0
  %v154 = vsel %vm86, %v36, 0
  %v157 = vsel %vm86, %v37, 0
  %v160 = vsel %vm86, %v38, 0
  %v163 = vsel %vm86, %v39, 0
  %v166 = vsel %vm86, %v40, 0
  %v169 = vsel %vm86, %v41, 0
  %v172 = vsel %vm86, %v42, 0
  %v175 = vsel %vm86, %v43, 0
  %v178 = vsel %vm86, %v44, 0
  %v181 = vsel %vm86, %v45, 0
  %v184 = vsel %vm86, %v46, 0
  %v187 = vsel %vm86, %v47, 0
  %v190 = vsel %vm86, %v48, 0
  %v193 = vsel %vm86, %v49, 0
  %v196 = vsel %vm86, %v50, 0
  %v199 = vsel %vm86, %v51, 0
  %v202 = vsel %vm86, %v52, 0
  %v205 = vsel %vm86, %v53, 0
  %v208 = vsel %vm86, %v54, 0
  %v211 = vsel %vm86, %v55, 0
  %v214 = vsel %vm86, %v56, 0
  %v217 = vsel %vm86, %v57, 0
  %v220 = vsel %vm86, %v58, 0
  %v223 = vsel %vm86, %v59, 0
  %v226 = vsel %vm86, %v60, 0
  %v229 = vsel %vm86, %v61, 0
  %v232 = vsel %vm86, %v62, 0
  %v235 = vsel %vm86, %v63, 0
  %v238 = vsel %vm86, %v64, 0
  %v241 = vsel %vm86, %v65, 0
  %v244 = vsel %vm86, %v66, 0
  %v247 = vsel %vm86, %v67, 0
  %v250 = vsel %vm86, %v68, 0
  %v253 = vsel %vm86, %v69, 0
  %v256 = vsel %vm86, %v70, 0
  %v259 = vsel %vm86, %v71, 0
  %v262 = vsel %vm86, %v72, 0
  %v265 = vsel %vm86, %v73, 0
  %v268 = vsel %vm86, %v74, 0
  %v271 = vsel %vm86, %v75, 0
  %v274 = vsel %vm86, %v76, 0
  %v277 = vsel %vm86, %v77, 0
  %279 = vmatprep.subr.mxu0 0.0
  %280 = vmatpush1.msra.mxu0 %v78
  %281 = vmatprep.subr.mxu0 0.0
  %282 = vmatpush1.msra.mxu0 0.0
  %283 = vmatprep.subr.mxu0 0.0
  %284 = vmatpush1.msra.mxu0 0.0
  %285 = vmatprep.subr.mxu0 0.0
  %286 = vmatpush1.msra.mxu0 0.0
  %287 = vmatprep.subr.mxu0 0.0
  %288 = vmatpush1.msra.mxu0 0.0
  %289 = vmatprep.subr.mxu0 0.0
  %290 = vmatpush1.msra.mxu0 0.0
  %291 = vmatprep.subr.mxu0 0.0
  %292 = vmatpush1.msra.mxu0 0.0
  %293 = vmatprep.subr.mxu0 0.0
  %294 = vmatpush1.msra.mxu0 0.0
  %295 = vmatprep.subr.mxu0 0.0
  %296 = vmatpush1.msra.mxu0 0.0
  %297 = vmatprep.subr.mxu0 0.0
  %298 = vmatpush1.msra.mxu0 0.0
  %299 = vmatprep.subr.mxu0 0.0
  %300 = vmatpush1.msra.mxu0 0.0
  %301 = vmatprep.subr.mxu0 0.0
  %302 = vmatpush1.msra.mxu0 0.0
  %303 = vmatprep.subr.mxu0 0.0
  %304 = vmatpush1.msra.mxu0 0.0
  %305 = vmatprep.subr.mxu0 0.0
  %306 = vmatpush1.msra.mxu0 0.0
  %307 = vmatprep.subr.mxu0 0.0
  %308 = vmatpush1.msra.mxu0 0.0
  %309 = vmatprep.subr.mxu0 0.0
  %310 = vmatpush1.msra.mxu0 0.0
  %311 = vmatprep.subr.mxu0 0.0
  %312 = vmatpush1.msra.mxu0 0.0
  %313 = vmatprep.subr.mxu0 0.0
  %314 = vmatpush1.msra.mxu0 0.0
  %315 = vmatprep.subr.mxu0 0.0
  %316 = vmatpush1.msra.mxu0 0.0
  %317 = vmatprep.subr.mxu0 0.0
  %318 = vmatpush1.msra.mxu0 0.0
  %319 = vmatprep.subr.mxu0 0.0
  %320 = vmatpush1.msra.mxu0 0.0
  %321 = vmatprep.subr.mxu0 0.0
  %322 = vmatpush1.msra.mxu0 0.0
  %323 = vmatprep.subr.mxu0 0.0
  %324 = vmatpush1.msra.mxu0 0.0
  %325 = vmatprep.subr.mxu0 0.0
  %326 = vmatpush1.msra.mxu0 0.0
  %327 = vmatprep.subr.mxu0 0.0
  %328 = vmatpush1.msra.mxu0 0.0
  %329 = vmatprep.subr.mxu0 0.0
  %330 = vmatpush1.msra.mxu0 0.0
  %331 = vmatprep.subr.mxu0 0.0
  %332 = vmatpush1.msra.mxu0 0.0
  %333 = vmatprep.subr.mxu0 0.0
  %334 = vmatpush1.msra.mxu0 0.0
  %335 = vmatprep.subr.mxu0 0.0
  %336 = vmatpush1.msra.mxu0 0.0
  %337 = vmatprep.subr.mxu0 0.0
  %338 = vmatpush1.msra.mxu0 0.0
  %339 = vmatprep.subr.mxu0 0.0
  %340 = vmatpush1.msra.mxu0 0.0
  %341 = vmatprep.subr.mxu0 0.0
  %342 = vmatpush1.msra.mxu0 0.0
  %343 = vmatprep.mubr.f32.mxu0 0.0
  %344 = vmatmul.mubr.f32.gmra.mrb[0].mxu0 %v88
  %v345 = vpop.f32.mrb[0].mxu0
  %v346 = vadd.f32 %v84, %v345
  %v347 = vpop.f32.mrb[0].mxu0
  %348 = vmatprep.mubr.f32.mxu0 0.0
  %349 = vmatmul.mubr.f32.gmra.mrb[0].mxu0 %v91
  %v350 = vpop.f32.mrb[0].mxu0
  %v351 = vadd.f32 %v84, %v350
  %v352 = vpop.f32.mrb[0].mxu0
  %353 = vmatprep.mubr.f32.mxu0 0.0
  %354 = vmatmul.mubr.f32.gmra.mrb[0].mxu0 %v94
  %v355 = vpop.f32.mrb[0].mxu0
  %v356 = vadd.f32 %v84, %v355
  %v357 = vpop.f32.mrb[0].mxu0
  %358 = vmatprep.mubr.f32.mxu0 0.0
  %359 = vmatmul.mubr.f32.gmra.mrb[0].mxu0 %v97
  %v360 = vpop.f32.mrb[0].mxu0
  %v361 = vadd.f32 %v84, %v360
  %v362 = vpop.f32.mrb[0].mxu0
  %363 = vmatprep.mubr.f32.mxu0 0.0
  %364 = vmatmul.mubr.f32.gmra.mrb[0].mxu0 %v100
  %v365 = vpop.f32.mrb[0].mxu0
  %v366 = vadd.f32 %v84, %v365
  %v367 = vpop.f32.mrb[0].mxu0
  %368 = vmatprep.mubr.f32.mxu0 0.0
  %369 = vmatmul.mubr.f32.gmra.mrb[0].mxu0 %v103
  %v370 = vpop.f32.mrb[0].mxu0
  %v371 = vadd.f32 %v84, %v370
  %v372 = vpop.f32.mrb[0].mxu0
  %373 = vmatprep.mubr.f32.mxu0 0.0
  %374 = vmatmul.mubr.f32.gmra.mrb[0].mxu0 %v106
  %v375 = vpop.f32.mrb[0].mxu0
  %v376 = vadd.f32 %v84, %v375
  %v377 = vpop.f32.mrb[0].mxu0
  %378 = vmatprep.mubr.f32.mxu0 0.0
  %379 = vmatmul.mubr.f32.gmra.mrb[0].mxu0 %v109
  %v380 = vpop.f32.mrb[0].mxu0
  %v381 = vadd.f32 %v84, %v380
  %v382 = vpop.f32.mrb[0].mxu0
  %383 = vmatprep.mubr.f32.mxu0 0.0
  %384 = vmatmul.mubr.f32.gmra.mrb[0].mxu0 %v112
  %v385 = vpop.f32.mrb[0].mxu0
  %v386 = vadd.f32 %v84, %v385
  %v387 = vpop.f32.mrb[0].mxu0
  %388 = vmatprep.mubr.f32.mxu0 0.0
  %389 = vmatmul.mubr.f32.gmra.mrb[0].mxu0 %v115
  %v390 = vpop.f32.mrb[0].mxu0
  %v391 = vadd.f32 %v84, %v390
  %v392 = vpop.f32.mrb[0].mxu0
  %393 = vmatprep.mubr.f32.mxu0 0.0
  %394 = vmatmul.mubr.f32.gmra.mrb[0].mxu0 %v118
  %v395 = vpop.f32.mrb[0].mxu0
  %v396 = vadd.f32 %v84, %v395
  %v397 = vpop.f32.mrb[0].mxu0
  %398 = vmatprep.mubr.f32.mxu0 0.0
  %399 = vmatmul.mubr.f32.gmra.mrb[0].mxu0 %v121
  %v400 = vpop.f32.mrb[0].mxu0
  %v401 = vadd.f32 %v84, %v400
  %v402 = vpop.f32.mrb[0].mxu0
  %403 = vmatprep.mubr.f32.mxu0 0.0
  %404 = vmatmul.mubr.f32.gmra.mrb[0].mxu0 %v124
  %v405 = vpop.f32.mrb[0].mxu0
  %v406 = vadd.f32 %v84, %v405
  %v407 = vpop.f32.mrb[0].mxu0
  %408 = vmatprep.mubr.f32.mxu0 0.0
  %409 = vmatmul.mubr.f32.gmra.mrb[0].mxu0 %v127
  %v410 = vpop.f32.mrb[0].mxu0
  %v411 = vadd.f32 %v84, %v410
  %v412 = vpop.f32.mrb[0].mxu0
  %413 = vmatprep.mubr.f32.mxu0 0.0
  %414 = vmatmul.mubr.f32.gmra.mrb[0].mxu0 %v130
  %v415 = vpop.f32.mrb[0].mxu0
  %v416 = vadd.f32 %v84, %v415
  %v417 = vpop.f32.mrb[0].mxu0
  %418 = vmatprep.mubr.f32.mxu0 0.0
  %419 = vmatmul.mubr.f32.gmra.mrb[0].mxu0 %v133
  %v420 = vpop.f32.mrb[0].mxu0
  %v421 = vadd.f32 %v84, %v420
  %v422 = vpop.f32.mrb[0].mxu0
  %423 = vmatprep.mubr.f32.mxu0 0.0
  %424 = vmatmul.mubr.f32.gmra.mrb[0].mxu0 %v136
  %v425 = vpop.f32.mrb[0].mxu0
  %v426 = vadd.f32 %v84, %v425
  %v427 = vpop.f32.mrb[0].mxu0
  %428 = vmatprep.mubr.f32.mxu0 0.0
  %429 = vmatmul.mubr.f32.gmra.mrb[0].mxu0 %v139
  %v430 = vpop.f32.mrb[0].mxu0
  %v431 = vadd.f32 %v84, %v430
  %v432 = vpop.f32.mrb[0].mxu0
  %433 = vmatprep.mubr.f32.mxu0 0.0
  %434 = vmatmul.mubr.f32.gmra.mrb[0].mxu0 %v142
  %v435 = vpop.f32.mrb[0].mxu0
  %v436 = vadd.f32 %v84, %v435
  %v437 = vpop.f32.mrb[0].mxu0
  %438 = vmatprep.mubr.f32.mxu0 0.0
  %439 = vmatmul.mubr.f32.gmra.mrb[0].mxu0 %v145
  %v440 = vpop.f32.mrb[0].mxu0
  %v441 = vadd.f32 %v84, %v440
  %v442 = vpop.f32.mrb[0].mxu0
  %443 = vmatprep.mubr.f32.mxu0 0.0
  %444 = vmatmul.mubr.f32.gmra.mrb[0].mxu0 %v148
  %v445 = vpop.f32.mrb[0].mxu0
  %v446 = vadd.f32 %v84, %v445
  %v447 = vpop.f32.mrb[0].mxu0
  %448 = vmatprep.mubr.f32.mxu0 0.0
  %449 = vmatmul.mubr.f32.gmra.mrb[0].mxu0 %v151
  %v450 = vpop.f32.mrb[0].mxu0
  %v451 = vadd.f32 %v84, %v450
  %v452 = vpop.f32.mrb[0].mxu0
  %453 = vmatprep.mubr.f32.mxu0 0.0
  %454 = vmatmul.mubr.f32.gmra.mrb[0].mxu0 %v154
  %v455 = vpop.f32.mrb[0].mxu0
  %v456 = vadd.f32 %v84, %v455
  %v457 = vpop.f32.mrb[0].mxu0
  %458 = vmatprep.mubr.f32.mxu0 0.0
  %459 = vmatmul.mubr.f32.gmra.mrb[0].mxu0 %v157
  %v460 = vpop.f32.mrb[0].mxu0
  %v461 = vadd.f32 %v84, %v460
  %v462 = vpop.f32.mrb[0].mxu0
  %463 = vmatprep.mubr.f32.mxu0 0.0
  %464 = vmatmul.mubr.f32.gmra.mrb[0].mxu0 %v160
  %v465 = vpop.f32.mrb[0].mxu0
  %v466 = vadd.f32 %v84, %v465
  %v467 = vpop.f32.mrb[0].mxu0
  %468 = vmatprep.mubr.f32.mxu0 0.0
  %469 = vmatmul.mubr.f32.gmra.mrb[0].mxu0 %v163
  %v470 = vpop.f32.mrb[0].mxu0
  %v471 = vadd.f32 %v84, %v470
  %v472 = vpop.f32.mrb[0].mxu0
  %473 = vmatprep.mubr.f32.mxu0 0.0
  %474 = vmatmul.mubr.f32.gmra.mrb[0].mxu0 %v166
  %v475 = vpop.f32.mrb[0].mxu0
  %v476 = vadd.f32 %v84, %v475
  %v477 = vpop.f32.mrb[0].mxu0
  %478 = vmatprep.mubr.f32.mxu0 0.0
  %479 = vmatmul.mubr.f32.gmra.mrb[0].mxu0 %v169
  %v480 = vpop.f32.mrb[0].mxu0
  %v481 = vadd.f32 %v84, %v480
  %v482 = vpop.f32.mrb[0].mxu0
  %483 = vmatprep.mubr.f32.mxu0 0.0
  %484 = vmatmul.mubr.f32.gmra.mrb[0].mxu0 %v172
  %v485 = vpop.f32.mrb[0].mxu0
  %v486 = vadd.f32 %v84, %v485
  %v487 = vpop.f32.mrb[0].mxu0
  %488 = vmatprep.mubr.f32.mxu0 0.0
  %489 = vmatmul.mubr.f32.gmra.mrb[0].mxu0 %v175
  %v490 = vpop.f32.mrb[0].mxu0
  %v491 = vadd.f32 %v84, %v490
  %v492 = vpop.f32.mrb[0].mxu0
  %493 = vmatprep.mubr.f32.mxu0 0.0
  %494 = vmatmul.mubr.f32.gmra.mrb[0].mxu0 %v178
  %v495 = vpop.f32.mrb[0].mxu0
  %v496 = vadd.f32 %v84, %v495
  %v497 = vpop.f32.mrb[0].mxu0
  %498 = vmatprep.mubr.f32.mxu0 0.0
  %499 = vmatmul.mubr.f32.gmra.mrb[0].mxu0 %v181
  %v500 = vpop.f32.mrb[0].mxu0
  %v501 = vadd.f32 %v84, %v500
  %v502 = vpop.f32.mrb[0].mxu0
  %503 = vmatprep.mubr.f32.mxu0 0.0
  %504 = vmatmul.mubr.f32.gmra.mrb[0].mxu0 %v184
  %v505 = vpop.f32.mrb[0].mxu0
  %v506 = vadd.f32 %v84, %v505
  %v507 = vpop.f32.mrb[0].mxu0
  %508 = vmatprep.mubr.f32.mxu0 0.0
  %509 = vmatmul.mubr.f32.gmra.mrb[0].mxu0 %v187
  %v510 = vpop.f32.mrb[0].mxu0
  %v511 = vadd.f32 %v84, %v510
  %v512 = vpop.f32.mrb[0].mxu0
  %513 = vmatprep.mubr.f32.mxu0 0.0
  %514 = vmatmul.mubr.f32.gmra.mrb[0].mxu0 %v190
  %v515 = vpop.f32.mrb[0].mxu0
  %v516 = vadd.f32 %v84, %v515
  %v517 = vpop.f32.mrb[0].mxu0
  %518 = vmatprep.mubr.f32.mxu0 0.0
  %519 = vmatmul.mubr.f32.gmra.mrb[0].mxu0 %v193
  %v520 = vpop.f32.mrb[0].mxu0
  %v521 = vadd.f32 %v84, %v520
  %v522 = vpop.f32.mrb[0].mxu0
  %523 = vmatprep.mubr.f32.mxu0 0.0
  %524 = vmatmul.mubr.f32.gmra.mrb[0].mxu0 %v196
  %v525 = vpop.f32.mrb[0].mxu0
  %v526 = vadd.f32 %v84, %v525
  %v527 = vpop.f32.mrb[0].mxu0
  %528 = vmatprep.mubr.f32.mxu0 0.0
  %529 = vmatmul.mubr.f32.gmra.mrb[0].mxu0 %v199
  %v530 = vpop.f32.mrb[0].mxu0
  %v531 = vadd.f32 %v84, %v530
  %v532 = vpop.f32.mrb[0].mxu0
  %533 = vmatprep.mubr.f32.mxu0 0.0
  %534 = vmatmul.mubr.f32.gmra.mrb[0].mxu0 %v202
  %v535 = vpop.f32.mrb[0].mxu0
  %v536 = vadd.f32 %v84, %v535
  %v537 = vpop.f32.mrb[0].mxu0
  %538 = vmatprep.mubr.f32.mxu0 0.0
  %539 = vmatmul.mubr.f32.gmra.mrb[0].mxu0 %v205
  %v540 = vpop.f32.mrb[0].mxu0
  %v541 = vadd.f32 %v84, %v540
  %v542 = vpop.f32.mrb[0].mxu0
  %543 = vmatprep.mubr.f32.mxu0 0.0
  %544 = vmatmul.mubr.f32.gmra.mrb[0].mxu0 %v208
  %v545 = vpop.f32.mrb[0].mxu0
  %v546 = vadd.f32 %v84, %v545
  %v547 = vpop.f32.mrb[0].mxu0
  %548 = vmatprep.mubr.f32.mxu0 0.0
  %549 = vmatmul.mubr.f32.gmra.mrb[0].mxu0 %v211
  %v550 = vpop.f32.mrb[0].mxu0
  %v551 = vadd.f32 %v84, %v550
  %v552 = vpop.f32.mrb[0].mxu0
  %553 = vmatprep.mubr.f32.mxu0 0.0
  %554 = vmatmul.mubr.f32.gmra.mrb[0].mxu0 %v214
  %v555 = vpop.f32.mrb[0].mxu0
  %v556 = vadd.f32 %v84, %v555
  %v557 = vpop.f32.mrb[0].mxu0
  %558 = vmatprep.mubr.f32.mxu0 0.0
  %559 = vmatmul.mubr.f32.gmra.mrb[0].mxu0 %v217
  %v560 = vpop.f32.mrb[0].mxu0
  %v561 = vadd.f32 %v84, %v560
  %v562 = vpop.f32.mrb[0].mxu0
  %563 = vmatprep.mubr.f32.mxu0 0.0
  %564 = vmatmul.mubr.f32.gmra.mrb[0].mxu0 %v220
  %v565 = vpop.f32.mrb[0].mxu0
  %v566 = vadd.f32 %v84, %v565
  %v567 = vpop.f32.mrb[0].mxu0
  %568 = vmatprep.mubr.f32.mxu0 0.0
  %569 = vmatmul.mubr.f32.gmra.mrb[0].mxu0 %v223
  %v570 = vpop.f32.mrb[0].mxu0
  %v571 = vadd.f32 %v84, %v570
  %v572 = vpop.f32.mrb[0].mxu0
  %573 = vmatprep.mubr.f32.mxu0 0.0
  %574 = vmatmul.mubr.f32.gmra.mrb[0].mxu0 %v226
  %v575 = vpop.f32.mrb[0].mxu0
  %v576 = vadd.f32 %v84, %v575
  %v577 = vpop.f32.mrb[0].mxu0
  %578 = vmatprep.mubr.f32.mxu0 0.0
  %579 = vmatmul.mubr.f32.gmra.mrb[0].mxu0 %v229
  %v580 = vpop.f32.mrb[0].mxu0
  %v581 = vadd.f32 %v84, %v580
  %v582 = vpop.f32.mrb[0].mxu0
  %583 = vmatprep.mubr.f32.mxu0 0.0
  %584 = vmatmul.mubr.f32.gmra.mrb[0].mxu0 %v232
  %v585 = vpop.f32.mrb[0].mxu0
  %v586 = vadd.f32 %v84, %v585
  %v587 = vpop.f32.mrb[0].mxu0
  %588 = vmatprep.mubr.f32.mxu0 0.0
  %589 = vmatmul.mubr.f32.gmra.mrb[0].mxu0 %v235
  %v590 = vpop.f32.mrb[0].mxu0
  %v591 = vadd.f32 %v84, %v590
  %v592 = vpop.f32.mrb[0].mxu0
  %593 = vmatprep.mubr.f32.mxu0 0.0
  %594 = vmatmul.mubr.f32.gmra.mrb[0].mxu0 %v238
  %v595 = vpop.f32.mrb[0].mxu0
  %v596 = vadd.f32 %v84, %v595
  %v597 = vpop.f32.mrb[0].mxu0
  %598 = vmatprep.mubr.f32.mxu0 0.0
  %599 = vmatmul.mubr.f32.gmra.mrb[0].mxu0 %v241
  %v600 = vpop.f32.mrb[0].mxu0
  %v601 = vadd.f32 %v84, %v600
  %v602 = vpop.f32.mrb[0].mxu0
  %603 = vmatprep.mubr.f32.mxu0 0.0
  %604 = vmatmul.mubr.f32.gmra.mrb[0].mxu0 %v244
  %v605 = vpop.f32.mrb[0].mxu0
  %v606 = vadd.f32 %v84, %v605
  %v607 = vpop.f32.mrb[0].mxu0
  %608 = vmatprep.mubr.f32.mxu0 0.0
  %609 = vmatmul.mubr.f32.gmra.mrb[0].mxu0 %v247
  %v610 = vpop.f32.mrb[0].mxu0
  %v611 = vadd.f32 %v84, %v610
  %v612 = vpop.f32.mrb[0].mxu0
  %613 = vmatprep.mubr.f32.mxu0 0.0
  %614 = vmatmul.mubr.f32.gmra.mrb[0].mxu0 %v250
  %v615 = vpop.f32.mrb[0].mxu0
  %v616 = vadd.f32 %v84, %v615
  %v617 = vpop.f32.mrb[0].mxu0
  %618 = vmatprep.mubr.f32.mxu0 0.0
  %619 = vmatmul.mubr.f32.gmra.mrb[0].mxu0 %v253
  %v620 = vpop.f32.mrb[0].mxu0
  %v621 = vadd.f32 %v84, %v620
  %v622 = vpop.f32.mrb[0].mxu0
  %623 = vmatprep.mubr.f32.mxu0 0.0
  %624 = vmatmul.mubr.f32.gmra.mrb[0].mxu0 %v256
  %v625 = vpop.f32.mrb[0].mxu0
  %v626 = vadd.f32 %v84, %v625
  %v627 = vpop.f32.mrb[0].mxu0
  %628 = vmatprep.mubr.f32.mxu0 0.0
  %629 = vmatmul.mubr.f32.gmra.mrb[0].mxu0 %v259
  %v630 = vpop.f32.mrb[0].mxu0
  %v631 = vadd.f32 %v84, %v630
  %v632 = vpop.f32.mrb[0].mxu0
  %633 = vmatprep.mubr.f32.mxu0 0.0
  %634 = vmatmul.mubr.f32.gmra.mrb[0].mxu0 %v262
  %v635 = vpop.f32.mrb[0].mxu0
  %v636 = vadd.f32 %v84, %v635
  %v637 = vpop.f32.mrb[0].mxu0
  %638 = vmatprep.mubr.f32.mxu0 0.0
  %639 = vmatmul.mubr.f32.gmra.mrb[0].mxu0 %v265
  %v640 = vpop.f32.mrb[0].mxu0
  %v641 = vadd.f32 %v84, %v640
  %v642 = vpop.f32.mrb[0].mxu0
  %643 = vmatprep.mubr.f32.mxu0 0.0
  %644 = vmatmul.mubr.f32.gmra.mrb[0].mxu0 %v268
  %v645 = vpop.f32.mrb[0].mxu0
  %v646 = vadd.f32 %v84, %v645
  %v647 = vpop.f32.mrb[0].mxu0
  %648 = vmatprep.mubr.f32.mxu0 0.0
  %649 = vmatmul.mubr.f32.gmra.mrb[0].mxu0 %v271
  %v650 = vpop.f32.mrb[0].mxu0
  %v651 = vadd.f32 %v84, %v650
  %v652 = vpop.f32.mrb[0].mxu0
  %653 = vmatprep.mubr.f32.mxu0 0.0
  %654 = vmatmul.mubr.f32.gmra.mrb[0].mxu0 %v274
  %v655 = vpop.f32.mrb[0].mxu0
  %v656 = vadd.f32 %v84, %v655
  %v657 = vpop.f32.mrb[0].mxu0
  %658 = vmatprep.mubr.f32.mxu0 0.0
  %659 = vmatmul.mubr.f32.gmra.mrb[0].mxu0 %v277
  %v660 = vpop.f32.mrb[0].mxu0
  %v661 = vadd.f32 %v84, %v660
  %v662 = vpop.f32.mrb[0].mxu0
  %663 = vdwg.mxu0
  %vm664 = vcmask 343040
  %665 = vst.msk [vmem:[%s3] sm:$0xff] %vm664, %v346
  %666 = vst.msk [vmem:[%s3 + $0x8] sm:$0xff] %vm664, %v351
  %667 = vst.msk [vmem:[%s3 + $0x10] sm:$0xff] %vm664, %v356
  %668 = vst.msk [vmem:[%s3 + $0x18] sm:$0xff] %vm664, %v361
  %669 = vst.msk [vmem:[%s3 + $0x20] sm:$0xff] %vm664, %v366
  %670 = vst.msk [vmem:[%s3 + $0x28] sm:$0xff] %vm664, %v371
  %671 = vst.msk [vmem:[%s3 + $0x30] sm:$0xff] %vm664, %v376
  %672 = vst.msk [vmem:[%s3 + $0x38] sm:$0xff] %vm664, %v381
  %673 = vst.msk [vmem:[%s3 + $0x40] sm:$0xff] %vm664, %v386
  %674 = vst.msk [vmem:[%s3 + $0x48] sm:$0xff] %vm664, %v391
  %675 = vst.msk [vmem:[%s3 + $0x50] sm:$0xff] %vm664, %v396
  %676 = vst.msk [vmem:[%s3 + $0x58] sm:$0xff] %vm664, %v401
  %677 = vst.msk [vmem:[%s3 + $0x60] sm:$0xff] %vm664, %v406
  %678 = vst.msk [vmem:[%s3 + $0x68] sm:$0xff] %vm664, %v411
  %679 = vst.msk [vmem:[%s3 + $0x70] sm:$0xff] %vm664, %v416
  %680 = vst.msk [vmem:[%s3 + $0x78] sm:$0xff] %vm664, %v421
  %681 = vst.msk [vmem:[%s3 + $0x80] sm:$0xff] %vm664, %v426
  %682 = vst.msk [vmem:[%s3 + $0x88] sm:$0xff] %vm664, %v431
  %683 = vst.msk [vmem:[%s3 + $0x90] sm:$0xff] %vm664, %v436
  %684 = vst.msk [vmem:[%s3 + $0x98] sm:$0xff] %vm664, %v441
  %685 = vst.msk [vmem:[%s3 + $0xa0] sm:$0xff] %vm664, %v446
  %686 = vst.msk [vmem:[%s3 + $0xa8] sm:$0xff] %vm664, %v451
  %687 = vst.msk [vmem:[%s3 + $0xb0] sm:$0xff] %vm664, %v456
  %688 = vst.msk [vmem:[%s3 + $0xb8] sm:$0xff] %vm664, %v461
  %689 = vst.msk [vmem:[%s3 + $0xc0] sm:$0xff] %vm664, %v466
  %690 = vst.msk [vmem:[%s3 + $0xc8] sm:$0xff] %vm664, %v471
  %691 = vst.msk [vmem:[%s3 + $0xd0] sm:$0xff] %vm664, %v476
  %692 = vst.msk [vmem:[%s3 + $0xd8] sm:$0xff] %vm664, %v481
  %693 = vst.msk [vmem:[%s3 + $0xe0] sm:$0xff] %vm664, %v486
  %694 = vst.msk [vmem:[%s3 + $0xe8] sm:$0xff] %vm664, %v491
  %695 = vst.msk [vmem:[%s3 + $0xf0] sm:$0xff] %vm664, %v496
  %696 = vst.msk [vmem:[%s3 + $0xf8] sm:$0xff] %vm664, %v501
  %697 = vst.msk [vmem:[%s3 + $0x100] sm:$0xff] %vm664, %v506
  %698 = vst.msk [vmem:[%s3 + $0x108] sm:$0xff] %vm664, %v511
  %699 = vst.msk [vmem:[%s3 + $0x110] sm:$0xff] %vm664, %v516
  %700 = vst.msk [vmem:[%s3 + $0x118] sm:$0xff] %vm664, %v521
  %701 = vst.msk [vmem:[%s3 + $0x120] sm:$0xff] %vm664, %v526
  %702 = vst.msk [vmem:[%s3 + $0x128] sm:$0xff] %vm664, %v531
  %703 = vst.msk [vmem:[%s3 + $0x130] sm:$0xff] %vm664, %v536
  %704 = vst.msk [vmem:[%s3 + $0x138] sm:$0xff] %vm664, %v541
  %705 = vst.msk [vmem:[%s3 + $0x140] sm:$0xff] %vm664, %v546
  %706 = vst.msk [vmem:[%s3 + $0x148] sm:$0xff] %vm664, %v551
  %707 = vst.msk [vmem:[%s3 + $0x150] sm:$0xff] %vm664, %v556
  %708 = vst.msk [vmem:[%s3 + $0x158] sm:$0xff] %vm664, %v561
  %709 = vst.msk [vmem:[%s3 + $0x160] sm:$0xff] %vm664, %v566
  %710 = vst.msk [vmem:[%s3 + $0x168] sm:$0xff] %vm664, %v571
  %711 = vst.msk [vmem:[%s3 + $0x170] sm:$0xff] %vm664, %v576
  %712 = vst.msk [vmem:[%s3 + $0x178] sm:$0xff] %vm664, %v581
  %713 = vst.msk [vmem:[%s3 + $0x180] sm:$0xff] %vm664, %v586
  %714 = vst.msk [vmem:[%s3 + $0x188] sm:$0xff] %vm664, %v591
  %715 = vst.msk [vmem:[%s3 + $0x190] sm:$0xff] %vm664, %v596
  %716 = vst.msk [vmem:[%s3 + $0x198] sm:$0xff] %vm664, %v601
  %717 = vst.msk [vmem:[%s3 + $0x1a0] sm:$0xff] %vm664, %v606
  %718 = vst.msk [vmem:[%s3 + $0x1a8] sm:$0xff] %vm664, %v611
  %719 = vst.msk [vmem:[%s3 + $0x1b0] sm:$0xff] %vm664, %v616
  %720 = vst.msk [vmem:[%s3 + $0x1b8] sm:$0xff] %vm664, %v621
  %721 = vst.msk [vmem:[%s3 + $0x1c0] sm:$0xff] %vm664, %v626
  %722 = vst.msk [vmem:[%s3 + $0x1c8] sm:$0xff] %vm664, %v631
  %723 = vst.msk [vmem:[%s3 + $0x1d0] sm:$0xff] %vm664, %v636
  %724 = vst.msk [vmem:[%s3 + $0x1d8] sm:$0xff] %vm664, %v641
  %725 = vst.msk [vmem:[%s3 + $0x1e0] sm:$0xff] %vm664, %v646
  %726 = vst.msk [vmem:[%s3 + $0x1e8] sm:$0xff] %vm664, %v651
  %727 = vst.msk [vmem:[%s3 + $0x1f0] sm:$0xff] %vm664, %v656
  %728 = vst.msk [vmem:[%s3 + $0x1f8] sm:$0xff] %vm664, %v661
  // Predicated region
  $region14: #{ssd_forward.12} parent=0 // pred_check
    _
  $region15: #{ssd_forward.12} parent=0 // pred_check_branch
    %730 = sbr.rel (0) target = $region17
  $region16: #{ssd_forward.12} parent=0 // pred_region
    _
  $region17: #{ssd_forward.12} parent=0 // pred_fallthru
    _
  // Predicated region
  $region18: #{ssd_forward.12} parent=0 // pred_check
    _
  $region19: #{ssd_forward.12} parent=0 // pred_check_branch
    %732 = sbr.rel (0) target = $region21
  $region20: #{ssd_forward.12} parent=0 // pred_region
    _
  $region21: #{ssd_forward.12} parent=0 // pred_fallthru
    _

// kernel: ssd_forward.15
$region0: #{ssd_forward.15}
  #allocation0 [shape = 'u32[]', space=smem, size = 0x4, offset = 0x4, fixed_abs, tag = 'smem constant byte address 0x4 - core index']
  #allocation1 [shape = 'u32[144,128]{1,0:T(1,128)}', space=vmem, size = 0x12000, scoped, tag = 'internal scratch']
  %s0 = inlined_call_operand.vmem [shape: f32[4,2136], index: 0, kind: input, shape index: {}]
  %s1 = inlined_call_operand.vmem [shape: f32[8,2136], index: 1, kind: input, shape index: {}]
  %s2 = inlined_call_operand.vmem [shape: f32[8,2136], index: 2, kind: output, shape index: {}]
  %s3 = sld [smem:[#allocation0]]
  $region18: #{ssd_forward.15} parent=0
    _
  %s5 = ssub.s32 1, %s3
  %s6 = scalar_select 0, %s5, %s3
  // Predicated region
  $region2: #{ssd_forward.15} parent=0 // pred_check
    _
  $region3: #{ssd_forward.15} parent=0 // pred_check_branch
    %8 = sbr.rel (0) target = $region5
  $region4: #{ssd_forward.15} parent=0 // pred_region
    _
  $region5: #{ssd_forward.15} parent=0 // pred_fallthru
    _
  // Predicated region
  $region6: #{ssd_forward.15} parent=0 // pred_check
    _
  $region7: #{ssd_forward.15} parent=0 // pred_check_branch
    %10 = sbr.rel (0) target = $region9
  $region8: #{ssd_forward.15} parent=0 // pred_region
    _
  $region9: #{ssd_forward.15} parent=0 // pred_fallthru
    _
  %v11 = vld [vmem:[%s0] sm:$0xff]
  %v12 = vld [vmem:[%s0 + $0x8] sm:$0xff]
  %v13 = vld [vmem:[%s0 + $0x10] sm:$0xff]
  %v14 = vld [vmem:[%s0 + $0x18] sm:$0xff]
  %v15 = vld [vmem:[%s0 + $0x20] sm:$0xff]
  %v16 = vld [vmem:[%s0 + $0x28] sm:$0xff]
  %v17 = vld [vmem:[%s0 + $0x30] sm:$0xff]
  %v18 = vld [vmem:[%s0 + $0x38] sm:$0xff]
  %v19 = vld [vmem:[%s0 + $0x40] sm:$0xf]
  %v20 = vld [vmem:[%s1] sm:$0xf]
  %v21 = vld [vmem:[%s1 + $0x8] sm:$0xf]
  %v22 = vld [vmem:[%s1 + $0x10] sm:$0xf]
  %v23 = vld [vmem:[%s1 + $0x18] sm:$0xf]
  %v24 = vld [vmem:[%s1 + $0x20] sm:$0xf]
  %v25 = vld [vmem:[%s1 + $0x28] sm:$0xf]
  %v26 = vld [vmem:[%s1 + $0x30] sm:$0xf]
  %v27 = vld [vmem:[%s1 + $0x38] sm:$0xf]
  %v28 = vld [vmem:[%s1 + $0x40] sm:$0xf]
  %v29 = vld [vmem:[%s1 + $0x48] sm:$0xf]
  %v30 = vld [vmem:[%s1 + $0x50] sm:$0xf]
  %v31 = vld [vmem:[%s1 + $0x58] sm:$0xf]
  %v32 = vld [vmem:[%s1 + $0x60] sm:$0xf]
  %v33 = vld [vmem:[%s1 + $0x68] sm:$0xf]
  %v34 = vld [vmem:[%s1 + $0x70] sm:$0xf]
  %v35 = vld [vmem:[%s1 + $0x78] sm:$0xf]
  %v36 = vld [vmem:[%s1 + $0x80] sm:$0xf]
  %v54 = vcombine.low %v20, %v21
  %v55 = vcombine.low %v22, %v23
  %v56 = vcombine.low %v24, %v25
  %v57 = vcombine.low %v26, %v27
  %v58 = vcombine.low %v28, %v29
  %v59 = vcombine.low %v30, %v31
  %v60 = vcombine.low %v32, %v33
  %v61 = vcombine.low %v34, %v35
  %v62 = vrot.slane %v54, 6
  %v63 = vrot.slane %v55, 6
  %v64 = vrot.slane %v56, 6
  %v65 = vrot.slane %v57, 6
  %v66 = vrot.slane %v58, 6
  %v67 = vrot.slane %v59, 6
  %v68 = vrot.slane %v60, 6
  %v69 = vrot.slane %v61, 6
  %v70 = vrot.slane %v36, 6
  %v80 = vmul.f32 %v11, %v62
  %v81 = vmul.f32 %v12, %v63
  %v82 = vmul.f32 %v13, %v64
  %v83 = vmul.f32 %v14, %v65
  %v84 = vmul.f32 %v15, %v66
  %v85 = vmul.f32 %v16, %v67
  %v86 = vmul.f32 %v17, %v68
  %v87 = vmul.f32 %v18, %v69
  %v88 = vmul.f32 %v19, %v70
  %v98 = vrot.slane %v80, 6
  %v99 = vrot.slane %v98, 4
  %v100 = vrot.slane %v81, 6
  %v101 = vrot.slane %v100, 4
  %v102 = vrot.slane %v82, 6
  %v103 = vrot.slane %v102, 4
  %v104 = vrot.slane %v83, 6
  %v105 = vrot.slane %v104, 4
  %v106 = vrot.slane %v84, 6
  %v107 = vrot.slane %v106, 4
  %v108 = vrot.slane %v85, 6
  %v109 = vrot.slane %v108, 4
  %v110 = vrot.slane %v86, 6
  %v111 = vrot.slane %v110, 4
  %v112 = vrot.slane %v87, 6
  %v113 = vrot.slane %v112, 4
  %v114 = vrot.slane %v88, 6
  %v115 = vrot.slane %v114, 4
  %v125 = vadd.f32 %v11, %v99
  %v126 = vadd.f32 %v12, %v101
  %v127 = vadd.f32 %v13, %v103
  %v128 = vadd.f32 %v14, %v105
  %v129 = vadd.f32 %v15, %v107
  %v130 = vadd.f32 %v16, %v109
  %v131 = vadd.f32 %v17, %v111
  %v132 = vadd.f32 %v18, %v113
  %v133 = vadd.f32 %v19, %v115
  %v134 = vmul.f32 %v20, 1.442695
  %v135 = vpow.pop %v134
  %v136 = vmul.f32 %v21, 1.442695
  %v137 = vpow.pop %v136
  %v138 = vmul.f32 %v22, 1.442695
  %v139 = vpow.pop %v138
  %v140 = vmul.f32 %v23, 1.442695
  %v141 = vpow.pop %v140
  %v142 = vmul.f32 %v24, 1.442695
  %v143 = vpow.pop %v142
  %v144 = vmul.f32 %v25, 1.442695
  %v145 = vpow.pop %v144
  %v146 = vmul.f32 %v26, 1.442695
  %v147 = vpow.pop %v146
  %v148 = vmul.f32 %v27, 1.442695
  %v149 = vpow.pop %v148
  %v150 = vmul.f32 %v28, 1.442695
  %v151 = vpow.pop %v150
  %v152 = vmul.f32 %v29, 1.442695
  %v153 = vpow.pop %v152
  %v154 = vmul.f32 %v30, 1.442695
  %v155 = vpow.pop %v154
  %v156 = vmul.f32 %v31, 1.442695
  %v157 = vpow.pop %v156
  %v158 = vmul.f32 %v32, 1.442695
  %v159 = vpow.pop %v158
  %v160 = vmul.f32 %v33, 1.442695
  %v161 = vpow.pop %v160
  %v162 = vmul.f32 %v34, 1.442695
  %v163 = vpow.pop %v162
  %v164 = vmul.f32 %v35, 1.442695
  %v165 = vpow.pop %v164
  %v166 = vmul.f32 %v36, 1.442695
  %v167 = vpow.pop %v166
  %v184 = vcombine.low %v135, %v137
  %v185 = vcombine.low %v139, %v141
  %v186 = vcombine.low %v143, %v145
  %v187 = vcombine.low %v147, %v149
  %v188 = vcombine.low %v151, %v153
  %v189 = vcombine.low %v155, %v157
  %v190 = vcombine.low %v159, %v161
  %v191 = vcombine.low %v163, %v165
  %v200 = vmul.f32 %v11, %v184
  %v201 = vmul.f32 %v12, %v185
  %v202 = vmul.f32 %v13, %v186
  %v203 = vmul.f32 %v14, %v187
  %v204 = vmul.f32 %v15, %v188
  %v205 = vmul.f32 %v16, %v189
  %v206 = vmul.f32 %v17, %v190
  %v207 = vmul.f32 %v18, %v191
  %v208 = vmul.f32 %v19, %v167
  %v209 = vmul.f32 %v200, 0.5
  %v210 = vmul.f32 %v201, 0.5
  %v211 = vmul.f32 %v202, 0.5
  %v212 = vmul.f32 %v203, 0.5
  %v213 = vmul.f32 %v204, 0.5
  %v214 = vmul.f32 %v205, 0.5
  %v215 = vmul.f32 %v206, 0.5
  %v216 = vmul.f32 %v207, 0.5
  %v217 = vmul.f32 %v208, 0.5
  %v227 = vrot.slane %v209, 6
  %v228 = vrot.slane %v227, 4
  %v229 = vrot.slane %v210, 6
  %v230 = vrot.slane %v229, 4
  %v231 = vrot.slane %v211, 6
  %v232 = vrot.slane %v231, 4
  %v233 = vrot.slane %v212, 6
  %v234 = vrot.slane %v233, 4
  %v235 = vrot.slane %v213, 6
  %v236 = vrot.slane %v235, 4
  %v237 = vrot.slane %v214, 6
  %v238 = vrot.slane %v237, 4
  %v239 = vrot.slane %v215, 6
  %v240 = vrot.slane %v239, 4
  %v241 = vrot.slane %v216, 6
  %v242 = vrot.slane %v241, 4
  %v243 = vrot.slane %v217, 6
  %v244 = vrot.slane %v243, 4
  %v254 = vsub.f32 %v125, %v228
  %v255 = vsub.f32 %v126, %v230
  %v256 = vsub.f32 %v127, %v232
  %v257 = vsub.f32 %v128, %v234
  %v258 = vsub.f32 %v129, %v236
  %v259 = vsub.f32 %v130, %v238
  %v260 = vsub.f32 %v131, %v240
  %v261 = vsub.f32 %v132, %v242
  %v262 = vsub.f32 %v133, %v244
  %v263 = vadd.f32 %v125, %v228
  %v264 = vadd.f32 %v126, %v230
  %v265 = vadd.f32 %v127, %v232
  %v266 = vadd.f32 %v128, %v234
  %v267 = vadd.f32 %v129, %v236
  %v268 = vadd.f32 %v130, %v238
  %v269 = vadd.f32 %v131, %v240
  %v270 = vadd.f32 %v132, %v242
  %v271 = vadd.f32 %v133, %v244
  %v281 = vlaneseq
  %v282 = vshrl.u32 %v281, 7
  %v283 = vsub.s32 0, %v282
  %v284 = vrot.slane %v254, %v283
  %v285 = vlaneseq
  %v286 = vshrl.u32 %v285, 7
  %v287 = vsub.s32 4, %v286
  %v288 = vrot.slane %v254, %v287
  %v289 = vlaneseq
  %v290 = vshrl.u32 %v289, 7
  %v291 = vsub.s32 0, %v290
  %v292 = vrot.slane %v255, %v291
  %v293 = vlaneseq
  %v294 = vshrl.u32 %v293, 7
  %v295 = vsub.s32 4, %v294
  %v296 = vrot.slane %v255, %v295
  %v297 = vlaneseq
  %v298 = vshrl.u32 %v297, 7
  %v299 = vsub.s32 0, %v298
  %v300 = vrot.slane %v256, %v299
  %v301 = vlaneseq
  %v302 = vshrl.u32 %v301, 7
  %v303 = vsub.s32 4, %v302
  %v304 = vrot.slane %v256, %v303
  %v305 = vlaneseq
  %v306 = vshrl.u32 %v305, 7
  %v307 = vsub.s32 0, %v306
  %v308 = vrot.slane %v257, %v307
  %v309 = vlaneseq
  %v310 = vshrl.u32 %v309, 7
  %v311 = vsub.s32 4, %v310
  %v312 = vrot.slane %v257, %v311
  %v313 = vlaneseq
  %v314 = vshrl.u32 %v313, 7
  %v315 = vsub.s32 0, %v314
  %v316 = vrot.slane %v258, %v315
  %v317 = vlaneseq
  %v318 = vshrl.u32 %v317, 7
  %v319 = vsub.s32 4, %v318
  %v320 = vrot.slane %v258, %v319
  %v321 = vlaneseq
  %v322 = vshrl.u32 %v321, 7
  %v323 = vsub.s32 0, %v322
  %v324 = vrot.slane %v259, %v323
  %v325 = vlaneseq
  %v326 = vshrl.u32 %v325, 7
  %v327 = vsub.s32 4, %v326
  %v328 = vrot.slane %v259, %v327
  %v329 = vlaneseq
  %v330 = vshrl.u32 %v329, 7
  %v331 = vsub.s32 0, %v330
  %v332 = vrot.slane %v260, %v331
  %v333 = vlaneseq
  %v334 = vshrl.u32 %v333, 7
  %v335 = vsub.s32 4, %v334
  %v336 = vrot.slane %v260, %v335
  %v337 = vlaneseq
  %v338 = vshrl.u32 %v337, 7
  %v339 = vsub.s32 0, %v338
  %v340 = vrot.slane %v261, %v339
  %v341 = vlaneseq
  %v342 = vshrl.u32 %v341, 7
  %v343 = vsub.s32 4, %v342
  %v344 = vrot.slane %v261, %v343
  %v345 = vlaneseq
  %v346 = vshrl.u32 %v345, 7
  %v347 = vsub.s32 0, %v346
  %v348 = vrot.slane %v262, %v347
  %v366 = vlaneseq
  %v367 = vshrl.u32 %v366, 7
  %v368 = vsub.s32 1, %v367
  %v369 = vrot.slane %v254, %v368
  %v370 = vlaneseq
  %v371 = vshrl.u32 %v370, 7
  %v372 = vsub.s32 5, %v371
  %v373 = vrot.slane %v254, %v372
  %v374 = vlaneseq
  %v375 = vshrl.u32 %v374, 7
  %v376 = vsub.s32 1, %v375
  %v377 = vrot.slane %v255, %v376
  %v378 = vlaneseq
  %v379 = vshrl.u32 %v378, 7
  %v380 = vsub.s32 5, %v379
  %v381 = vrot.slane %v255, %v380
  %v382 = vlaneseq
  %v383 = vshrl.u32 %v382, 7
  %v384 = vsub.s32 1, %v383
  %v385 = vrot.slane %v256, %v384
  %v386 = vlaneseq
  %v387 = vshrl.u32 %v386, 7
  %v388 = vsub.s32 5, %v387
  %v389 = vrot.slane %v256, %v388
  %v390 = vlaneseq
  %v391 = vshrl.u32 %v390, 7
  %v392 = vsub.s32 1, %v391
  %v393 = vrot.slane %v257, %v392
  %v394 = vlaneseq
  %v395 = vshrl.u32 %v394, 7
  %v396 = vsub.s32 5, %v395
  %v397 = vrot.slane %v257, %v396
  %v398 = vlaneseq
  %v399 = vshrl.u32 %v398, 7
  %v400 = vsub.s32 1, %v399
  %v401 = vrot.slane %v258, %v400
  %v402 = vlaneseq
  %v403 = vshrl.u32 %v402, 7
  %v404 = vsub.s32 5, %v403
  %v405 = vrot.slane %v258, %v404
  %v406 = vlaneseq
  %v407 = vshrl.u32 %v406, 7
  %v408 = vsub.s32 1, %v407
  %v409 = vrot.slane %v259, %v408
  %v410 = vlaneseq
  %v411 = vshrl.u32 %v410, 7
  %v412 = vsub.s32 5, %v411
  %v413 = vrot.slane %v259, %v412
  %v414 = vlaneseq
  %v415 = vshrl.u32 %v414, 7
  %v416 = vsub.s32 1, %v415
  %v417 = vrot.slane %v260, %v416
  %v418 = vlaneseq
  %v419 = vshrl.u32 %v418, 7
  %v420 = vsub.s32 5, %v419
  %v421 = vrot.slane %v260, %v420
  %v422 = vlaneseq
  %v423 = vshrl.u32 %v422, 7
  %v424 = vsub.s32 1, %v423
  %v425 = vrot.slane %v261, %v424
  %v426 = vlaneseq
  %v427 = vshrl.u32 %v426, 7
  %v428 = vsub.s32 5, %v427
  %v429 = vrot.slane %v261, %v428
  %v430 = vlaneseq
  %v431 = vshrl.u32 %v430, 7
  %v432 = vsub.s32 1, %v431
  %v433 = vrot.slane %v262, %v432
  %v460 = vlaneseq
  %v461 = vshrl.u32 %v460, 7
  %v462 = vsub.s32 0, %v461
  %v463 = vrot.slane %v263, %v462
  %v464 = vlaneseq
  %v465 = vshrl.u32 %v464, 7
  %v466 = vsub.s32 4, %v465
  %v467 = vrot.slane %v263, %v466
  %v468 = vlaneseq
  %v469 = vshrl.u32 %v468, 7
  %v470 = vsub.s32 0, %v469
  %v471 = vrot.slane %v264, %v470
  %v472 = vlaneseq
  %v473 = vshrl.u32 %v472, 7
  %v474 = vsub.s32 4, %v473
  %v475 = vrot.slane %v264, %v474
  %v476 = vlaneseq
  %v477 = vshrl.u32 %v476, 7
  %v478 = vsub.s32 0, %v477
  %v479 = vrot.slane %v265, %v478
  %v480 = vlaneseq
  %v481 = vshrl.u32 %v480, 7
  %v482 = vsub.s32 4, %v481
  %v483 = vrot.slane %v265, %v482
  %v484 = vlaneseq
  %v485 = vshrl.u32 %v484, 7
  %v486 = vsub.s32 0, %v485
  %v487 = vrot.slane %v266, %v486
  %v488 = vlaneseq
  %v489 = vshrl.u32 %v488, 7
  %v490 = vsub.s32 4, %v489
  %v491 = vrot.slane %v266, %v490
  %v492 = vlaneseq
  %v493 = vshrl.u32 %v492, 7
  %v494 = vsub.s32 0, %v493
  %v495 = vrot.slane %v267, %v494
  %v496 = vlaneseq
  %v497 = vshrl.u32 %v496, 7
  %v498 = vsub.s32 4, %v497
  %v499 = vrot.slane %v267, %v498
  %v500 = vlaneseq
  %v501 = vshrl.u32 %v500, 7
  %v502 = vsub.s32 0, %v501
  %v503 = vrot.slane %v268, %v502
  %v504 = vlaneseq
  %v505 = vshrl.u32 %v504, 7
  %v506 = vsub.s32 4, %v505
  %v507 = vrot.slane %v268, %v506
  %v508 = vlaneseq
  %v509 = vshrl.u32 %v508, 7
  %v510 = vsub.s32 0, %v509
  %v511 = vrot.slane %v269, %v510
  %v512 = vlaneseq
  %v513 = vshrl.u32 %v512, 7
  %v514 = vsub.s32 4, %v513
  %v515 = vrot.slane %v269, %v514
  %v516 = vlaneseq
  %v517 = vshrl.u32 %v516, 7
  %v518 = vsub.s32 0, %v517
  %v519 = vrot.slane %v270, %v518
  %v520 = vlaneseq
  %v521 = vshrl.u32 %v520, 7
  %v522 = vsub.s32 4, %v521
  %v523 = vrot.slane %v270, %v522
  %v524 = vlaneseq
  %v525 = vshrl.u32 %v524, 7
  %v526 = vsub.s32 0, %v525
  %v527 = vrot.slane %v271, %v526
  %v545 = vlaneseq
  %v546 = vshrl.u32 %v545, 7
  %v547 = vsub.s32 1, %v546
  %v548 = vrot.slane %v263, %v547
  %v549 = vlaneseq
  %v550 = vshrl.u32 %v549, 7
  %v551 = vsub.s32 5, %v550
  %v552 = vrot.slane %v263, %v551
  %v553 = vlaneseq
  %v554 = vshrl.u32 %v553, 7
  %v555 = vsub.s32 1, %v554
  %v556 = vrot.slane %v264, %v555
  %v557 = vlaneseq
  %v558 = vshrl.u32 %v557, 7
  %v559 = vsub.s32 5, %v558
  %v560 = vrot.slane %v264, %v559
  %v561 = vlaneseq
  %v562 = vshrl.u32 %v561, 7
  %v563 = vsub.s32 1, %v562
  %v564 = vrot.slane %v265, %v563
  %v565 = vlaneseq
  %v566 = vshrl.u32 %v565, 7
  %v567 = vsub.s32 5, %v566
  %v568 = vrot.slane %v265, %v567
  %v569 = vlaneseq
  %v570 = vshrl.u32 %v569, 7
  %v571 = vsub.s32 1, %v570
  %v572 = vrot.slane %v266, %v571
  %v573 = vlaneseq
  %v574 = vshrl.u32 %v573, 7
  %v575 = vsub.s32 5, %v574
  %v576 = vrot.slane %v266, %v575
  %v577 = vlaneseq
  %v578 = vshrl.u32 %v577, 7
  %v579 = vsub.s32 1, %v578
  %v580 = vrot.slane %v267, %v579
  %v581 = vlaneseq
  %v582 = vshrl.u32 %v581, 7
  %v583 = vsub.s32 5, %v582
  %v584 = vrot.slane %v267, %v583
  %v585 = vlaneseq
  %v586 = vshrl.u32 %v585, 7
  %v587 = vsub.s32 1, %v586
  %v588 = vrot.slane %v268, %v587
  %v589 = vlaneseq
  %v590 = vshrl.u32 %v589, 7
  %v591 = vsub.s32 5, %v590
  %v592 = vrot.slane %v268, %v591
  %v593 = vlaneseq
  %v594 = vshrl.u32 %v593, 7
  %v595 = vsub.s32 1, %v594
  %v596 = vrot.slane %v269, %v595
  %v597 = vlaneseq
  %v598 = vshrl.u32 %v597, 7
  %v599 = vsub.s32 5, %v598
  %v600 = vrot.slane %v269, %v599
  %v601 = vlaneseq
  %v602 = vshrl.u32 %v601, 7
  %v603 = vsub.s32 1, %v602
  %v604 = vrot.slane %v270, %v603
  %v605 = vlaneseq
  %v606 = vshrl.u32 %v605, 7
  %v607 = vsub.s32 5, %v606
  %v608 = vrot.slane %v270, %v607
  %v609 = vlaneseq
  %v610 = vshrl.u32 %v609, 7
  %v611 = vsub.s32 1, %v610
  %v612 = vrot.slane %v271, %v611
  %vm630 = vcmask 1040384
  %v631 = vsel %vm630, %v284, %v369
  %v632 = vsel %vm630, %v288, %v373
  %v633 = vsel %vm630, %v292, %v377
  %v634 = vsel %vm630, %v296, %v381
  %v635 = vsel %vm630, %v300, %v385
  %v636 = vsel %vm630, %v304, %v389
  %v637 = vsel %vm630, %v308, %v393
  %v638 = vsel %vm630, %v312, %v397
  %v639 = vsel %vm630, %v316, %v401
  %v640 = vsel %vm630, %v320, %v405
  %v641 = vsel %vm630, %v324, %v409
  %v642 = vsel %vm630, %v328, %v413
  %v643 = vsel %vm630, %v332, %v417
  %v644 = vsel %vm630, %v336, %v421
  %v645 = vsel %vm630, %v340, %v425
  %v646 = vsel %vm630, %v344, %v429
  %v647 = vsel %vm630, %v348, %v433
  %vm648 = vcmask 1041408
  %v649 = vsel %vm648, %v631, %v463
  %v650 = vsel %vm648, %v632, %v467
  %v651 = vsel %vm648, %v633, %v471
  %v652 = vsel %vm648, %v634, %v475
  %v653 = vsel %vm648, %v635, %v479
  %v654 = vsel %vm648, %v636, %v483
  %v655 = vsel %vm648, %v637, %v487
  %v656 = vsel %vm648, %v638, %v491
  %v657 = vsel %vm648, %v639, %v495
  %v658 = vsel %vm648, %v640, %v499
  %v659 = vsel %vm648, %v641, %v503
  %v660 = vsel %vm648, %v642, %v507
  %v661 = vsel %vm648, %v643, %v511
  %v662 = vsel %vm648, %v644, %v515
  %v663 = vsel %vm648, %v645, %v519
  %v664 = vsel %vm648, %v646, %v523
  %v665 = vsel %vm648, %v647, %v527
  %vm666 = vcmask 1042432
  %v667 = vsel %vm666, %v649, %v548
  %v668 = vsel %vm666, %v650, %v552
  %v669 = vsel %vm666, %v651, %v556
  %v670 = vsel %vm666, %v652, %v560
  %v671 = vsel %vm666, %v653, %v564
  %v672 = vsel %vm666, %v654, %v568
  %v673 = vsel %vm666, %v655, %v572
  %v674 = vsel %vm666, %v656, %v576
  %v675 = vsel %vm666, %v657, %v580
  %v676 = vsel %vm666, %v658, %v584
  %v677 = vsel %vm666, %v659, %v588
  %v678 = vsel %vm666, %v660, %v592
  %v679 = vsel %vm666, %v661, %v596
  %v680 = vsel %vm666, %v662, %v600
  %v681 = vsel %vm666, %v663, %v604
  %v682 = vsel %vm666, %v664, %v608
  %v683 = vsel %vm666, %v665, %v612
  %684 = vst [vmem:[%s2] sm:$0xf] %v667
  %685 = vst [vmem:[%s2 + $0x8] sm:$0xf] %v668
  %686 = vst [vmem:[%s2 + $0x10] sm:$0xf] %v669
  %687 = vst [vmem:[%s2 + $0x18] sm:$0xf] %v670
  %688 = vst [vmem:[%s2 + $0x20] sm:$0xf] %v671
  %689 = vst [vmem:[%s2 + $0x28] sm:$0xf] %v672
  %690 = vst [vmem:[%s2 + $0x30] sm:$0xf] %v673
  %691 = vst [vmem:[%s2 + $0x38] sm:$0xf] %v674
  %692 = vst [vmem:[%s2 + $0x40] sm:$0xf] %v675
  %693 = vst [vmem:[%s2 + $0x48] sm:$0xf] %v676
  %694 = vst [vmem:[%s2 + $0x50] sm:$0xf] %v677
  %695 = vst [vmem:[%s2 + $0x58] sm:$0xf] %v678
  %696 = vst [vmem:[%s2 + $0x60] sm:$0xf] %v679
  %697 = vst [vmem:[%s2 + $0x68] sm:$0xf] %v680
  %698 = vst [vmem:[%s2 + $0x70] sm:$0xf] %v681
  %699 = vst [vmem:[%s2 + $0x78] sm:$0xf] %v682
  %vm700 = vcmask 715776
  %701 = vst.msk [vmem:[%s2 + $0x80] sm:$0xf] %vm700, %v683
  %v702 = vld [vmem:[%s1] sm:$0xf0]
  %v703 = vld [vmem:[%s1 + $0x8] sm:$0xf0]
  %v704 = vld [vmem:[%s1 + $0x10] sm:$0xf0]
  %v705 = vld [vmem:[%s1 + $0x18] sm:$0xf0]
  %v706 = vld [vmem:[%s1 + $0x20] sm:$0xf0]
  %v707 = vld [vmem:[%s1 + $0x28] sm:$0xf0]
  %v708 = vld [vmem:[%s1 + $0x30] sm:$0xf0]
  %v709 = vld [vmem:[%s1 + $0x38] sm:$0xf0]
  %v710 = vld [vmem:[%s1 + $0x40] sm:$0xf0]
  %v711 = vld [vmem:[%s1 + $0x48] sm:$0xf0]
  %v712 = vld [vmem:[%s1 + $0x50] sm:$0xf0]
  %v713 = vld [vmem:[%s1 + $0x58] sm:$0xf0]
  %v714 = vld [vmem:[%s1 + $0x60] sm:$0xf0]
  %v715 = vld [vmem:[%s1 + $0x68] sm:$0xf0]
  %v716 = vld [vmem:[%s1 + $0x70] sm:$0xf0]
  %v717 = vld [vmem:[%s1 + $0x78] sm:$0xf0]
  %v718 = vld [vmem:[%s1 + $0x80] sm:$0xf0]
  %v736 = vcombine.high %v702, %v703
  %v737 = vcombine.high %v704, %v705
  %v738 = vcombine.high %v706, %v707
  %v739 = vcombine.high %v708, %v709
  %v740 = vcombine.high %v710, %v711
  %v741 = vcombine.high %v712, %v713
  %v742 = vcombine.high %v714, %v715
  %v743 = vcombine.high %v716, %v717
  %v744 = vcombine.high %v718, %v718
  %v745 = vrot.slane %v736, 6
  %v746 = vrot.slane %v737, 6
  %v747 = vrot.slane %v738, 6
  %v748 = vrot.slane %v739, 6
  %v749 = vrot.slane %v740, 6
  %v750 = vrot.slane %v741, 6
  %v751 = vrot.slane %v742, 6
  %v752 = vrot.slane %v743, 6
  %v753 = vrot.slane %v744, 6
  %v763 = vmul.f32 %v11, %v745
  %v764 = vmul.f32 %v12, %v746
  %v765 = vmul.f32 %v13, %v747
  %v766 = vmul.f32 %v14, %v748
  %v767 = vmul.f32 %v15, %v749
  %v768 = vmul.f32 %v16, %v750
  %v769 = vmul.f32 %v17, %v751
  %v770 = vmul.f32 %v18, %v752
  %v771 = vmul.f32 %v19, %v753
  %v781 = vrot.slane %v763, 6
  %v782 = vrot.slane %v781, 4
  %v783 = vrot.slane %v764, 6
  %v784 = vrot.slane %v783, 4
  %v785 = vrot.slane %v765, 6
  %v786 = vrot.slane %v785, 4
  %v787 = vrot.slane %v766, 6
  %v788 = vrot.slane %v787, 4
  %v789 = vrot.slane %v767, 6
  %v790 = vrot.slane %v789, 4
  %v791 = vrot.slane %v768, 6
  %v792 = vrot.slane %v791, 4
  %v793 = vrot.slane %v769, 6
  %v794 = vrot.slane %v793, 4
  %v795 = vrot.slane %v770, 6
  %v796 = vrot.slane %v795, 4
  %v797 = vrot.slane %v771, 6
  %v798 = vrot.slane %v797, 4
  %v808 = vadd.f32 %v11, %v782
  %v809 = vadd.f32 %v12, %v784
  %v810 = vadd.f32 %v13, %v786
  %v811 = vadd.f32 %v14, %v788
  %v812 = vadd.f32 %v15, %v790
  %v813 = vadd.f32 %v16, %v792
  %v814 = vadd.f32 %v17, %v794
  %v815 = vadd.f32 %v18, %v796
  %v816 = vadd.f32 %v19, %v798
  %v817 = vmul.f32 %v702, 1.442695
  %v818 = vpow.pop %v817
  %v819 = vmul.f32 %v703, 1.442695
  %v820 = vpow.pop %v819
  %v821 = vmul.f32 %v704, 1.442695
  %v822 = vpow.pop %v821
  %v823 = vmul.f32 %v705, 1.442695
  %v824 = vpow.pop %v823
  %v825 = vmul.f32 %v706, 1.442695
  %v826 = vpow.pop %v825
  %v827 = vmul.f32 %v707, 1.442695
  %v828 = vpow.pop %v827
  %v829 = vmul.f32 %v708, 1.442695
  %v830 = vpow.pop %v829
  %v831 = vmul.f32 %v709, 1.442695
  %v832 = vpow.pop %v831
  %v833 = vmul.f32 %v710, 1.442695
  %v834 = vpow.pop %v833
  %v835 = vmul.f32 %v711, 1.442695
  %v836 = vpow.pop %v835
  %v837 = vmul.f32 %v712, 1.442695
  %v838 = vpow.pop %v837
  %v839 = vmul.f32 %v713, 1.442695
  %v840 = vpow.pop %v839
  %v841 = vmul.f32 %v714, 1.442695
  %v842 = vpow.pop %v841
  %v843 = vmul.f32 %v715, 1.442695
  %v844 = vpow.pop %v843
  %v845 = vmul.f32 %v716, 1.442695
  %v846 = vpow.pop %v845
  %v847 = vmul.f32 %v717, 1.442695
  %v848 = vpow.pop %v847
  %v849 = vmul.f32 %v718, 1.442695
  %v850 = vpow.pop %v849
  %v868 = vcombine.high %v818, %v820
  %v869 = vcombine.high %v822, %v824
  %v870 = vcombine.high %v826, %v828
  %v871 = vcombine.high %v830, %v832
  %v872 = vcombine.high %v834, %v836
  %v873 = vcombine.high %v838, %v840
  %v874 = vcombine.high %v842, %v844
  %v875 = vcombine.high %v846, %v848
  %v876 = vcombine.high %v850, %v850
  %v886 = vmul.f32 %v11, %v868
  %v887 = vmul.f32 %v12, %v869
  %v888 = vmul.f32 %v13, %v870
  %v889 = vmul.f32 %v14, %v871
  %v890 = vmul.f32 %v15, %v872
  %v891 = vmul.f32 %v16, %v873
  %v892 = vmul.f32 %v17, %v874
  %v893 = vmul.f32 %v18, %v875
  %v894 = vmul.f32 %v19, %v876
  %v895 = vmul.f32 %v886, 0.5
  %v896 = vmul.f32 %v887, 0.5
  %v897 = vmul.f32 %v888, 0.5
  %v898 = vmul.f32 %v889, 0.5
  %v899 = vmul.f32 %v890, 0.5
  %v900 = vmul.f32 %v891, 0.5
  %v901 = vmul.f32 %v892, 0.5
  %v902 = vmul.f32 %v893, 0.5
  %v903 = vmul.f32 %v894, 0.5
  %v913 = vrot.slane %v895, 6
  %v914 = vrot.slane %v913, 4
  %v915 = vrot.slane %v896, 6
  %v916 = vrot.slane %v915, 4
  %v917 = vrot.slane %v897, 6
  %v918 = vrot.slane %v917, 4
  %v919 = vrot.slane %v898, 6
  %v920 = vrot.slane %v919, 4
  %v921 = vrot.slane %v899, 6
  %v922 = vrot.slane %v921, 4
  %v923 = vrot.slane %v900, 6
  %v924 = vrot.slane %v923, 4
  %v925 = vrot.slane %v901, 6
  %v926 = vrot.slane %v925, 4
  %v927 = vrot.slane %v902, 6
  %v928 = vrot.slane %v927, 4
  %v929 = vrot.slane %v903, 6
  %v930 = vrot.slane %v929, 4
  %v940 = vsub.f32 %v808, %v914
  %v941 = vsub.f32 %v809, %v916
  %v942 = vsub.f32 %v810, %v918
  %v943 = vsub.f32 %v811, %v920
  %v944 = vsub.f32 %v812, %v922
  %v945 = vsub.f32 %v813, %v924
  %v946 = vsub.f32 %v814, %v926
  %v947 = vsub.f32 %v815, %v928
  %v948 = vsub.f32 %v816, %v930
  %v949 = vadd.f32 %v808, %v914
  %v950 = vadd.f32 %v809, %v916
  %v951 = vadd.f32 %v810, %v918
  %v952 = vadd.f32 %v811, %v920
  %v953 = vadd.f32 %v812, %v922
  %v954 = vadd.f32 %v813, %v924
  %v955 = vadd.f32 %v814, %v926
  %v956 = vadd.f32 %v815, %v928
  %v957 = vadd.f32 %v816, %v930
  %v967 = vlaneseq
  %v968 = vshrl.u32 %v967, 7
  %v969 = vsub.s32 0, %v968
  %v970 = vrot.slane %v940, %v969
  %v971 = vlaneseq
  %v972 = vshrl.u32 %v971, 7
  %v973 = vsub.s32 4, %v972
  %v974 = vrot.slane %v940, %v973
  %v975 = vlaneseq
  %v976 = vshrl.u32 %v975, 7
  %v977 = vsub.s32 0, %v976
  %v978 = vrot.slane %v941, %v977
  %v979 = vlaneseq
  %v980 = vshrl.u32 %v979, 7
  %v981 = vsub.s32 4, %v980
  %v982 = vrot.slane %v941, %v981
  %v983 = vlaneseq
  %v984 = vshrl.u32 %v983, 7
  %v985 = vsub.s32 0, %v984
  %v986 = vrot.slane %v942, %v985
  %v987 = vlaneseq
  %v988 = vshrl.u32 %v987, 7
  %v989 = vsub.s32 4, %v988
  %v990 = vrot.slane %v942, %v989
  %v991 = vlaneseq
  %v992 = vshrl.u32 %v991, 7
  %v993 = vsub.s32 0, %v992
  %v994 = vrot.slane %v943, %v993
  %v995 = vlaneseq
  %v996 = vshrl.u32 %v995, 7
  %v997 = vsub.s32 4, %v996
  %v998 = vrot.slane %v943, %v997
  %v999 = vlaneseq
  %v1000 = vshrl.u32 %v999, 7
  %v1001 = vsub.s32 0, %v1000
  %v1002 = vrot.slane %v944, %v1001
  %v1003 = vlaneseq
  %v1004 = vshrl.u32 %v1003, 7
  %v1005 = vsub.s32 4, %v1004
  %v1006 = vrot.slane %v944, %v1005
  %v1007 = vlaneseq
  %v1008 = vshrl.u32 %v1007, 7
  %v1009 = vsub.s32 0, %v1008
  %v1010 = vrot.slane %v945, %v1009
  %v1011 = vlaneseq
  %v1012 = vshrl.u32 %v1011, 7
  %v1013 = vsub.s32 4, %v1012
  %v1014 = vrot.slane %v945, %v1013
  %v1015 = vlaneseq
  %v1016 = vshrl.u32 %v1015, 7
  %v1017 = vsub.s32 0, %v1016
  %v1018 = vrot.slane %v946, %v1017
  %v1019 = vlaneseq
  %v1020 = vshrl.u32 %v1019, 7
  %v1021 = vsub.s32 4, %v1020
  %v1022 = vrot.slane %v946, %v1021
  %v1023 = vlaneseq
  %v1024 = vshrl.u32 %v1023, 7
  %v1025 = vsub.s32 0, %v1024
  %v1026 = vrot.slane %v947, %v1025
  %v1027 = vlaneseq
  %v1028 = vshrl.u32 %v1027, 7
  %v1029 = vsub.s32 4, %v1028
  %v1030 = vrot.slane %v947, %v1029
  %v1031 = vlaneseq
  %v1032 = vshrl.u32 %v1031, 7
  %v1033 = vsub.s32 0, %v1032
  %v1034 = vrot.slane %v948, %v1033
  %v1052 = vlaneseq
  %v1053 = vshrl.u32 %v1052, 7
  %v1054 = vsub.s32 1, %v1053
  %v1055 = vrot.slane %v940, %v1054
  %v1056 = vlaneseq
  %v1057 = vshrl.u32 %v1056, 7
  %v1058 = vsub.s32 5, %v1057
  %v1059 = vrot.slane %v940, %v1058
  %v1060 = vlaneseq
  %v1061 = vshrl.u32 %v1060, 7
  %v1062 = vsub.s32 1, %v1061
  %v1063 = vrot.slane %v941, %v1062
  %v1064 = vlaneseq
  %v1065 = vshrl.u32 %v1064, 7
  %v1066 = vsub.s32 5, %v1065
  %v1067 = vrot.slane %v941, %v1066
  %v1068 = vlaneseq
  %v1069 = vshrl.u32 %v1068, 7
  %v1070 = vsub.s32 1, %v1069
  %v1071 = vrot.slane %v942, %v1070
  %v1072 = vlaneseq
  %v1073 = vshrl.u32 %v1072, 7
  %v1074 = vsub.s32 5, %v1073
  %v1075 = vrot.slane %v942, %v1074
  %v1076 = vlaneseq
  %v1077 = vshrl.u32 %v1076, 7
  %v1078 = vsub.s32 1, %v1077
  %v1079 = vrot.slane %v943, %v1078
  %v1080 = vlaneseq
  %v1081 = vshrl.u32 %v1080, 7
  %v1082 = vsub.s32 5, %v1081
  %v1083 = vrot.slane %v943, %v1082
  %v1084 = vlaneseq
  %v1085 = vshrl.u32 %v1084, 7
  %v1086 = vsub.s32 1, %v1085
  %v1087 = vrot.slane %v944, %v1086
  %v1088 = vlaneseq
  %v1089 = vshrl.u32 %v1088, 7
  %v1090 = vsub.s32 5, %v1089
  %v1091 = vrot.slane %v944, %v1090
  %v1092 = vlaneseq
  %v1093 = vshrl.u32 %v1092, 7
  %v1094 = vsub.s32 1, %v1093
  %v1095 = vrot.slane %v945, %v1094
  %v1096 = vlaneseq
  %v1097 = vshrl.u32 %v1096, 7
  %v1098 = vsub.s32 5, %v1097
  %v1099 = vrot.slane %v945, %v1098
  %v1100 = vlaneseq
  %v1101 = vshrl.u32 %v1100, 7
  %v1102 = vsub.s32 1, %v1101
  %v1103 = vrot.slane %v946, %v1102
  %v1104 = vlaneseq
  %v1105 = vshrl.u32 %v1104, 7
  %v1106 = vsub.s32 5, %v1105
  %v1107 = vrot.slane %v946, %v1106
  %v1108 = vlaneseq
  %v1109 = vshrl.u32 %v1108, 7
  %v1110 = vsub.s32 1, %v1109
  %v1111 = vrot.slane %v947, %v1110
  %v1112 = vlaneseq
  %v1113 = vshrl.u32 %v1112, 7
  %v1114 = vsub.s32 5, %v1113
  %v1115 = vrot.slane %v947, %v1114
  %v1116 = vlaneseq
  %v1117 = vshrl.u32 %v1116, 7
  %v1118 = vsub.s32 1, %v1117
  %v1119 = vrot.slane %v948, %v1118
  %v1146 = vlaneseq
  %v1147 = vshrl.u32 %v1146, 7
  %v1148 = vsub.s32 0, %v1147
  %v1149 = vrot.slane %v949, %v1148
  %v1150 = vlaneseq
  %v1151 = vshrl.u32 %v1150, 7
  %v1152 = vsub.s32 4, %v1151
  %v1153 = vrot.slane %v949, %v1152
  %v1154 = vlaneseq
  %v1155 = vshrl.u32 %v1154, 7
  %v1156 = vsub.s32 0, %v1155
  %v1157 = vrot.slane %v950, %v1156
  %v1158 = vlaneseq
  %v1159 = vshrl.u32 %v1158, 7
  %v1160 = vsub.s32 4, %v1159
  %v1161 = vrot.slane %v950, %v1160
  %v1162 = vlaneseq
  %v1163 = vshrl.u32 %v1162, 7
  %v1164 = vsub.s32 0, %v1163
  %v1165 = vrot.slane %v951, %v1164
  %v1166 = vlaneseq
  %v1167 = vshrl.u32 %v1166, 7
  %v1168 = vsub.s32 4, %v1167
  %v1169 = vrot.slane %v951, %v1168
  %v1170 = vlaneseq
  %v1171 = vshrl.u32 %v1170, 7
  %v1172 = vsub.s32 0, %v1171
  %v1173 = vrot.slane %v952, %v1172
  %v1174 = vlaneseq
  %v1175 = vshrl.u32 %v1174, 7
  %v1176 = vsub.s32 4, %v1175
  %v1177 = vrot.slane %v952, %v1176
  %v1178 = vlaneseq
  %v1179 = vshrl.u32 %v1178, 7
  %v1180 = vsub.s32 0, %v1179
  %v1181 = vrot.slane %v953, %v1180
  %v1182 = vlaneseq
  %v1183 = vshrl.u32 %v1182, 7
  %v1184 = vsub.s32 4, %v1183
  %v1185 = vrot.slane %v953, %v1184
  %v1186 = vlaneseq
  %v1187 = vshrl.u32 %v1186, 7
  %v1188 = vsub.s32 0, %v1187
  %v1189 = vrot.slane %v954, %v1188
  %v1190 = vlaneseq
  %v1191 = vshrl.u32 %v1190, 7
  %v1192 = vsub.s32 4, %v1191
  %v1193 = vrot.slane %v954, %v1192
  %v1194 = vlaneseq
  %v1195 = vshrl.u32 %v1194, 7
  %v1196 = vsub.s32 0, %v1195
  %v1197 = vrot.slane %v955, %v1196
  %v1198 = vlaneseq
  %v1199 = vshrl.u32 %v1198, 7
  %v1200 = vsub.s32 4, %v1199
  %v1201 = vrot.slane %v955, %v1200
  %v1202 = vlaneseq
  %v1203 = vshrl.u32 %v1202, 7
  %v1204 = vsub.s32 0, %v1203
  %v1205 = vrot.slane %v956, %v1204
  %v1206 = vlaneseq
  %v1207 = vshrl.u32 %v1206, 7
  %v1208 = vsub.s32 4, %v1207
  %v1209 = vrot.slane %v956, %v1208
  %v1210 = vlaneseq
  %v1211 = vshrl.u32 %v1210, 7
  %v1212 = vsub.s32 0, %v1211
  %v1213 = vrot.slane %v957, %v1212
  %v1231 = vlaneseq
  %v1232 = vshrl.u32 %v1231, 7
  %v1233 = vsub.s32 1, %v1232
  %v1234 = vrot.slane %v949, %v1233
  %v1235 = vlaneseq
  %v1236 = vshrl.u32 %v1235, 7
  %v1237 = vsub.s32 5, %v1236
  %v1238 = vrot.slane %v949, %v1237
  %v1239 = vlaneseq
  %v1240 = vshrl.u32 %v1239, 7
  %v1241 = vsub.s32 1, %v1240
  %v1242 = vrot.slane %v950, %v1241
  %v1243 = vlaneseq
  %v1244 = vshrl.u32 %v1243, 7
  %v1245 = vsub.s32 5, %v1244
  %v1246 = vrot.slane %v950, %v1245
  %v1247 = vlaneseq
  %v1248 = vshrl.u32 %v1247, 7
  %v1249 = vsub.s32 1, %v1248
  %v1250 = vrot.slane %v951, %v1249
  %v1251 = vlaneseq
  %v1252 = vshrl.u32 %v1251, 7
  %v1253 = vsub.s32 5, %v1252
  %v1254 = vrot.slane %v951, %v1253
  %v1255 = vlaneseq
  %v1256 = vshrl.u32 %v1255, 7
  %v1257 = vsub.s32 1, %v1256
  %v1258 = vrot.slane %v952, %v1257
  %v1259 = vlaneseq
  %v1260 = vshrl.u32 %v1259, 7
  %v1261 = vsub.s32 5, %v1260
  %v1262 = vrot.slane %v952, %v1261
  %v1263 = vlaneseq
  %v1264 = vshrl.u32 %v1263, 7
  %v1265 = vsub.s32 1, %v1264
  %v1266 = vrot.slane %v953, %v1265
  %v1267 = vlaneseq
  %v1268 = vshrl.u32 %v1267, 7
  %v1269 = vsub.s32 5, %v1268
  %v1270 = vrot.slane %v953, %v1269
  %v1271 = vlaneseq
  %v1272 = vshrl.u32 %v1271, 7
  %v1273 = vsub.s32 1, %v1272
  %v1274 = vrot.slane %v954, %v1273
  %v1275 = vlaneseq
  %v1276 = vshrl.u32 %v1275, 7
  %v1277 = vsub.s32 5, %v1276
  %v1278 = vrot.slane %v954, %v1277
  %v1279 = vlaneseq
  %v1280 = vshrl.u32 %v1279, 7
  %v1281 = vsub.s32 1, %v1280
  %v1282 = vrot.slane %v955, %v1281
  %v1283 = vlaneseq
  %v1284 = vshrl.u32 %v1283, 7
  %v1285 = vsub.s32 5, %v1284
  %v1286 = vrot.slane %v955, %v1285
  %v1287 = vlaneseq
  %v1288 = vshrl.u32 %v1287, 7
  %v1289 = vsub.s32 1, %v1288
  %v1290 = vrot.slane %v956, %v1289
  %v1291 = vlaneseq
  %v1292 = vshrl.u32 %v1291, 7
  %v1293 = vsub.s32 5, %v1292
  %v1294 = vrot.slane %v956, %v1293
  %v1295 = vlaneseq
  %v1296 = vshrl.u32 %v1295, 7
  %v1297 = vsub.s32 1, %v1296
  %v1298 = vrot.slane %v957, %v1297
  %v1316 = vsel %vm630, %v970, %v1055
  %v1317 = vsel %vm630, %v974, %v1059
  %v1318 = vsel %vm630, %v978, %v1063
  %v1319 = vsel %vm630, %v982, %v1067
  %v1320 = vsel %vm630, %v986, %v1071
  %v1321 = vsel %vm630, %v990, %v1075
  %v1322 = vsel %vm630, %v994, %v1079
  %v1323 = vsel %vm630, %v998, %v1083
  %v1324 = vsel %vm630, %v1002, %v1087
  %v1325 = vsel %vm630, %v1006, %v1091
  %v1326 = vsel %vm630, %v1010, %v1095
  %v1327 = vsel %vm630, %v1014, %v1099
  %v1328 = vsel %vm630, %v1018, %v1103
  %v1329 = vsel %vm630, %v1022, %v1107
  %v1330 = vsel %vm630, %v1026, %v1111
  %v1331 = vsel %vm630, %v1030, %v1115
  %v1332 = vsel %vm630, %v1034, %v1119
  %v1333 = vsel %vm648, %v1316, %v1149
  %v1334 = vsel %vm648, %v1317, %v1153
  %v1335 = vsel %vm648, %v1318, %v1157
  %v1336 = vsel %vm648, %v1319, %v1161
  %v1337 = vsel %vm648, %v1320, %v1165
  %v1338 = vsel %vm648, %v1321, %v1169
  %v1339 = vsel %vm648, %v1322, %v1173
  %v1340 = vsel %vm648, %v1323, %v1177
  %v1341 = vsel %vm648, %v1324, %v1181
  %v1342 = vsel %vm648, %v1325, %v1185
  %v1343 = vsel %vm648, %v1326, %v1189
  %v1344 = vsel %vm648, %v1327, %v1193
  %v1345 = vsel %vm648, %v1328, %v1197
  %v1346 = vsel %vm648, %v1329, %v1201
  %v1347 = vsel %vm648, %v1330, %v1205
  %v1348 = vsel %vm648, %v1331, %v1209
  %v1349 = vsel %vm648, %v1332, %v1213
  %v1350 = vsel %vm666, %v1333, %v1234
  %v1351 = vsel %vm666, %v1334, %v1238
  %v1352 = vsel %vm666, %v1335, %v1242
  %v1353 = vsel %vm666, %v1336, %v1246
  %v1354 = vsel %vm666, %v1337, %v1250
  %v1355 = vsel %vm666, %v1338, %v1254
  %v1356 = vsel %vm666, %v1339, %v1258
  %v1357 = vsel %vm666, %v1340, %v1262
  %v1358 = vsel %vm666, %v1341, %v1266
  %v1359 = vsel %vm666, %v1342, %v1270
  %v1360 = vsel %vm666, %v1343, %v1274
  %v1361 = vsel %vm666, %v1344, %v1278
  %v1362 = vsel %vm666, %v1345, %v1282
  %v1363 = vsel %vm666, %v1346, %v1286
  %v1364 = vsel %vm666, %v1347, %v1290
  %v1365 = vsel %vm666, %v1348, %v1294
  %v1366 = vsel %vm666, %v1349, %v1298
  %v1384 = vrot.slane %v1350, 4
  %v1385 = vrot.slane %v1351, 4
  %v1386 = vrot.slane %v1352, 4
  %v1387 = vrot.slane %v1353, 4
  %v1388 = vrot.slane %v1354, 4
  %v1389 = vrot.slane %v1355, 4
  %v1390 = vrot.slane %v1356, 4
  %v1391 = vrot.slane %v1357, 4
  %v1392 = vrot.slane %v1358, 4
  %v1393 = vrot.slane %v1359, 4
  %v1394 = vrot.slane %v1360, 4
  %v1395 = vrot.slane %v1361, 4
  %v1396 = vrot.slane %v1362, 4
  %v1397 = vrot.slane %v1363, 4
  %v1398 = vrot.slane %v1364, 4
  %v1399 = vrot.slane %v1365, 4
  %v1400 = vrot.slane %v1366, 4
  %1418 = vst [vmem:[%s2] sm:$0xf0] %v1384
  %1419 = vst [vmem:[%s2 + $0x8] sm:$0xf0] %v1385
  %1420 = vst [vmem:[%s2 + $0x10] sm:$0xf0] %v1386
  %1421 = vst [vmem:[%s2 + $0x18] sm:$0xf0] %v1387
  %1422 = vst [vmem:[%s2 + $0x20] sm:$0xf0] %v1388
  %1423 = vst [vmem:[%s2 + $0x28] sm:$0xf0] %v1389
  %1424 = vst [vmem:[%s2 + $0x30] sm:$0xf0] %v1390
  %1425 = vst [vmem:[%s2 + $0x38] sm:$0xf0] %v1391
  %1426 = vst [vmem:[%s2 + $0x40] sm:$0xf0] %v1392
  %1427 = vst [vmem:[%s2 + $0x48] sm:$0xf0] %v1393
  %1428 = vst [vmem:[%s2 + $0x50] sm:$0xf0] %v1394
  %1429 = vst [vmem:[%s2 + $0x58] sm:$0xf0] %v1395
  %1430 = vst [vmem:[%s2 + $0x60] sm:$0xf0] %v1396
  %1431 = vst [vmem:[%s2 + $0x68] sm:$0xf0] %v1397
  %1432 = vst [vmem:[%s2 + $0x70] sm:$0xf0] %v1398
  %1433 = vst [vmem:[%s2 + $0x78] sm:$0xf0] %v1399
  %vm1434 = vcmask 719876
  %1435 = vst.msk [vmem:[%s2 + $0x80] sm:$0xf0] %vm1434, %v1400
  // Predicated region
  $region10: #{ssd_forward.15} parent=0 // pred_check
    _
  $region11: #{ssd_forward.15} parent=0 // pred_check_branch
    %1437 = sbr.rel (0) target = $region13
  $region12: #{ssd_forward.15} parent=0 // pred_region
    _
  $region13: #{ssd_forward.15} parent=0 // pred_fallthru
    _
  // Predicated region
  $region14: #{ssd_forward.15} parent=0 // pred_check
    _
  $region15: #{ssd_forward.15} parent=0 // pred_check_branch
    %1439 = sbr.rel (0) target = $region17
  $region16: #{ssd_forward.15} parent=0 // pred_region
    _
  $region17: #{ssd_forward.15} parent=0 // pred_fallthru
    _

</llo_original>
